<compile_context>
chip_gen: v7x
topology: tpu7x:2x2x1
jax: 0.10.0
libtpu: 0.0.40
codegen_flags: <defaults>
</compile_context>

<pallas_src>
import functools

import jax
import jax.numpy as jnp
from jax.experimental import pallas as pl
from jax.experimental.pallas import tpu as pltpu


_LANE = 128
# Conservative per-grid-step working-set budget and the scoped-VMEM limit we
# request.  32 MiB is within physical VMEM on every generation (v7x: 64 MiB)
# and above v5e's 16 MiB default scoped limit.
_VMEM_LIMIT_BYTES = 32 * 1024 * 1024
_WORKING_SET_BUDGET_BYTES = 20 * 1024 * 1024
# ~8 resident f32 copies of one block: (2 in + 1 out) double-buffered + carry.
_BYTES_PER_BLOCK_ELEM = 8 * 4


def _round_up(x, m):
    return (x + m - 1) // m * m


def _gumbel_sinkhorn_kernel(u_ref, la_ref, out_ref, *, inv_temp, eps,
                            noise_factor, n_iters, row_axis, col_axis):
    """One block of the Gumbel-Sinkhorn forward.

    Block layouts:
      lane layout : (N, N, BB)   row_axis=1 (torch dim=2), col_axis=0 (torch dim=1)
      batch layout: (BB, N, N)   row_axis=2 (torch dim=2), col_axis=1 (torch dim=1)
    """
    u = u_ref[...].astype(jnp.float32)
    log_alpha = la_ref[...].astype(jnp.float32)

    # Gumbel noise exactly as in sample_from_gumbel: -log(eps - log(U + eps)).
    noise = -jnp.log(eps - jnp.log(u + eps)) * noise_factor
    # Multiply by the precomputed 1/temp (VALU) instead of dividing (EUP path).
    log_alpha = (log_alpha + noise) * inv_temp

    def _logsumexp(x, axis):
        m = jnp.max(x, axis=axis, keepdims=True)
        return m + jnp.log(jnp.sum(jnp.exp(x - m), axis=axis, keepdims=True))

    def body(_, la):
        la = la - _logsumexp(la, axis=row_axis)   # torch dim=2 (row normalize)
        la = la - _logsumexp(la, axis=col_axis)   # torch dim=1 (col normalize)
        return la

    # Unrolled so neighbouring iterations overlap in the VLIW schedule.
    log_alpha = jax.lax.fori_loop(0, n_iters, body, log_alpha, unroll=True)
    out_ref[...] = jnp.exp(log_alpha).astype(out_ref.dtype)


def gumbel_sinkhorn(log_alpha, uniform_noise, *, temp=0.1, eps=1e-20,
                    noise_factor=1.0, n_iters=20):
    """log_alpha, uniform_noise: (batch, N, N) float32 arrays."""
    assert log_alpha.ndim == 3 and log_alpha.shape[1] == log_alpha.shape[2]
    assert uniform_noise.shape == log_alpha.shape
    B, n, _ = log_alpha.shape

    inv_temp = 1.0 / float(temp)
    elem_budget = _WORKING_SET_BUDGET_BYTES // _BYTES_PER_BLOCK_ELEM

    # Preferred layout for small/moderate N: batch on the lane axis.
    use_lane_layout = (n * n * _LANE) <= elem_budget

    if use_lane_layout:
        # Lane block: as many batch elements per grid step as the VMEM budget
        # allows, multiple of 128, capped at the (128-rounded) batch size.
        bb = (elem_budget // (n * n)) // _LANE * _LANE
        bb = max(bb, _LANE)
        bb = min(bb, _round_up(B, _LANE))
        bp = _round_up(B, bb)
        pad = bp - B

        la_in = jnp.transpose(log_alpha, (1, 2, 0))       # (N, N, B)
        u_in = jnp.transpose(uniform_noise, (1, 2, 0))
        if pad:
            # Padded lanes are fully independent; pad with benign values and
            # slice them off afterwards.
            la_in = jnp.pad(la_in, ((0, 0), (0, 0), (0, pad)))
            u_in = jnp.pad(u_in, ((0, 0), (0, 0), (0, pad)),
                           constant_values=0.5)

        grid = (bp // bb,)
        block = (n, n, bb)
        index_map = lambda b: (0, 0, b)
        row_axis, col_axis = 1, 0
        out_shape = jax.ShapeDtypeStruct((n, n, bp), jnp.float32)
    else:
        # Fallback for large N: batch-major layout, BB matrices per grid step.
        # TODO(synk): N so large that a single (1, N, N) block exceeds VMEM
        # would need an in-kernel tiled logsumexp; not implemented.
        bb = max(1, elem_budget // (n * n))
        bb = min(bb, B)
        bp = _round_up(B, bb)
        pad = bp - B

        la_in = log_alpha
        u_in = uniform_noise
        if pad:
            la_in = jnp.pad(la_in, ((0, pad), (0, 0), (0, 0)))
            u_in = jnp.pad(u_in, ((0, pad), (0, 0), (0, 0)),
                           constant_values=0.5)

        grid = (bp // bb,)
        block = (bb, n, n)
        index_map = lambda b: (b, 0, 0)
        row_axis, col_axis = 2, 1
        out_shape = jax.ShapeDtypeStruct((bp, n, n), jnp.float32)

    kernel = functools.partial(
        _gumbel_sinkhorn_kernel,
        inv_temp=inv_temp, eps=float(eps),
        noise_factor=float(noise_factor), n_iters=int(n_iters),
        row_axis=row_axis, col_axis=col_axis,
    )

    out = pl.pallas_call(
        kernel,
        out_shape=out_shape,
        grid=grid,
        in_specs=[
            pl.BlockSpec(block, index_map),   # uniform noise
            pl.BlockSpec(block, index_map),   # log_alpha
        ],
        out_specs=pl.BlockSpec(block, index_map),
        compiler_params=pltpu.CompilerParams(
            dimension_semantics=("parallel",),
            vmem_limit_bytes=_VMEM_LIMIT_BYTES),
    )(u_in, la_in)

    if use_lane_layout:
        return jnp.transpose(out[:, :, :B], (2, 0, 1))
    return out[:B]


def _reference(log_alpha, u, temp=0.1, eps=1e-20, noise_factor=1.0, n_iters=20):
    noise = -jnp.log(eps - jnp.log(u + eps)) * noise_factor
    la = (log_alpha + noise) / temp
    for _ in range(n_iters):
        la = la - jax.scipy.special.logsumexp(la, axis=2, keepdims=True)
        la = la - jax.scipy.special.logsumexp(la, axis=1, keepdims=True)
    return jnp.exp(la)


if __name__ == "__main__":
    key = jax.random.PRNGKey(0)
    k1, k2 = jax.random.split(key)

    batch, n = 2, 8
    log_alpha = jax.random.normal(k1, (batch, n, n), dtype=jnp.float32)
    # Deterministic stand-in for torch.rand (Uniform[0,1)).
    u = jax.random.uniform(k2, (batch, n, n), dtype=jnp.float32)

    out = gumbel_sinkhorn(log_alpha, u, temp=0.1, eps=1e-20,
                          noise_factor=1.0, n_iters=20)
    out = jax.block_until_ready(out)

    ref = _reference(log_alpha, u)
    assert out.shape == (batch, n, n)
    assert jnp.allclose(out, ref, atol=1e-5, rtol=1e-4), "mismatch vs reference"

    print("KERNEL_OK")
</pallas_src>

<mosaic_0001>
module attributes {stable_mosaic.version = 11 : i64} {
  func.func @_gumbel_sinkhorn_kernel(%arg0: i32, %arg1: memref<8x8x128xf32, #tpu.memory_space<vmem>>, %arg2: memref<8x8x128xf32, #tpu.memory_space<vmem>>, %arg3: memref<8x8x128xf32, #tpu.memory_space<vmem>>) attributes {dimension_semantics = [#tpu.dimension_semantics<parallel>], iteration_bounds = array<i64: 1>, scalar_prefetch = 0 : i64, scratch_operands = 0 : i64, tpu.core_type = #tpu.core_type<tc>, window_params = [{transform_indices = @transform_0, window_bounds = array<i64: 8, 8, 128>}, {transform_indices = @transform_1, window_bounds = array<i64: 8, 8, 128>}, {transform_indices = @transform_2, window_bounds = array<i64: 8, 8, 128>}]} {
    %c0 = arith.constant 0 : index
    %c0_0 = arith.constant 0 : index
    %c0_1 = arith.constant 0 : index
    %0 = vector.load %arg1[%c0, %c0_0, %c0_1] : memref<8x8x128xf32, #tpu.memory_space<vmem>>, vector<8x8x128xf32>
    %c0_2 = arith.constant 0 : index
    %c0_3 = arith.constant 0 : index
    %c0_4 = arith.constant 0 : index
    %1 = vector.load %arg2[%c0_2, %c0_3, %c0_4] : memref<8x8x128xf32, #tpu.memory_space<vmem>>, vector<8x8x128xf32>
    %cst = arith.constant 9.99999968E-21 : f32
    %2 = vector.broadcast %cst : f32 to vector<8x8x128xf32>
    %3 = arith.addf %0, %2 : vector<8x8x128xf32>
    %4 = math.log %3 : vector<8x8x128xf32>
    %cst_5 = arith.constant 9.99999968E-21 : f32
    %5 = vector.broadcast %cst_5 : f32 to vector<8x8x128xf32>
    %6 = arith.subf %5, %4 : vector<8x8x128xf32>
    %7 = math.log %6 : vector<8x8x128xf32>
    %cst_6 = arith.constant 0.000000e+00 : f32
    %8 = vector.broadcast %cst_6 : f32 to vector<8x8x128xf32>
    %9 = arith.subf %8, %7 : vector<8x8x128xf32>
    %cst_7 = arith.constant 1.000000e+00 : f32
    %10 = vector.broadcast %cst_7 : f32 to vector<8x8x128xf32>
    %11 = arith.mulf %9, %10 : vector<8x8x128xf32>
    %12 = arith.addf %1, %11 : vector<8x8x128xf32>
    %cst_8 = arith.constant 1.000000e+01 : f32
    %13 = vector.broadcast %cst_8 : f32 to vector<8x8x128xf32>
    %14 = arith.mulf %12, %13 : vector<8x8x128xf32>
    %c0_i32 = arith.constant 0 : i32
    %cst_9 = arith.constant dense<0xFF800000> : vector<8x128xf32>
    %15 = vector.multi_reduction <maximumf>, %14, %cst_9 [1] : vector<8x8x128xf32> to vector<8x128xf32>
    %16 = vector.shape_cast %15 : vector<8x128xf32> to vector<8x1x128xf32>
    %17 = vector.broadcast %16 : vector<8x1x128xf32> to vector<8x8x128xf32>
    %18 = arith.subf %14, %17 : vector<8x8x128xf32>
    %19 = math.exp %18 : vector<8x8x128xf32>
    %cst_10 = arith.constant dense<0.000000e+00> : vector<8x128xf32>
    %20 = vector.multi_reduction <add>, %19, %cst_10 [1] : vector<8x8x128xf32> to vector<8x128xf32>
    %21 = vector.shape_cast %20 : vector<8x128xf32> to vector<8x1x128xf32>
    %22 = math.log %21 : vector<8x1x128xf32>
    %23 = arith.addf %16, %22 : vector<8x1x128xf32>
    %24 = vector.broadcast %23 : vector<8x1x128xf32> to vector<8x8x128xf32>
    %25 = arith.subf %14, %24 : vector<8x8x128xf32>
    %cst_11 = arith.constant dense<0xFF800000> : vector<8x128xf32>
    %26 = vector.multi_reduction <maximumf>, %25, %cst_11 [0] : vector<8x8x128xf32> to vector<8x128xf32>
    %27 = vector.shape_cast %26 : vector<8x128xf32> to vector<1x8x128xf32>
    %28 = vector.broadcast %27 : vector<1x8x128xf32> to vector<8x8x128xf32>
    %29 = arith.subf %25, %28 : vector<8x8x128xf32>
    %30 = math.exp %29 : vector<8x8x128xf32>
    %cst_12 = arith.constant dense<0.000000e+00> : vector<8x128xf32>
    %31 = vector.multi_reduction <add>, %30, %cst_12 [0] : vector<8x8x128xf32> to vector<8x128xf32>
    %32 = vector.shape_cast %31 : vector<8x128xf32> to vector<1x8x128xf32>
    %33 = math.log %32 : vector<1x8x128xf32>
    %34 = arith.addf %27, %33 : vector<1x8x128xf32>
    %35 = vector.broadcast %34 : vector<1x8x128xf32> to vector<8x8x128xf32>
    %36 = arith.subf %25, %35 : vector<8x8x128xf32>
    %c1_i32 = arith.constant 1 : i32
    %cst_13 = arith.constant dense<0xFF800000> : vector<8x128xf32>
    %37 = vector.multi_reduction <maximumf>, %36, %cst_13 [1] : vector<8x8x128xf32> to vector<8x128xf32>
    %38 = vector.shape_cast %37 : vector<8x128xf32> to vector<8x1x128xf32>
    %39 = vector.broadcast %38 : vector<8x1x128xf32> to vector<8x8x128xf32>
    %40 = arith.subf %36, %39 : vector<8x8x128xf32>
    %41 = math.exp %40 : vector<8x8x128xf32>
    %cst_14 = arith.constant dense<0.000000e+00> : vector<8x128xf32>
    %42 = vector.multi_reduction <add>, %41, %cst_14 [1] : vector<8x8x128xf32> to vector<8x128xf32>
    %43 = vector.shape_cast %42 : vector<8x128xf32> to vector<8x1x128xf32>
    %44 = math.log %43 : vector<8x1x128xf32>
    %45 = arith.addf %38, %44 : vector<8x1x128xf32>
    %46 = vector.broadcast %45 : vector<8x1x128xf32> to vector<8x8x128xf32>
    %47 = arith.subf %36, %46 : vector<8x8x128xf32>
    %cst_15 = arith.constant dense<0xFF800000> : vector<8x128xf32>
    %48 = vector.multi_reduction <maximumf>, %47, %cst_15 [0] : vector<8x8x128xf32> to vector<8x128xf32>
    %49 = vector.shape_cast %48 : vector<8x128xf32> to vector<1x8x128xf32>
    %50 = vector.broadcast %49 : vector<1x8x128xf32> to vector<8x8x128xf32>
    %51 = arith.subf %47, %50 : vector<8x8x128xf32>
    %52 = math.exp %51 : vector<8x8x128xf32>
    %cst_16 = arith.constant dense<0.000000e+00> : vector<8x128xf32>
    %53 = vector.multi_reduction <add>, %52, %cst_16 [0] : vector<8x8x128xf32> to vector<8x128xf32>
    %54 = vector.shape_cast %53 : vector<8x128xf32> to vector<1x8x128xf32>
    %55 = math.log %54 : vector<1x8x128xf32>
    %56 = arith.addf %49, %55 : vector<1x8x128xf32>
    %57 = vector.broadcast %56 : vector<1x8x128xf32> to vector<8x8x128xf32>
    %58 = arith.subf %47, %57 : vector<8x8x128xf32>
    %c2_i32 = arith.constant 2 : i32
    %cst_17 = arith.constant dense<0xFF800000> : vector<8x128xf32>
    %59 = vector.multi_reduction <maximumf>, %58, %cst_17 [1] : vector<8x8x128xf32> to vector<8x128xf32>
    %60 = vector.shape_cast %59 : vector<8x128xf32> to vector<8x1x128xf32>
    %61 = vector.broadcast %60 : vector<8x1x128xf32> to vector<8x8x128xf32>
    %62 = arith.subf %58, %61 : vector<8x8x128xf32>
    %63 = math.exp %62 : vector<8x8x128xf32>
    %cst_18 = arith.constant dense<0.000000e+00> : vector<8x128xf32>
    %64 = vector.multi_reduction <add>, %63, %cst_18 [1] : vector<8x8x128xf32> to vector<8x128xf32>
    %65 = vector.shape_cast %64 : vector<8x128xf32> to vector<8x1x128xf32>
    %66 = math.log %65 : vector<8x1x128xf32>
    %67 = arith.addf %60, %66 : vector<8x1x128xf32>
    %68 = vector.broadcast %67 : vector<8x1x128xf32> to vector<8x8x128xf32>
    %69 = arith.subf %58, %68 : vector<8x8x128xf32>
    %cst_19 = arith.constant dense<0xFF800000> : vector<8x128xf32>
    %70 = vector.multi_reduction <maximumf>, %69, %cst_19 [0] : vector<8x8x128xf32> to vector<8x128xf32>
    %71 = vector.shape_cast %70 : vector<8x128xf32> to vector<1x8x128xf32>
    %72 = vector.broadcast %71 : vector<1x8x128xf32> to vector<8x8x128xf32>
    %73 = arith.subf %69, %72 : vector<8x8x128xf32>
    %74 = math.exp %73 : vector<8x8x128xf32>
    %cst_20 = arith.constant dense<0.000000e+00> : vector<8x128xf32>
    %75 = vector.multi_reduction <add>, %74, %cst_20 [0] : vector<8x8x128xf32> to vector<8x128xf32>
    %76 = vector.shape_cast %75 : vector<8x128xf32> to vector<1x8x128xf32>
    %77 = math.log %76 : vector<1x8x128xf32>
    %78 = arith.addf %71, %77 : vector<1x8x128xf32>
    %79 = vector.broadcast %78 : vector<1x8x128xf32> to vector<8x8x128xf32>
    %80 = arith.subf %69, %79 : vector<8x8x128xf32>
    %c3_i32 = arith.constant 3 : i32
    %cst_21 = arith.constant dense<0xFF800000> : vector<8x128xf32>
    %81 = vector.multi_reduction <maximumf>, %80, %cst_21 [1] : vector<8x8x128xf32> to vector<8x128xf32>
    %82 = vector.shape_cast %81 : vector<8x128xf32> to vector<8x1x128xf32>
    %83 = vector.broadcast %82 : vector<8x1x128xf32> to vector<8x8x128xf32>
    %84 = arith.subf %80, %83 : vector<8x8x128xf32>
    %85 = math.exp %84 : vector<8x8x128xf32>
    %cst_22 = arith.constant dense<0.000000e+00> : vector<8x128xf32>
    %86 = vector.multi_reduction <add>, %85, %cst_22 [1] : vector<8x8x128xf32> to vector<8x128xf32>
    %87 = vector.shape_cast %86 : vector<8x128xf32> to vector<8x1x128xf32>
    %88 = math.log %87 : vector<8x1x128xf32>
    %89 = arith.addf %82, %88 : vector<8x1x128xf32>
    %90 = vector.broadcast %89 : vector<8x1x128xf32> to vector<8x8x128xf32>
    %91 = arith.subf %80, %90 : vector<8x8x128xf32>
    %cst_23 = arith.constant dense<0xFF800000> : vector<8x128xf32>
    %92 = vector.multi_reduction <maximumf>, %91, %cst_23 [0] : vector<8x8x128xf32> to vector<8x128xf32>
    %93 = vector.shape_cast %92 : vector<8x128xf32> to vector<1x8x128xf32>
    %94 = vector.broadcast %93 : vector<1x8x128xf32> to vector<8x8x128xf32>
    %95 = arith.subf %91, %94 : vector<8x8x128xf32>
    %96 = math.exp %95 : vector<8x8x128xf32>
    %cst_24 = arith.constant dense<0.000000e+00> : vector<8x128xf32>
    %97 = vector.multi_reduction <add>, %96, %cst_24 [0] : vector<8x8x128xf32> to vector<8x128xf32>
    %98 = vector.shape_cast %97 : vector<8x128xf32> to vector<1x8x128xf32>
    %99 = math.log %98 : vector<1x8x128xf32>
    %100 = arith.addf %93, %99 : vector<1x8x128xf32>
    %101 = vector.broadcast %100 : vector<1x8x128xf32> to vector<8x8x128xf32>
    %102 = arith.subf %91, %101 : vector<8x8x128xf32>
    %c4_i32 = arith.constant 4 : i32
    %cst_25 = arith.constant dense<0xFF800000> : vector<8x128xf32>
    %103 = vector.multi_reduction <maximumf>, %102, %cst_25 [1] : vector<8x8x128xf32> to vector<8x128xf32>
    %104 = vector.shape_cast %103 : vector<8x128xf32> to vector<8x1x128xf32>
    %105 = vector.broadcast %104 : vector<8x1x128xf32> to vector<8x8x128xf32>
    %106 = arith.subf %102, %105 : vector<8x8x128xf32>
    %107 = math.exp %106 : vector<8x8x128xf32>
    %cst_26 = arith.constant dense<0.000000e+00> : vector<8x128xf32>
    %108 = vector.multi_reduction <add>, %107, %cst_26 [1] : vector<8x8x128xf32> to vector<8x128xf32>
    %109 = vector.shape_cast %108 : vector<8x128xf32> to vector<8x1x128xf32>
    %110 = math.log %109 : vector<8x1x128xf32>
    %111 = arith.addf %104, %110 : vector<8x1x128xf32>
    %112 = vector.broadcast %111 : vector<8x1x128xf32> to vector<8x8x128xf32>
    %113 = arith.subf %102, %112 : vector<8x8x128xf32>
    %cst_27 = arith.constant dense<0xFF800000> : vector<8x128xf32>
    %114 = vector.multi_reduction <maximumf>, %113, %cst_27 [0] : vector<8x8x128xf32> to vector<8x128xf32>
    %115 = vector.shape_cast %114 : vector<8x128xf32> to vector<1x8x128xf32>
    %116 = vector.broadcast %115 : vector<1x8x128xf32> to vector<8x8x128xf32>
    %117 = arith.subf %113, %116 : vector<8x8x128xf32>
    %118 = math.exp %117 : vector<8x8x128xf32>
    %cst_28 = arith.constant dense<0.000000e+00> : vector<8x128xf32>
    %119 = vector.multi_reduction <add>, %118, %cst_28 [0] : vector<8x8x128xf32> to vector<8x128xf32>
    %120 = vector.shape_cast %119 : vector<8x128xf32> to vector<1x8x128xf32>
    %121 = math.log %120 : vector<1x8x128xf32>
    %122 = arith.addf %115, %121 : vector<1x8x128xf32>
    %123 = vector.broadcast %122 : vector<1x8x128xf32> to vector<8x8x128xf32>
    %124 = arith.subf %113, %123 : vector<8x8x128xf32>
    %c5_i32 = arith.constant 5 : i32
    %cst_29 = arith.constant dense<0xFF800000> : vector<8x128xf32>
    %125 = vector.multi_reduction <maximumf>, %124, %cst_29 [1] : vector<8x8x128xf32> to vector<8x128xf32>
    %126 = vector.shape_cast %125 : vector<8x128xf32> to vector<8x1x128xf32>
    %127 = vector.broadcast %126 : vector<8x1x128xf32> to vector<8x8x128xf32>
    %128 = arith.subf %124, %127 : vector<8x8x128xf32>
    %129 = math.exp %128 : vector<8x8x128xf32>
    %cst_30 = arith.constant dense<0.000000e+00> : vector<8x128xf32>
    %130 = vector.multi_reduction <add>, %129, %cst_30 [1] : vector<8x8x128xf32> to vector<8x128xf32>
    %131 = vector.shape_cast %130 : vector<8x128xf32> to vector<8x1x128xf32>
    %132 = math.log %131 : vector<8x1x128xf32>
    %133 = arith.addf %126, %132 : vector<8x1x128xf32>
    %134 = vector.broadcast %133 : vector<8x1x128xf32> to vector<8x8x128xf32>
    %135 = arith.subf %124, %134 : vector<8x8x128xf32>
    %cst_31 = arith.constant dense<0xFF800000> : vector<8x128xf32>
    %136 = vector.multi_reduction <maximumf>, %135, %cst_31 [0] : vector<8x8x128xf32> to vector<8x128xf32>
    %137 = vector.shape_cast %136 : vector<8x128xf32> to vector<1x8x128xf32>
    %138 = vector.broadcast %137 : vector<1x8x128xf32> to vector<8x8x128xf32>
    %139 = arith.subf %135, %138 : vector<8x8x128xf32>
    %140 = math.exp %139 : vector<8x8x128xf32>
    %cst_32 = arith.constant dense<0.000000e+00> : vector<8x128xf32>
    %141 = vector.multi_reduction <add>, %140, %cst_32 [0] : vector<8x8x128xf32> to vector<8x128xf32>
    %142 = vector.shape_cast %141 : vector<8x128xf32> to vector<1x8x128xf32>
    %143 = math.log %142 : vector<1x8x128xf32>
    %144 = arith.addf %137, %143 : vector<1x8x128xf32>
    %145 = vector.broadcast %144 : vector<1x8x128xf32> to vector<8x8x128xf32>
    %146 = arith.subf %135, %145 : vector<8x8x128xf32>
    %c6_i32 = arith.constant 6 : i32
    %cst_33 = arith.constant dense<0xFF800000> : vector<8x128xf32>
    %147 = vector.multi_reduction <maximumf>, %146, %cst_33 [1] : vector<8x8x128xf32> to vector<8x128xf32>
    %148 = vector.shape_cast %147 : vector<8x128xf32> to vector<8x1x128xf32>
    %149 = vector.broadcast %148 : vector<8x1x128xf32> to vector<8x8x128xf32>
    %150 = arith.subf %146, %149 : vector<8x8x128xf32>
    %151 = math.exp %150 : vector<8x8x128xf32>
    %cst_34 = arith.constant dense<0.000000e+00> : vector<8x128xf32>
    %152 = vector.multi_reduction <add>, %151, %cst_34 [1] : vector<8x8x128xf32> to vector<8x128xf32>
    %153 = vector.shape_cast %152 : vector<8x128xf32> to vector<8x1x128xf32>
    %154 = math.log %153 : vector<8x1x128xf32>
    %155 = arith.addf %148, %154 : vector<8x1x128xf32>
    %156 = vector.broadcast %155 : vector<8x1x128xf32> to vector<8x8x128xf32>
    %157 = arith.subf %146, %156 : vector<8x8x128xf32>
    %cst_35 = arith.constant dense<0xFF800000> : vector<8x128xf32>
    %158 = vector.multi_reduction <maximumf>, %157, %cst_35 [0] : vector<8x8x128xf32> to vector<8x128xf32>
    %159 = vector.shape_cast %158 : vector<8x128xf32> to vector<1x8x128xf32>
    %160 = vector.broadcast %159 : vector<1x8x128xf32> to vector<8x8x128xf32>
    %161 = arith.subf %157, %160 : vector<8x8x128xf32>
    %162 = math.exp %161 : vector<8x8x128xf32>
    %cst_36 = arith.constant dense<0.000000e+00> : vector<8x128xf32>
    %163 = vector.multi_reduction <add>, %162, %cst_36 [0] : vector<8x8x128xf32> to vector<8x128xf32>
    %164 = vector.shape_cast %163 : vector<8x128xf32> to vector<1x8x128xf32>
    %165 = math.log %164 : vector<1x8x128xf32>
    %166 = arith.addf %159, %165 : vector<1x8x128xf32>
    %167 = vector.broadcast %166 : vector<1x8x128xf32> to vector<8x8x128xf32>
    %168 = arith.subf %157, %167 : vector<8x8x128xf32>
    %c7_i32 = arith.constant 7 : i32
    %cst_37 = arith.constant dense<0xFF800000> : vector<8x128xf32>
    %169 = vector.multi_reduction <maximumf>, %168, %cst_37 [1] : vector<8x8x128xf32> to vector<8x128xf32>
    %170 = vector.shape_cast %169 : vector<8x128xf32> to vector<8x1x128xf32>
    %171 = vector.broadcast %170 : vector<8x1x128xf32> to vector<8x8x128xf32>
    %172 = arith.subf %168, %171 : vector<8x8x128xf32>
    %173 = math.exp %172 : vector<8x8x128xf32>
    %cst_38 = arith.constant dense<0.000000e+00> : vector<8x128xf32>
    %174 = vector.multi_reduction <add>, %173, %cst_38 [1] : vector<8x8x128xf32> to vector<8x128xf32>
    %175 = vector.shape_cast %174 : vector<8x128xf32> to vector<8x1x128xf32>
    %176 = math.log %175 : vector<8x1x128xf32>
    %177 = arith.addf %170, %176 : vector<8x1x128xf32>
    %178 = vector.broadcast %177 : vector<8x1x128xf32> to vector<8x8x128xf32>
    %179 = arith.subf %168, %178 : vector<8x8x128xf32>
    %cst_39 = arith.constant dense<0xFF800000> : vector<8x128xf32>
    %180 = vector.multi_reduction <maximumf>, %179, %cst_39 [0] : vector<8x8x128xf32> to vector<8x128xf32>
    %181 = vector.shape_cast %180 : vector<8x128xf32> to vector<1x8x128xf32>
    %182 = vector.broadcast %181 : vector<1x8x128xf32> to vector<8x8x128xf32>
    %183 = arith.subf %179, %182 : vector<8x8x128xf32>
    %184 = math.exp %183 : vector<8x8x128xf32>
    %cst_40 = arith.constant dense<0.000000e+00> : vector<8x128xf32>
    %185 = vector.multi_reduction <add>, %184, %cst_40 [0] : vector<8x8x128xf32> to vector<8x128xf32>
    %186 = vector.shape_cast %185 : vector<8x128xf32> to vector<1x8x128xf32>
    %187 = math.log %186 : vector<1x8x128xf32>
    %188 = arith.addf %181, %187 : vector<1x8x128xf32>
    %189 = vector.broadcast %188 : vector<1x8x128xf32> to vector<8x8x128xf32>
    %190 = arith.subf %179, %189 : vector<8x8x128xf32>
    %c8_i32 = arith.constant 8 : i32
    %cst_41 = arith.constant dense<0xFF800000> : vector<8x128xf32>
    %191 = vector.multi_reduction <maximumf>, %190, %cst_41 [1] : vector<8x8x128xf32> to vector<8x128xf32>
    %192 = vector.shape_cast %191 : vector<8x128xf32> to vector<8x1x128xf32>
    %193 = vector.broadcast %192 : vector<8x1x128xf32> to vector<8x8x128xf32>
    %194 = arith.subf %190, %193 : vector<8x8x128xf32>
    %195 = math.exp %194 : vector<8x8x128xf32>
    %cst_42 = arith.constant dense<0.000000e+00> : vector<8x128xf32>
    %196 = vector.multi_reduction <add>, %195, %cst_42 [1] : vector<8x8x128xf32> to vector<8x128xf32>
    %197 = vector.shape_cast %196 : vector<8x128xf32> to vector<8x1x128xf32>
    %198 = math.log %197 : vector<8x1x128xf32>
    %199 = arith.addf %192, %198 : vector<8x1x128xf32>
    %200 = vector.broadcast %199 : vector<8x1x128xf32> to vector<8x8x128xf32>
    %201 = arith.subf %190, %200 : vector<8x8x128xf32>
    %cst_43 = arith.constant dense<0xFF800000> : vector<8x128xf32>
    %202 = vector.multi_reduction <maximumf>, %201, %cst_43 [0] : vector<8x8x128xf32> to vector<8x128xf32>
    %203 = vector.shape_cast %202 : vector<8x128xf32> to vector<1x8x128xf32>
    %204 = vector.broadcast %203 : vector<1x8x128xf32> to vector<8x8x128xf32>
    %205 = arith.subf %201, %204 : vector<8x8x128xf32>
    %206 = math.exp %205 : vector<8x8x128xf32>
    %cst_44 = arith.constant dense<0.000000e+00> : vector<8x128xf32>
    %207 = vector.multi_reduction <add>, %206, %cst_44 [0] : vector<8x8x128xf32> to vector<8x128xf32>
    %208 = vector.shape_cast %207 : vector<8x128xf32> to vector<1x8x128xf32>
    %209 = math.log %208 : vector<1x8x128xf32>
    %210 = arith.addf %203, %209 : vector<1x8x128xf32>
    %211 = vector.broadcast %210 : vector<1x8x128xf32> to vector<8x8x128xf32>
    %212 = arith.subf %201, %211 : vector<8x8x128xf32>
    %c9_i32 = arith.constant 9 : i32
    %cst_45 = arith.constant dense<0xFF800000> : vector<8x128xf32>
    %213 = vector.multi_reduction <maximumf>, %212, %cst_45 [1] : vector<8x8x128xf32> to vector<8x128xf32>
    %214 = vector.shape_cast %213 : vector<8x128xf32> to vector<8x1x128xf32>
    %215 = vector.broadcast %214 : vector<8x1x128xf32> to vector<8x8x128xf32>
    %216 = arith.subf %212, %215 : vector<8x8x128xf32>
    %217 = math.exp %216 : vector<8x8x128xf32>
    %cst_46 = arith.constant dense<0.000000e+00> : vector<8x128xf32>
    %218 = vector.multi_reduction <add>, %217, %cst_46 [1] : vector<8x8x128xf32> to vector<8x128xf32>
    %219 = vector.shape_cast %218 : vector<8x128xf32> to vector<8x1x128xf32>
    %220 = math.log %219 : vector<8x1x128xf32>
    %221 = arith.addf %214, %220 : vector<8x1x128xf32>
    %222 = vector.broadcast %221 : vector<8x1x128xf32> to vector<8x8x128xf32>
    %223 = arith.subf %212, %222 : vector<8x8x128xf32>
    %cst_47 = arith.constant dense<0xFF800000> : vector<8x128xf32>
    %224 = vector.multi_reduction <maximumf>, %223, %cst_47 [0] : vector<8x8x128xf32> to vector<8x128xf32>
    %225 = vector.shape_cast %224 : vector<8x128xf32> to vector<1x8x128xf32>
    %226 = vector.broadcast %225 : vector<1x8x128xf32> to vector<8x8x128xf32>
    %227 = arith.subf %223, %226 : vector<8x8x128xf32>
    %228 = math.exp %227 : vector<8x8x128xf32>
    %cst_48 = arith.constant dense<0.000000e+00> : vector<8x128xf32>
    %229 = vector.multi_reduction <add>, %228, %cst_48 [0] : vector<8x8x128xf32> to vector<8x128xf32>
    %230 = vector.shape_cast %229 : vector<8x128xf32> to vector<1x8x128xf32>
    %231 = math.log %230 : vector<1x8x128xf32>
    %232 = arith.addf %225, %231 : vector<1x8x128xf32>
    %233 = vector.broadcast %232 : vector<1x8x128xf32> to vector<8x8x128xf32>
    %234 = arith.subf %223, %233 : vector<8x8x128xf32>
    %c10_i32 = arith.constant 10 : i32
    %cst_49 = arith.constant dense<0xFF800000> : vector<8x128xf32>
    %235 = vector.multi_reduction <maximumf>, %234, %cst_49 [1] : vector<8x8x128xf32> to vector<8x128xf32>
    %236 = vector.shape_cast %235 : vector<8x128xf32> to vector<8x1x128xf32>
    %237 = vector.broadcast %236 : vector<8x1x128xf32> to vector<8x8x128xf32>
    %238 = arith.subf %234, %237 : vector<8x8x128xf32>
    %239 = math.exp %238 : vector<8x8x128xf32>
    %cst_50 = arith.constant dense<0.000000e+00> : vector<8x128xf32>
    %240 = vector.multi_reduction <add>, %239, %cst_50 [1] : vector<8x8x128xf32> to vector<8x128xf32>
    %241 = vector.shape_cast %240 : vector<8x128xf32> to vector<8x1x128xf32>
    %242 = math.log %241 : vector<8x1x128xf32>
    %243 = arith.addf %236, %242 : vector<8x1x128xf32>
    %244 = vector.broadcast %243 : vector<8x1x128xf32> to vector<8x8x128xf32>
    %245 = arith.subf %234, %244 : vector<8x8x128xf32>
    %cst_51 = arith.constant dense<0xFF800000> : vector<8x128xf32>
    %246 = vector.multi_reduction <maximumf>, %245, %cst_51 [0] : vector<8x8x128xf32> to vector<8x128xf32>
    %247 = vector.shape_cast %246 : vector<8x128xf32> to vector<1x8x128xf32>
    %248 = vector.broadcast %247 : vector<1x8x128xf32> to vector<8x8x128xf32>
    %249 = arith.subf %245, %248 : vector<8x8x128xf32>
    %250 = math.exp %249 : vector<8x8x128xf32>
    %cst_52 = arith.constant dense<0.000000e+00> : vector<8x128xf32>
    %251 = vector.multi_reduction <add>, %250, %cst_52 [0] : vector<8x8x128xf32> to vector<8x128xf32>
    %252 = vector.shape_cast %251 : vector<8x128xf32> to vector<1x8x128xf32>
    %253 = math.log %252 : vector<1x8x128xf32>
    %254 = arith.addf %247, %253 : vector<1x8x128xf32>
    %255 = vector.broadcast %254 : vector<1x8x128xf32> to vector<8x8x128xf32>
    %256 = arith.subf %245, %255 : vector<8x8x128xf32>
    %c11_i32 = arith.constant 11 : i32
    %cst_53 = arith.constant dense<0xFF800000> : vector<8x128xf32>
    %257 = vector.multi_reduction <maximumf>, %256, %cst_53 [1] : vector<8x8x128xf32> to vector<8x128xf32>
    %258 = vector.shape_cast %257 : vector<8x128xf32> to vector<8x1x128xf32>
    %259 = vector.broadcast %258 : vector<8x1x128xf32> to vector<8x8x128xf32>
    %260 = arith.subf %256, %259 : vector<8x8x128xf32>
    %261 = math.exp %260 : vector<8x8x128xf32>
    %cst_54 = arith.constant dense<0.000000e+00> : vector<8x128xf32>
    %262 = vector.multi_reduction <add>, %261, %cst_54 [1] : vector<8x8x128xf32> to vector<8x128xf32>
    %263 = vector.shape_cast %262 : vector<8x128xf32> to vector<8x1x128xf32>
    %264 = math.log %263 : vector<8x1x128xf32>
    %265 = arith.addf %258, %264 : vector<8x1x128xf32>
    %266 = vector.broadcast %265 : vector<8x1x128xf32> to vector<8x8x128xf32>
    %267 = arith.subf %256, %266 : vector<8x8x128xf32>
    %cst_55 = arith.constant dense<0xFF800000> : vector<8x128xf32>
    %268 = vector.multi_reduction <maximumf>, %267, %cst_55 [0] : vector<8x8x128xf32> to vector<8x128xf32>
    %269 = vector.shape_cast %268 : vector<8x128xf32> to vector<1x8x128xf32>
    %270 = vector.broadcast %269 : vector<1x8x128xf32> to vector<8x8x128xf32>
    %271 = arith.subf %267, %270 : vector<8x8x128xf32>
    %272 = math.exp %271 : vector<8x8x128xf32>
    %cst_56 = arith.constant dense<0.000000e+00> : vector<8x128xf32>
    %273 = vector.multi_reduction <add>, %272, %cst_56 [0] : vector<8x8x128xf32> to vector<8x128xf32>
    %274 = vector.shape_cast %273 : vector<8x128xf32> to vector<1x8x128xf32>
    %275 = math.log %274 : vector<1x8x128xf32>
    %276 = arith.addf %269, %275 : vector<1x8x128xf32>
    %277 = vector.broadcast %276 : vector<1x8x128xf32> to vector<8x8x128xf32>
    %278 = arith.subf %267, %277 : vector<8x8x128xf32>
    %c12_i32 = arith.constant 12 : i32
    %cst_57 = arith.constant dense<0xFF800000> : vector<8x128xf32>
    %279 = vector.multi_reduction <maximumf>, %278, %cst_57 [1] : vector<8x8x128xf32> to vector<8x128xf32>
    %280 = vector.shape_cast %279 : vector<8x128xf32> to vector<8x1x128xf32>
    %281 = vector.broadcast %280 : vector<8x1x128xf32> to vector<8x8x128xf32>
    %282 = arith.subf %278, %281 : vector<8x8x128xf32>
    %283 = math.exp %282 : vector<8x8x128xf32>
    %cst_58 = arith.constant dense<0.000000e+00> : vector<8x128xf32>
    %284 = vector.multi_reduction <add>, %283, %cst_58 [1] : vector<8x8x128xf32> to vector<8x128xf32>
    %285 = vector.shape_cast %284 : vector<8x128xf32> to vector<8x1x128xf32>
    %286 = math.log %285 : vector<8x1x128xf32>
    %287 = arith.addf %280, %286 : vector<8x1x128xf32>
    %288 = vector.broadcast %287 : vector<8x1x128xf32> to vector<8x8x128xf32>
    %289 = arith.subf %278, %288 : vector<8x8x128xf32>
    %cst_59 = arith.constant dense<0xFF800000> : vector<8x128xf32>
    %290 = vector.multi_reduction <maximumf>, %289, %cst_59 [0] : vector<8x8x128xf32> to vector<8x128xf32>
    %291 = vector.shape_cast %290 : vector<8x128xf32> to vector<1x8x128xf32>
    %292 = vector.broadcast %291 : vector<1x8x128xf32> to vector<8x8x128xf32>
    %293 = arith.subf %289, %292 : vector<8x8x128xf32>
    %294 = math.exp %293 : vector<8x8x128xf32>
    %cst_60 = arith.constant dense<0.000000e+00> : vector<8x128xf32>
    %295 = vector.multi_reduction <add>, %294, %cst_60 [0] : vector<8x8x128xf32> to vector<8x128xf32>
    %296 = vector.shape_cast %295 : vector<8x128xf32> to vector<1x8x128xf32>
    %297 = math.log %296 : vector<1x8x128xf32>
    %298 = arith.addf %291, %297 : vector<1x8x128xf32>
    %299 = vector.broadcast %298 : vector<1x8x128xf32> to vector<8x8x128xf32>
    %300 = arith.subf %289, %299 : vector<8x8x128xf32>
    %c13_i32 = arith.constant 13 : i32
    %cst_61 = arith.constant dense<0xFF800000> : vector<8x128xf32>
    %301 = vector.multi_reduction <maximumf>, %300, %cst_61 [1] : vector<8x8x128xf32> to vector<8x128xf32>
    %302 = vector.shape_cast %301 : vector<8x128xf32> to vector<8x1x128xf32>
    %303 = vector.broadcast %302 : vector<8x1x128xf32> to vector<8x8x128xf32>
    %304 = arith.subf %300, %303 : vector<8x8x128xf32>
    %305 = math.exp %304 : vector<8x8x128xf32>
    %cst_62 = arith.constant dense<0.000000e+00> : vector<8x128xf32>
    %306 = vector.multi_reduction <add>, %305, %cst_62 [1] : vector<8x8x128xf32> to vector<8x128xf32>
    %307 = vector.shape_cast %306 : vector<8x128xf32> to vector<8x1x128xf32>
    %308 = math.log %307 : vector<8x1x128xf32>
    %309 = arith.addf %302, %308 : vector<8x1x128xf32>
    %310 = vector.broadcast %309 : vector<8x1x128xf32> to vector<8x8x128xf32>
    %311 = arith.subf %300, %310 : vector<8x8x128xf32>
    %cst_63 = arith.constant dense<0xFF800000> : vector<8x128xf32>
    %312 = vector.multi_reduction <maximumf>, %311, %cst_63 [0] : vector<8x8x128xf32> to vector<8x128xf32>
    %313 = vector.shape_cast %312 : vector<8x128xf32> to vector<1x8x128xf32>
    %314 = vector.broadcast %313 : vector<1x8x128xf32> to vector<8x8x128xf32>
    %315 = arith.subf %311, %314 : vector<8x8x128xf32>
    %316 = math.exp %315 : vector<8x8x128xf32>
    %cst_64 = arith.constant dense<0.000000e+00> : vector<8x128xf32>
    %317 = vector.multi_reduction <add>, %316, %cst_64 [0] : vector<8x8x128xf32> to vector<8x128xf32>
    %318 = vector.shape_cast %317 : vector<8x128xf32> to vector<1x8x128xf32>
    %319 = math.log %318 : vector<1x8x128xf32>
    %320 = arith.addf %313, %319 : vector<1x8x128xf32>
    %321 = vector.broadcast %320 : vector<1x8x128xf32> to vector<8x8x128xf32>
    %322 = arith.subf %311, %321 : vector<8x8x128xf32>
    %c14_i32 = arith.constant 14 : i32
    %cst_65 = arith.constant dense<0xFF800000> : vector<8x128xf32>
    %323 = vector.multi_reduction <maximumf>, %322, %cst_65 [1] : vector<8x8x128xf32> to vector<8x128xf32>
    %324 = vector.shape_cast %323 : vector<8x128xf32> to vector<8x1x128xf32>
    %325 = vector.broadcast %324 : vector<8x1x128xf32> to vector<8x8x128xf32>
    %326 = arith.subf %322, %325 : vector<8x8x128xf32>
    %327 = math.exp %326 : vector<8x8x128xf32>
    %cst_66 = arith.constant dense<0.000000e+00> : vector<8x128xf32>
    %328 = vector.multi_reduction <add>, %327, %cst_66 [1] : vector<8x8x128xf32> to vector<8x128xf32>
    %329 = vector.shape_cast %328 : vector<8x128xf32> to vector<8x1x128xf32>
    %330 = math.log %329 : vector<8x1x128xf32>
    %331 = arith.addf %324, %330 : vector<8x1x128xf32>
    %332 = vector.broadcast %331 : vector<8x1x128xf32> to vector<8x8x128xf32>
    %333 = arith.subf %322, %332 : vector<8x8x128xf32>
    %cst_67 = arith.constant dense<0xFF800000> : vector<8x128xf32>
    %334 = vector.multi_reduction <maximumf>, %333, %cst_67 [0] : vector<8x8x128xf32> to vector<8x128xf32>
    %335 = vector.shape_cast %334 : vector<8x128xf32> to vector<1x8x128xf32>
    %336 = vector.broadcast %335 : vector<1x8x128xf32> to vector<8x8x128xf32>
    %337 = arith.subf %333, %336 : vector<8x8x128xf32>
    %338 = math.exp %337 : vector<8x8x128xf32>
    %cst_68 = arith.constant dense<0.000000e+00> : vector<8x128xf32>
    %339 = vector.multi_reduction <add>, %338, %cst_68 [0] : vector<8x8x128xf32> to vector<8x128xf32>
    %340 = vector.shape_cast %339 : vector<8x128xf32> to vector<1x8x128xf32>
    %341 = math.log %340 : vector<1x8x128xf32>
    %342 = arith.addf %335, %341 : vector<1x8x128xf32>
    %343 = vector.broadcast %342 : vector<1x8x128xf32> to vector<8x8x128xf32>
    %344 = arith.subf %333, %343 : vector<8x8x128xf32>
    %c15_i32 = arith.constant 15 : i32
    %cst_69 = arith.constant dense<0xFF800000> : vector<8x128xf32>
    %345 = vector.multi_reduction <maximumf>, %344, %cst_69 [1] : vector<8x8x128xf32> to vector<8x128xf32>
    %346 = vector.shape_cast %345 : vector<8x128xf32> to vector<8x1x128xf32>
    %347 = vector.broadcast %346 : vector<8x1x128xf32> to vector<8x8x128xf32>
    %348 = arith.subf %344, %347 : vector<8x8x128xf32>
    %349 = math.exp %348 : vector<8x8x128xf32>
    %cst_70 = arith.constant dense<0.000000e+00> : vector<8x128xf32>
    %350 = vector.multi_reduction <add>, %349, %cst_70 [1] : vector<8x8x128xf32> to vector<8x128xf32>
    %351 = vector.shape_cast %350 : vector<8x128xf32> to vector<8x1x128xf32>
    %352 = math.log %351 : vector<8x1x128xf32>
    %353 = arith.addf %346, %352 : vector<8x1x128xf32>
    %354 = vector.broadcast %353 : vector<8x1x128xf32> to vector<8x8x128xf32>
    %355 = arith.subf %344, %354 : vector<8x8x128xf32>
    %cst_71 = arith.constant dense<0xFF800000> : vector<8x128xf32>
    %356 = vector.multi_reduction <maximumf>, %355, %cst_71 [0] : vector<8x8x128xf32> to vector<8x128xf32>
    %357 = vector.shape_cast %356 : vector<8x128xf32> to vector<1x8x128xf32>
    %358 = vector.broadcast %357 : vector<1x8x128xf32> to vector<8x8x128xf32>
    %359 = arith.subf %355, %358 : vector<8x8x128xf32>
    %360 = math.exp %359 : vector<8x8x128xf32>
    %cst_72 = arith.constant dense<0.000000e+00> : vector<8x128xf32>
    %361 = vector.multi_reduction <add>, %360, %cst_72 [0] : vector<8x8x128xf32> to vector<8x128xf32>
    %362 = vector.shape_cast %361 : vector<8x128xf32> to vector<1x8x128xf32>
    %363 = math.log %362 : vector<1x8x128xf32>
    %364 = arith.addf %357, %363 : vector<1x8x128xf32>
    %365 = vector.broadcast %364 : vector<1x8x128xf32> to vector<8x8x128xf32>
    %366 = arith.subf %355, %365 : vector<8x8x128xf32>
    %c16_i32 = arith.constant 16 : i32
    %cst_73 = arith.constant dense<0xFF800000> : vector<8x128xf32>
    %367 = vector.multi_reduction <maximumf>, %366, %cst_73 [1] : vector<8x8x128xf32> to vector<8x128xf32>
    %368 = vector.shape_cast %367 : vector<8x128xf32> to vector<8x1x128xf32>
    %369 = vector.broadcast %368 : vector<8x1x128xf32> to vector<8x8x128xf32>
    %370 = arith.subf %366, %369 : vector<8x8x128xf32>
    %371 = math.exp %370 : vector<8x8x128xf32>
    %cst_74 = arith.constant dense<0.000000e+00> : vector<8x128xf32>
    %372 = vector.multi_reduction <add>, %371, %cst_74 [1] : vector<8x8x128xf32> to vector<8x128xf32>
    %373 = vector.shape_cast %372 : vector<8x128xf32> to vector<8x1x128xf32>
    %374 = math.log %373 : vector<8x1x128xf32>
    %375 = arith.addf %368, %374 : vector<8x1x128xf32>
    %376 = vector.broadcast %375 : vector<8x1x128xf32> to vector<8x8x128xf32>
    %377 = arith.subf %366, %376 : vector<8x8x128xf32>
    %cst_75 = arith.constant dense<0xFF800000> : vector<8x128xf32>
    %378 = vector.multi_reduction <maximumf>, %377, %cst_75 [0] : vector<8x8x128xf32> to vector<8x128xf32>
    %379 = vector.shape_cast %378 : vector<8x128xf32> to vector<1x8x128xf32>
    %380 = vector.broadcast %379 : vector<1x8x128xf32> to vector<8x8x128xf32>
    %381 = arith.subf %377, %380 : vector<8x8x128xf32>
    %382 = math.exp %381 : vector<8x8x128xf32>
    %cst_76 = arith.constant dense<0.000000e+00> : vector<8x128xf32>
    %383 = vector.multi_reduction <add>, %382, %cst_76 [0] : vector<8x8x128xf32> to vector<8x128xf32>
    %384 = vector.shape_cast %383 : vector<8x128xf32> to vector<1x8x128xf32>
    %385 = math.log %384 : vector<1x8x128xf32>
    %386 = arith.addf %379, %385 : vector<1x8x128xf32>
    %387 = vector.broadcast %386 : vector<1x8x128xf32> to vector<8x8x128xf32>
    %388 = arith.subf %377, %387 : vector<8x8x128xf32>
    %c17_i32 = arith.constant 17 : i32
    %cst_77 = arith.constant dense<0xFF800000> : vector<8x128xf32>
    %389 = vector.multi_reduction <maximumf>, %388, %cst_77 [1] : vector<8x8x128xf32> to vector<8x128xf32>
    %390 = vector.shape_cast %389 : vector<8x128xf32> to vector<8x1x128xf32>
    %391 = vector.broadcast %390 : vector<8x1x128xf32> to vector<8x8x128xf32>
    %392 = arith.subf %388, %391 : vector<8x8x128xf32>
    %393 = math.exp %392 : vector<8x8x128xf32>
    %cst_78 = arith.constant dense<0.000000e+00> : vector<8x128xf32>
    %394 = vector.multi_reduction <add>, %393, %cst_78 [1] : vector<8x8x128xf32> to vector<8x128xf32>
    %395 = vector.shape_cast %394 : vector<8x128xf32> to vector<8x1x128xf32>
    %396 = math.log %395 : vector<8x1x128xf32>
    %397 = arith.addf %390, %396 : vector<8x1x128xf32>
    %398 = vector.broadcast %397 : vector<8x1x128xf32> to vector<8x8x128xf32>
    %399 = arith.subf %388, %398 : vector<8x8x128xf32>
    %cst_79 = arith.constant dense<0xFF800000> : vector<8x128xf32>
    %400 = vector.multi_reduction <maximumf>, %399, %cst_79 [0] : vector<8x8x128xf32> to vector<8x128xf32>
    %401 = vector.shape_cast %400 : vector<8x128xf32> to vector<1x8x128xf32>
    %402 = vector.broadcast %401 : vector<1x8x128xf32> to vector<8x8x128xf32>
    %403 = arith.subf %399, %402 : vector<8x8x128xf32>
    %404 = math.exp %403 : vector<8x8x128xf32>
    %cst_80 = arith.constant dense<0.000000e+00> : vector<8x128xf32>
    %405 = vector.multi_reduction <add>, %404, %cst_80 [0] : vector<8x8x128xf32> to vector<8x128xf32>
    %406 = vector.shape_cast %405 : vector<8x128xf32> to vector<1x8x128xf32>
    %407 = math.log %406 : vector<1x8x128xf32>
    %408 = arith.addf %401, %407 : vector<1x8x128xf32>
    %409 = vector.broadcast %408 : vector<1x8x128xf32> to vector<8x8x128xf32>
    %410 = arith.subf %399, %409 : vector<8x8x128xf32>
    %c18_i32 = arith.constant 18 : i32
    %cst_81 = arith.constant dense<0xFF800000> : vector<8x128xf32>
    %411 = vector.multi_reduction <maximumf>, %410, %cst_81 [1] : vector<8x8x128xf32> to vector<8x128xf32>
    %412 = vector.shape_cast %411 : vector<8x128xf32> to vector<8x1x128xf32>
    %413 = vector.broadcast %412 : vector<8x1x128xf32> to vector<8x8x128xf32>
    %414 = arith.subf %410, %413 : vector<8x8x128xf32>
    %415 = math.exp %414 : vector<8x8x128xf32>
    %cst_82 = arith.constant dense<0.000000e+00> : vector<8x128xf32>
    %416 = vector.multi_reduction <add>, %415, %cst_82 [1] : vector<8x8x128xf32> to vector<8x128xf32>
    %417 = vector.shape_cast %416 : vector<8x128xf32> to vector<8x1x128xf32>
    %418 = math.log %417 : vector<8x1x128xf32>
    %419 = arith.addf %412, %418 : vector<8x1x128xf32>
    %420 = vector.broadcast %419 : vector<8x1x128xf32> to vector<8x8x128xf32>
    %421 = arith.subf %410, %420 : vector<8x8x128xf32>
    %cst_83 = arith.constant dense<0xFF800000> : vector<8x128xf32>
    %422 = vector.multi_reduction <maximumf>, %421, %cst_83 [0] : vector<8x8x128xf32> to vector<8x128xf32>
    %423 = vector.shape_cast %422 : vector<8x128xf32> to vector<1x8x128xf32>
    %424 = vector.broadcast %423 : vector<1x8x128xf32> to vector<8x8x128xf32>
    %425 = arith.subf %421, %424 : vector<8x8x128xf32>
    %426 = math.exp %425 : vector<8x8x128xf32>
    %cst_84 = arith.constant dense<0.000000e+00> : vector<8x128xf32>
    %427 = vector.multi_reduction <add>, %426, %cst_84 [0] : vector<8x8x128xf32> to vector<8x128xf32>
    %428 = vector.shape_cast %427 : vector<8x128xf32> to vector<1x8x128xf32>
    %429 = math.log %428 : vector<1x8x128xf32>
    %430 = arith.addf %423, %429 : vector<1x8x128xf32>
    %431 = vector.broadcast %430 : vector<1x8x128xf32> to vector<8x8x128xf32>
    %432 = arith.subf %421, %431 : vector<8x8x128xf32>
    %c19_i32 = arith.constant 19 : i32
    %cst_85 = arith.constant dense<0xFF800000> : vector<8x128xf32>
    %433 = vector.multi_reduction <maximumf>, %432, %cst_85 [1] : vector<8x8x128xf32> to vector<8x128xf32>
    %434 = vector.shape_cast %433 : vector<8x128xf32> to vector<8x1x128xf32>
    %435 = vector.broadcast %434 : vector<8x1x128xf32> to vector<8x8x128xf32>
    %436 = arith.subf %432, %435 : vector<8x8x128xf32>
    %437 = math.exp %436 : vector<8x8x128xf32>
    %cst_86 = arith.constant dense<0.000000e+00> : vector<8x128xf32>
    %438 = vector.multi_reduction <add>, %437, %cst_86 [1] : vector<8x8x128xf32> to vector<8x128xf32>
    %439 = vector.shape_cast %438 : vector<8x128xf32> to vector<8x1x128xf32>
    %440 = math.log %439 : vector<8x1x128xf32>
    %441 = arith.addf %434, %440 : vector<8x1x128xf32>
    %442 = vector.broadcast %441 : vector<8x1x128xf32> to vector<8x8x128xf32>
    %443 = arith.subf %432, %442 : vector<8x8x128xf32>
    %cst_87 = arith.constant dense<0xFF800000> : vector<8x128xf32>
    %444 = vector.multi_reduction <maximumf>, %443, %cst_87 [0] : vector<8x8x128xf32> to vector<8x128xf32>
    %445 = vector.shape_cast %444 : vector<8x128xf32> to vector<1x8x128xf32>
    %446 = vector.broadcast %445 : vector<1x8x128xf32> to vector<8x8x128xf32>
    %447 = arith.subf %443, %446 : vector<8x8x128xf32>
    %448 = math.exp %447 : vector<8x8x128xf32>
    %cst_88 = arith.constant dense<0.000000e+00> : vector<8x128xf32>
    %449 = vector.multi_reduction <add>, %448, %cst_88 [0] : vector<8x8x128xf32> to vector<8x128xf32>
    %450 = vector.shape_cast %449 : vector<8x128xf32> to vector<1x8x128xf32>
    %451 = math.log %450 : vector<1x8x128xf32>
    %452 = arith.addf %445, %451 : vector<1x8x128xf32>
    %453 = vector.broadcast %452 : vector<1x8x128xf32> to vector<8x8x128xf32>
    %454 = arith.subf %443, %453 : vector<8x8x128xf32>
    %455 = math.exp %454 : vector<8x8x128xf32>
    %c0_89 = arith.constant 0 : index
    %c0_90 = arith.constant 0 : index
    %c0_91 = arith.constant 0 : index
    %456 = vector.load %arg3[%c0_89, %c0_90, %c0_91] : memref<8x8x128xf32, #tpu.memory_space<vmem>>, vector<8x8x128xf32>
    tpu.vector_store %arg3[%c0_89, %c0_90, %c0_91], %455 {strides = array<i32>} : memref<8x8x128xf32, #tpu.memory_space<vmem>>, vector<8x8x128xf32>,
    return
  }
  func.func @transform_0(%arg0: i32) -> (i32, i32, i32) {
    %c0_i32 = arith.constant 0 : i32
    %c0_i32_0 = arith.constant 0 : i32
    %c0_i32_1 = arith.constant 0 : i32
    return %c0_i32, %c0_i32_0, %arg0 : i32, i32, i32
  }
  func.func @transform_1(%arg0: i32) -> (i32, i32, i32) {
    %c0_i32 = arith.constant 0 : i32
    %c0_i32_0 = arith.constant 0 : i32
    %c0_i32_1 = arith.constant 0 : i32
    return %c0_i32, %c0_i32_0, %arg0 : i32, i32, i32
  }
  func.func @transform_2(%arg0: i32) -> (i32, i32, i32) {
    %c0_i32 = arith.constant 0 : i32
    %c0_i32_0 = arith.constant 0 : i32
    %c0_i32_1 = arith.constant 0 : i32
    return %c0_i32, %c0_i32_0, %arg0 : i32, i32, i32
  }
}

</mosaic_0001>

<llo_original>
// kernel: tpu_custom_call.1
$region0: #{tpu_custom_call.1}
  #allocation0 [shape = 'u32[]', space=smem, size = 0x4, offset = 0x4, fixed_abs, tag = 'smem constant byte address 0x4 - core index']
  #allocation1 [shape = 'u32[144,128]{1,0:T(1,128)}', space=vmem, size = 0x12000, scoped, tag = 'internal scratch']
  %s0 = inlined_call_operand.hbm [shape: f32[8,8,128], index: 0, kind: input, shape index: {}]
  %s1 = inlined_call_operand.hbm [shape: f32[8,8,128], index: 1, kind: input, shape index: {}]
  %s2 = inlined_call_operand.hbm [shape: f32[8,8,128], index: 2, kind: output, shape index: {}]
  %s3 = sld [smem:[#allocation0]]
  $region26: #{tpu_custom_call.1} parent=0
    _
  %s5 = ssub.s32 1, %s3
  %s6 = scalar_select 0, %s5, %s3
  $region1: #{tpu_custom_call.1} parent=0
    #allocation2 [shape = 'u8[32768]{0}', space=vmem, size = 0x8000, scoped, tag = 'input window, operand 0, single buffered']
    #allocation3 [shape = 's32[1]{0}', space=sflag, size = 0x4, scoped, tag = 'scoped memory for tpu_custom_call.1']
    #allocation4 [shape = 's32[1]{0}', space=sflag, size = 0x4, scoped, tag = 'scoped memory for tpu_custom_call.1']
    #allocation5 [shape = 'u8[32768]{0}', space=vmem, size = 0x8000, scoped, tag = 'input window, operand 1, single buffered']
    #allocation6 [shape = 's32[1]{0}', space=sflag, size = 0x4, scoped, tag = 'scoped memory for tpu_custom_call.1']
    #allocation7 [shape = 'u8[32768]{0}', space=vmem, size = 0x8000, scoped, tag = 'output window, operand 0, single buffered']
    %7 = vsyncpa [#allocation3], 0
    %8 = vsyncpa [#allocation6], 0
    %9 = vsyncpa [#allocation4], 0
    // Predicated region
    $region2: #{tpu_custom_call.1} parent=1 // pred_check
      _
    $region3: #{tpu_custom_call.1} parent=1 // pred_check_branch
      %11 = sbr.rel (0) target = $region5
    $region4: #{tpu_custom_call.1} parent=1 // pred_region
      %s13 = ssub.s32 1024, 1024
      %14 = vsyncadd [#allocation3], %s13
      %s15 = sshll.u32 [#allocation2], 4
      %s16 = int_to_ptr.vmem [resolvable:$true] %s15
      %21 = dma.hbm_to_vmem [thread:$0]  %s0, 1024, %s16, [#allocation3], 128, 128, 8
    $region5: #{tpu_custom_call.1} parent=1 // pred_fallthru
      _
    // Predicated region
    $region6: #{tpu_custom_call.1} parent=1 // pred_check
      _
    $region7: #{tpu_custom_call.1} parent=1 // pred_check_branch
      %23 = sbr.rel (0) target = $region9
    $region8: #{tpu_custom_call.1} parent=1 // pred_region
      %s25 = ssub.s32 1024, 1024
      %26 = vsyncadd [#allocation6], %s25
      %s27 = sshll.u32 [#allocation5], 4
      %s28 = int_to_ptr.vmem [resolvable:$true] %s27
      %33 = dma.hbm_to_vmem [thread:$0]  %s1, 1024, %s28, [#allocation6], 128, 128, 8
    $region9: #{tpu_custom_call.1} parent=1 // pred_fallthru
      _
    // Predicated region
    $region10: #{tpu_custom_call.1} parent=1 // pred_check
      _
    $region11: #{tpu_custom_call.1} parent=1 // pred_check_branch
      %35 = sbr.rel (0) target = $region13
    $region12: #{tpu_custom_call.1} parent=1 // pred_region
      %36 = dma.done [#allocation3], 1024
    $region13: #{tpu_custom_call.1} parent=1 // pred_fallthru
      _
    // Predicated region
    $region14: #{tpu_custom_call.1} parent=1 // pred_check
      _
    $region15: #{tpu_custom_call.1} parent=1 // pred_check_branch
      %38 = sbr.rel (0) target = $region17
    $region16: #{tpu_custom_call.1} parent=1 // pred_region
      %39 = dma.done [#allocation6], 1024
    $region17: #{tpu_custom_call.1} parent=1 // pred_fallthru
      _
    %v40 = vld [vmem:[#allocation2] sm:$0xff]
    %v41 = vld [vmem:[#allocation2 + $0x8] sm:$0xff]
    %v42 = vld [vmem:[#allocation2 + $0x10] sm:$0xff]
    %v43 = vld [vmem:[#allocation2 + $0x18] sm:$0xff]
    %v44 = vld [vmem:[#allocation2 + $0x20] sm:$0xff]
    %v45 = vld [vmem:[#allocation2 + $0x28] sm:$0xff]
    %v46 = vld [vmem:[#allocation2 + $0x30] sm:$0xff]
    %v47 = vld [vmem:[#allocation2 + $0x38] sm:$0xff]
    %v48 = vld [vmem:[#allocation5] sm:$0xff]
    %v49 = vld [vmem:[#allocation5 + $0x8] sm:$0xff]
    %v50 = vld [vmem:[#allocation5 + $0x10] sm:$0xff]
    %v51 = vld [vmem:[#allocation5 + $0x18] sm:$0xff]
    %v52 = vld [vmem:[#allocation5 + $0x20] sm:$0xff]
    %v53 = vld [vmem:[#allocation5 + $0x28] sm:$0xff]
    %v54 = vld [vmem:[#allocation5 + $0x30] sm:$0xff]
    %v55 = vld [vmem:[#allocation5 + $0x38] sm:$0xff]
    %v56 = vadd.f32 %v40, 1e-20
    %v57 = vadd.f32 %v41, 1e-20
    %v58 = vadd.f32 %v42, 1e-20
    %v59 = vadd.f32 %v43, 1e-20
    %v60 = vadd.f32 %v44, 1e-20
    %v61 = vadd.f32 %v45, 1e-20
    %v62 = vadd.f32 %v46, 1e-20
    %v63 = vadd.f32 %v47, 1e-20
    %v64 = vlog2.pop %v56
    %v65 = vmul.f32 %v64, 0.6931472
    %v66 = vlog2.pop %v57
    %v67 = vmul.f32 %v66, 0.6931472
    %v68 = vlog2.pop %v58
    %v69 = vmul.f32 %v68, 0.6931472
    %v70 = vlog2.pop %v59
    %v71 = vmul.f32 %v70, 0.6931472
    %v72 = vlog2.pop %v60
    %v73 = vmul.f32 %v72, 0.6931472
    %v74 = vlog2.pop %v61
    %v75 = vmul.f32 %v74, 0.6931472
    %v76 = vlog2.pop %v62
    %v77 = vmul.f32 %v76, 0.6931472
    %v78 = vlog2.pop %v63
    %v79 = vmul.f32 %v78, 0.6931472
    %v80 = vsub.f32 1e-20, %v65
    %v81 = vsub.f32 1e-20, %v67
    %v82 = vsub.f32 1e-20, %v69
    %v83 = vsub.f32 1e-20, %v71
    %v84 = vsub.f32 1e-20, %v73
    %v85 = vsub.f32 1e-20, %v75
    %v86 = vsub.f32 1e-20, %v77
    %v87 = vsub.f32 1e-20, %v79
    %v88 = vlog2.pop %v80
    %v89 = vmul.f32 %v88, 0.6931472
    %v90 = vlog2.pop %v81
    %v91 = vmul.f32 %v90, 0.6931472
    %v92 = vlog2.pop %v82
    %v93 = vmul.f32 %v92, 0.6931472
    %v94 = vlog2.pop %v83
    %v95 = vmul.f32 %v94, 0.6931472
    %v96 = vlog2.pop %v84
    %v97 = vmul.f32 %v96, 0.6931472
    %v98 = vlog2.pop %v85
    %v99 = vmul.f32 %v98, 0.6931472
    %v100 = vlog2.pop %v86
    %v101 = vmul.f32 %v100, 0.6931472
    %v102 = vlog2.pop %v87
    %v103 = vmul.f32 %v102, 0.6931472
    %v104 = vsub.f32 0.0, %v89
    %v105 = vsub.f32 0.0, %v91
    %v106 = vsub.f32 0.0, %v93
    %v107 = vsub.f32 0.0, %v95
    %v108 = vsub.f32 0.0, %v97
    %v109 = vsub.f32 0.0, %v99
    %v110 = vsub.f32 0.0, %v101
    %v111 = vsub.f32 0.0, %v103
    %v112 = vadd.f32 %v48, %v104
    %v113 = vadd.f32 %v49, %v105
    %v114 = vadd.f32 %v50, %v106
    %v115 = vadd.f32 %v51, %v107
    %v116 = vadd.f32 %v52, %v108
    %v117 = vadd.f32 %v53, %v109
    %v118 = vadd.f32 %v54, %v110
    %v119 = vadd.f32 %v55, %v111
    %v120 = vmul.f32 %v112, 10.0
    %v121 = vmul.f32 %v113, 10.0
    %v122 = vmul.f32 %v114, 10.0
    %v123 = vmul.f32 %v115, 10.0
    %v124 = vmul.f32 %v116, 10.0
    %v125 = vmul.f32 %v117, 10.0
    %v126 = vmul.f32 %v118, 10.0
    %v127 = vmul.f32 %v119, 10.0
    %v128 = vrot.slane %v120, 4
    %v129 = vmax.f32 %v120, %v128
    %v130 = vrot.slane %v129, 2
    %v131 = vmax.f32 %v129, %v130
    %v132 = vrot.slane %v131, 1
    %v133 = vmax.f32 %v131, %v132
    %v134 = vrot.slane %v121, 4
    %v135 = vmax.f32 %v121, %v134
    %v136 = vrot.slane %v135, 2
    %v137 = vmax.f32 %v135, %v136
    %v138 = vrot.slane %v137, 1
    %v139 = vmax.f32 %v137, %v138
    %v140 = vrot.slane %v122, 4
    %v141 = vmax.f32 %v122, %v140
    %v142 = vrot.slane %v141, 2
    %v143 = vmax.f32 %v141, %v142
    %v144 = vrot.slane %v143, 1
    %v145 = vmax.f32 %v143, %v144
    %v146 = vrot.slane %v123, 4
    %v147 = vmax.f32 %v123, %v146
    %v148 = vrot.slane %v147, 2
    %v149 = vmax.f32 %v147, %v148
    %v150 = vrot.slane %v149, 1
    %v151 = vmax.f32 %v149, %v150
    %v152 = vrot.slane %v124, 4
    %v153 = vmax.f32 %v124, %v152
    %v154 = vrot.slane %v153, 2
    %v155 = vmax.f32 %v153, %v154
    %v156 = vrot.slane %v155, 1
    %v157 = vmax.f32 %v155, %v156
    %v158 = vrot.slane %v125, 4
    %v159 = vmax.f32 %v125, %v158
    %v160 = vrot.slane %v159, 2
    %v161 = vmax.f32 %v159, %v160
    %v162 = vrot.slane %v161, 1
    %v163 = vmax.f32 %v161, %v162
    %v164 = vrot.slane %v126, 4
    %v165 = vmax.f32 %v126, %v164
    %v166 = vrot.slane %v165, 2
    %v167 = vmax.f32 %v165, %v166
    %v168 = vrot.slane %v167, 1
    %v169 = vmax.f32 %v167, %v168
    %v170 = vrot.slane %v127, 4
    %v171 = vmax.f32 %v127, %v170
    %v172 = vrot.slane %v171, 2
    %v173 = vmax.f32 %v171, %v172
    %v174 = vrot.slane %v173, 1
    %v175 = vmax.f32 %v173, %v174
    %v176 = vsub.f32 %v120, %v133
    %v177 = vsub.f32 %v121, %v139
    %v178 = vsub.f32 %v122, %v145
    %v179 = vsub.f32 %v123, %v151
    %v180 = vsub.f32 %v124, %v157
    %v181 = vsub.f32 %v125, %v163
    %v182 = vsub.f32 %v126, %v169
    %v183 = vsub.f32 %v127, %v175
    %v184 = vmul.f32 %v176, 1.442695
    %v185 = vpow.pop %v184
    %v186 = vmul.f32 %v177, 1.442695
    %v187 = vpow.pop %v186
    %v188 = vmul.f32 %v178, 1.442695
    %v189 = vpow.pop %v188
    %v190 = vmul.f32 %v179, 1.442695
    %v191 = vpow.pop %v190
    %v192 = vmul.f32 %v180, 1.442695
    %v193 = vpow.pop %v192
    %v194 = vmul.f32 %v181, 1.442695
    %v195 = vpow.pop %v194
    %v196 = vmul.f32 %v182, 1.442695
    %v197 = vpow.pop %v196
    %v198 = vmul.f32 %v183, 1.442695
    %v199 = vpow.pop %v198
    %v200 = vrot.slane %v185, 4
    %v201 = vadd.f32 %v185, %v200
    %v202 = vrot.slane %v201, 2
    %v203 = vadd.f32 %v201, %v202
    %v204 = vrot.slane %v203, 1
    %v205 = vadd.f32 %v203, %v204
    %v206 = vrot.slane %v187, 4
    %v207 = vadd.f32 %v187, %v206
    %v208 = vrot.slane %v207, 2
    %v209 = vadd.f32 %v207, %v208
    %v210 = vrot.slane %v209, 1
    %v211 = vadd.f32 %v209, %v210
    %v212 = vrot.slane %v189, 4
    %v213 = vadd.f32 %v189, %v212
    %v214 = vrot.slane %v213, 2
    %v215 = vadd.f32 %v213, %v214
    %v216 = vrot.slane %v215, 1
    %v217 = vadd.f32 %v215, %v216
    %v218 = vrot.slane %v191, 4
    %v219 = vadd.f32 %v191, %v218
    %v220 = vrot.slane %v219, 2
    %v221 = vadd.f32 %v219, %v220
    %v222 = vrot.slane %v221, 1
    %v223 = vadd.f32 %v221, %v222
    %v224 = vrot.slane %v193, 4
    %v225 = vadd.f32 %v193, %v224
    %v226 = vrot.slane %v225, 2
    %v227 = vadd.f32 %v225, %v226
    %v228 = vrot.slane %v227, 1
    %v229 = vadd.f32 %v227, %v228
    %v230 = vrot.slane %v195, 4
    %v231 = vadd.f32 %v195, %v230
    %v232 = vrot.slane %v231, 2
    %v233 = vadd.f32 %v231, %v232
    %v234 = vrot.slane %v233, 1
    %v235 = vadd.f32 %v233, %v234
    %v236 = vrot.slane %v197, 4
    %v237 = vadd.f32 %v197, %v236
    %v238 = vrot.slane %v237, 2
    %v239 = vadd.f32 %v237, %v238
    %v240 = vrot.slane %v239, 1
    %v241 = vadd.f32 %v239, %v240
    %v242 = vrot.slane %v199, 4
    %v243 = vadd.f32 %v199, %v242
    %v244 = vrot.slane %v243, 2
    %v245 = vadd.f32 %v243, %v244
    %v246 = vrot.slane %v245, 1
    %v247 = vadd.f32 %v245, %v246
    %v248 = vlog2.pop %v205
    %v249 = vmul.f32 %v248, 0.6931472
    %v250 = vlog2.pop %v211
    %v251 = vmul.f32 %v250, 0.6931472
    %v252 = vlog2.pop %v217
    %v253 = vmul.f32 %v252, 0.6931472
    %v254 = vlog2.pop %v223
    %v255 = vmul.f32 %v254, 0.6931472
    %v256 = vlog2.pop %v229
    %v257 = vmul.f32 %v256, 0.6931472
    %v258 = vlog2.pop %v235
    %v259 = vmul.f32 %v258, 0.6931472
    %v260 = vlog2.pop %v241
    %v261 = vmul.f32 %v260, 0.6931472
    %v262 = vlog2.pop %v247
    %v263 = vmul.f32 %v262, 0.6931472
    %v264 = vadd.f32 %v133, %v249
    %v265 = vadd.f32 %v139, %v251
    %v266 = vadd.f32 %v145, %v253
    %v267 = vadd.f32 %v151, %v255
    %v268 = vadd.f32 %v157, %v257
    %v269 = vadd.f32 %v163, %v259
    %v270 = vadd.f32 %v169, %v261
    %v271 = vadd.f32 %v175, %v263
    %v272 = vsub.f32 %v120, %v264
    %v273 = vsub.f32 %v121, %v265
    %v274 = vsub.f32 %v122, %v266
    %v275 = vsub.f32 %v123, %v267
    %v276 = vsub.f32 %v124, %v268
    %v277 = vsub.f32 %v125, %v269
    %v278 = vsub.f32 %v126, %v270
    %v279 = vsub.f32 %v127, %v271
    %v280 = vmax.f32 %v272, %v276
    %v281 = vmax.f32 %v273, %v277
    %v282 = vmax.f32 %v274, %v278
    %v283 = vmax.f32 %v275, %v279
    %v284 = vmax.f32 %v280, %v281
    %v285 = vmax.f32 %v282, %v283
    %v286 = vmax.f32 %v284, %v285
    %v287 = vsub.f32 %v272, %v286
    %v288 = vsub.f32 %v273, %v286
    %v289 = vsub.f32 %v274, %v286
    %v290 = vsub.f32 %v275, %v286
    %v291 = vsub.f32 %v276, %v286
    %v292 = vsub.f32 %v277, %v286
    %v293 = vsub.f32 %v278, %v286
    %v294 = vsub.f32 %v279, %v286
    %v295 = vmul.f32 %v287, 1.442695
    %v296 = vpow.pop %v295
    %v297 = vmul.f32 %v288, 1.442695
    %v298 = vpow.pop %v297
    %v299 = vmul.f32 %v289, 1.442695
    %v300 = vpow.pop %v299
    %v301 = vmul.f32 %v290, 1.442695
    %v302 = vpow.pop %v301
    %v303 = vmul.f32 %v291, 1.442695
    %v304 = vpow.pop %v303
    %v305 = vmul.f32 %v292, 1.442695
    %v306 = vpow.pop %v305
    %v307 = vmul.f32 %v293, 1.442695
    %v308 = vpow.pop %v307
    %v309 = vmul.f32 %v294, 1.442695
    %v310 = vpow.pop %v309
    %v311 = vadd.f32 %v296, %v298
    %v312 = vadd.f32 %v311, %v300
    %v313 = vadd.f32 %v312, %v302
    %v314 = vadd.f32 %v313, %v304
    %v315 = vadd.f32 %v314, %v306
    %v316 = vadd.f32 %v315, %v308
    %v317 = vadd.f32 %v316, %v310
    %v318 = vlog2.pop %v317
    %v319 = vmul.f32 %v318, 0.6931472
    %v320 = vadd.f32 %v286, %v319
    %v321 = vsub.f32 %v272, %v320
    %v322 = vsub.f32 %v273, %v320
    %v323 = vsub.f32 %v274, %v320
    %v324 = vsub.f32 %v275, %v320
    %v325 = vsub.f32 %v276, %v320
    %v326 = vsub.f32 %v277, %v320
    %v327 = vsub.f32 %v278, %v320
    %v328 = vsub.f32 %v279, %v320
    %v329 = vrot.slane %v321, 4
    %v330 = vmax.f32 %v321, %v329
    %v331 = vrot.slane %v330, 2
    %v332 = vmax.f32 %v330, %v331
    %v333 = vrot.slane %v332, 1
    %v334 = vmax.f32 %v332, %v333
    %v335 = vrot.slane %v322, 4
    %v336 = vmax.f32 %v322, %v335
    %v337 = vrot.slane %v336, 2
    %v338 = vmax.f32 %v336, %v337
    %v339 = vrot.slane %v338, 1
    %v340 = vmax.f32 %v338, %v339
    %v341 = vrot.slane %v323, 4
    %v342 = vmax.f32 %v323, %v341
    %v343 = vrot.slane %v342, 2
    %v344 = vmax.f32 %v342, %v343
    %v345 = vrot.slane %v344, 1
    %v346 = vmax.f32 %v344, %v345
    %v347 = vrot.slane %v324, 4
    %v348 = vmax.f32 %v324, %v347
    %v349 = vrot.slane %v348, 2
    %v350 = vmax.f32 %v348, %v349
    %v351 = vrot.slane %v350, 1
    %v352 = vmax.f32 %v350, %v351
    %v353 = vrot.slane %v325, 4
    %v354 = vmax.f32 %v325, %v353
    %v355 = vrot.slane %v354, 2
    %v356 = vmax.f32 %v354, %v355
    %v357 = vrot.slane %v356, 1
    %v358 = vmax.f32 %v356, %v357
    %v359 = vrot.slane %v326, 4
    %v360 = vmax.f32 %v326, %v359
    %v361 = vrot.slane %v360, 2
    %v362 = vmax.f32 %v360, %v361
    %v363 = vrot.slane %v362, 1
    %v364 = vmax.f32 %v362, %v363
    %v365 = vrot.slane %v327, 4
    %v366 = vmax.f32 %v327, %v365
    %v367 = vrot.slane %v366, 2
    %v368 = vmax.f32 %v366, %v367
    %v369 = vrot.slane %v368, 1
    %v370 = vmax.f32 %v368, %v369
    %v371 = vrot.slane %v328, 4
    %v372 = vmax.f32 %v328, %v371
    %v373 = vrot.slane %v372, 2
    %v374 = vmax.f32 %v372, %v373
    %v375 = vrot.slane %v374, 1
    %v376 = vmax.f32 %v374, %v375
    %v377 = vsub.f32 %v321, %v334
    %v378 = vsub.f32 %v322, %v340
    %v379 = vsub.f32 %v323, %v346
    %v380 = vsub.f32 %v324, %v352
    %v381 = vsub.f32 %v325, %v358
    %v382 = vsub.f32 %v326, %v364
    %v383 = vsub.f32 %v327, %v370
    %v384 = vsub.f32 %v328, %v376
    %v385 = vmul.f32 %v377, 1.442695
    %v386 = vpow.pop %v385
    %v387 = vmul.f32 %v378, 1.442695
    %v388 = vpow.pop %v387
    %v389 = vmul.f32 %v379, 1.442695
    %v390 = vpow.pop %v389
    %v391 = vmul.f32 %v380, 1.442695
    %v392 = vpow.pop %v391
    %v393 = vmul.f32 %v381, 1.442695
    %v394 = vpow.pop %v393
    %v395 = vmul.f32 %v382, 1.442695
    %v396 = vpow.pop %v395
    %v397 = vmul.f32 %v383, 1.442695
    %v398 = vpow.pop %v397
    %v399 = vmul.f32 %v384, 1.442695
    %v400 = vpow.pop %v399
    %v401 = vrot.slane %v386, 4
    %v402 = vadd.f32 %v386, %v401
    %v403 = vrot.slane %v402, 2
    %v404 = vadd.f32 %v402, %v403
    %v405 = vrot.slane %v404, 1
    %v406 = vadd.f32 %v404, %v405
    %v407 = vrot.slane %v388, 4
    %v408 = vadd.f32 %v388, %v407
    %v409 = vrot.slane %v408, 2
    %v410 = vadd.f32 %v408, %v409
    %v411 = vrot.slane %v410, 1
    %v412 = vadd.f32 %v410, %v411
    %v413 = vrot.slane %v390, 4
    %v414 = vadd.f32 %v390, %v413
    %v415 = vrot.slane %v414, 2
    %v416 = vadd.f32 %v414, %v415
    %v417 = vrot.slane %v416, 1
    %v418 = vadd.f32 %v416, %v417
    %v419 = vrot.slane %v392, 4
    %v420 = vadd.f32 %v392, %v419
    %v421 = vrot.slane %v420, 2
    %v422 = vadd.f32 %v420, %v421
    %v423 = vrot.slane %v422, 1
    %v424 = vadd.f32 %v422, %v423
    %v425 = vrot.slane %v394, 4
    %v426 = vadd.f32 %v394, %v425
    %v427 = vrot.slane %v426, 2
    %v428 = vadd.f32 %v426, %v427
    %v429 = vrot.slane %v428, 1
    %v430 = vadd.f32 %v428, %v429
    %v431 = vrot.slane %v396, 4
    %v432 = vadd.f32 %v396, %v431
    %v433 = vrot.slane %v432, 2
    %v434 = vadd.f32 %v432, %v433
    %v435 = vrot.slane %v434, 1
    %v436 = vadd.f32 %v434, %v435
    %v437 = vrot.slane %v398, 4
    %v438 = vadd.f32 %v398, %v437
    %v439 = vrot.slane %v438, 2
    %v440 = vadd.f32 %v438, %v439
    %v441 = vrot.slane %v440, 1
    %v442 = vadd.f32 %v440, %v441
    %v443 = vrot.slane %v400, 4
    %v444 = vadd.f32 %v400, %v443
    %v445 = vrot.slane %v444, 2
    %v446 = vadd.f32 %v444, %v445
    %v447 = vrot.slane %v446, 1
    %v448 = vadd.f32 %v446, %v447
    %v449 = vlog2.pop %v406
    %v450 = vmul.f32 %v449, 0.6931472
    %v451 = vlog2.pop %v412
    %v452 = vmul.f32 %v451, 0.6931472
    %v453 = vlog2.pop %v418
    %v454 = vmul.f32 %v453, 0.6931472
    %v455 = vlog2.pop %v424
    %v456 = vmul.f32 %v455, 0.6931472
    %v457 = vlog2.pop %v430
    %v458 = vmul.f32 %v457, 0.6931472
    %v459 = vlog2.pop %v436
    %v460 = vmul.f32 %v459, 0.6931472
    %v461 = vlog2.pop %v442
    %v462 = vmul.f32 %v461, 0.6931472
    %v463 = vlog2.pop %v448
    %v464 = vmul.f32 %v463, 0.6931472
    %v465 = vadd.f32 %v334, %v450
    %v466 = vadd.f32 %v340, %v452
    %v467 = vadd.f32 %v346, %v454
    %v468 = vadd.f32 %v352, %v456
    %v469 = vadd.f32 %v358, %v458
    %v470 = vadd.f32 %v364, %v460
    %v471 = vadd.f32 %v370, %v462
    %v472 = vadd.f32 %v376, %v464
    %v473 = vsub.f32 %v321, %v465
    %v474 = vsub.f32 %v322, %v466
    %v475 = vsub.f32 %v323, %v467
    %v476 = vsub.f32 %v324, %v468
    %v477 = vsub.f32 %v325, %v469
    %v478 = vsub.f32 %v326, %v470
    %v479 = vsub.f32 %v327, %v471
    %v480 = vsub.f32 %v328, %v472
    %v481 = vmax.f32 %v473, %v477
    %v482 = vmax.f32 %v474, %v478
    %v483 = vmax.f32 %v475, %v479
    %v484 = vmax.f32 %v476, %v480
    %v485 = vmax.f32 %v481, %v482
    %v486 = vmax.f32 %v483, %v484
    %v487 = vmax.f32 %v485, %v486
    %v488 = vsub.f32 %v473, %v487
    %v489 = vsub.f32 %v474, %v487
    %v490 = vsub.f32 %v475, %v487
    %v491 = vsub.f32 %v476, %v487
    %v492 = vsub.f32 %v477, %v487
    %v493 = vsub.f32 %v478, %v487
    %v494 = vsub.f32 %v479, %v487
    %v495 = vsub.f32 %v480, %v487
    %v496 = vmul.f32 %v488, 1.442695
    %v497 = vpow.pop %v496
    %v498 = vmul.f32 %v489, 1.442695
    %v499 = vpow.pop %v498
    %v500 = vmul.f32 %v490, 1.442695
    %v501 = vpow.pop %v500
    %v502 = vmul.f32 %v491, 1.442695
    %v503 = vpow.pop %v502
    %v504 = vmul.f32 %v492, 1.442695
    %v505 = vpow.pop %v504
    %v506 = vmul.f32 %v493, 1.442695
    %v507 = vpow.pop %v506
    %v508 = vmul.f32 %v494, 1.442695
    %v509 = vpow.pop %v508
    %v510 = vmul.f32 %v495, 1.442695
    %v511 = vpow.pop %v510
    %v512 = vadd.f32 %v497, %v499
    %v513 = vadd.f32 %v512, %v501
    %v514 = vadd.f32 %v513, %v503
    %v515 = vadd.f32 %v514, %v505
    %v516 = vadd.f32 %v515, %v507
    %v517 = vadd.f32 %v516, %v509
    %v518 = vadd.f32 %v517, %v511
    %v519 = vlog2.pop %v518
    %v520 = vmul.f32 %v519, 0.6931472
    %v521 = vadd.f32 %v487, %v520
    %v522 = vsub.f32 %v473, %v521
    %v523 = vsub.f32 %v474, %v521
    %v524 = vsub.f32 %v475, %v521
    %v525 = vsub.f32 %v476, %v521
    %v526 = vsub.f32 %v477, %v521
    %v527 = vsub.f32 %v478, %v521
    %v528 = vsub.f32 %v479, %v521
    %v529 = vsub.f32 %v480, %v521
    %v530 = vrot.slane %v522, 4
    %v531 = vmax.f32 %v522, %v530
    %v532 = vrot.slane %v531, 2
    %v533 = vmax.f32 %v531, %v532
    %v534 = vrot.slane %v533, 1
    %v535 = vmax.f32 %v533, %v534
    %v536 = vrot.slane %v523, 4
    %v537 = vmax.f32 %v523, %v536
    %v538 = vrot.slane %v537, 2
    %v539 = vmax.f32 %v537, %v538
    %v540 = vrot.slane %v539, 1
    %v541 = vmax.f32 %v539, %v540
    %v542 = vrot.slane %v524, 4
    %v543 = vmax.f32 %v524, %v542
    %v544 = vrot.slane %v543, 2
    %v545 = vmax.f32 %v543, %v544
    %v546 = vrot.slane %v545, 1
    %v547 = vmax.f32 %v545, %v546
    %v548 = vrot.slane %v525, 4
    %v549 = vmax.f32 %v525, %v548
    %v550 = vrot.slane %v549, 2
    %v551 = vmax.f32 %v549, %v550
    %v552 = vrot.slane %v551, 1
    %v553 = vmax.f32 %v551, %v552
    %v554 = vrot.slane %v526, 4
    %v555 = vmax.f32 %v526, %v554
    %v556 = vrot.slane %v555, 2
    %v557 = vmax.f32 %v555, %v556
    %v558 = vrot.slane %v557, 1
    %v559 = vmax.f32 %v557, %v558
    %v560 = vrot.slane %v527, 4
    %v561 = vmax.f32 %v527, %v560
    %v562 = vrot.slane %v561, 2
    %v563 = vmax.f32 %v561, %v562
    %v564 = vrot.slane %v563, 1
    %v565 = vmax.f32 %v563, %v564
    %v566 = vrot.slane %v528, 4
    %v567 = vmax.f32 %v528, %v566
    %v568 = vrot.slane %v567, 2
    %v569 = vmax.f32 %v567, %v568
    %v570 = vrot.slane %v569, 1
    %v571 = vmax.f32 %v569, %v570
    %v572 = vrot.slane %v529, 4
    %v573 = vmax.f32 %v529, %v572
    %v574 = vrot.slane %v573, 2
    %v575 = vmax.f32 %v573, %v574
    %v576 = vrot.slane %v575, 1
    %v577 = vmax.f32 %v575, %v576
    %v578 = vsub.f32 %v522, %v535
    %v579 = vsub.f32 %v523, %v541
    %v580 = vsub.f32 %v524, %v547
    %v581 = vsub.f32 %v525, %v553
    %v582 = vsub.f32 %v526, %v559
    %v583 = vsub.f32 %v527, %v565
    %v584 = vsub.f32 %v528, %v571
    %v585 = vsub.f32 %v529, %v577
    %v586 = vmul.f32 %v578, 1.442695
    %v587 = vpow.pop %v586
    %v588 = vmul.f32 %v579, 1.442695
    %v589 = vpow.pop %v588
    %v590 = vmul.f32 %v580, 1.442695
    %v591 = vpow.pop %v590
    %v592 = vmul.f32 %v581, 1.442695
    %v593 = vpow.pop %v592
    %v594 = vmul.f32 %v582, 1.442695
    %v595 = vpow.pop %v594
    %v596 = vmul.f32 %v583, 1.442695
    %v597 = vpow.pop %v596
    %v598 = vmul.f32 %v584, 1.442695
    %v599 = vpow.pop %v598
    %v600 = vmul.f32 %v585, 1.442695
    %v601 = vpow.pop %v600
    %v602 = vrot.slane %v587, 4
    %v603 = vadd.f32 %v587, %v602
    %v604 = vrot.slane %v603, 2
    %v605 = vadd.f32 %v603, %v604
    %v606 = vrot.slane %v605, 1
    %v607 = vadd.f32 %v605, %v606
    %v608 = vrot.slane %v589, 4
    %v609 = vadd.f32 %v589, %v608
    %v610 = vrot.slane %v609, 2
    %v611 = vadd.f32 %v609, %v610
    %v612 = vrot.slane %v611, 1
    %v613 = vadd.f32 %v611, %v612
    %v614 = vrot.slane %v591, 4
    %v615 = vadd.f32 %v591, %v614
    %v616 = vrot.slane %v615, 2
    %v617 = vadd.f32 %v615, %v616
    %v618 = vrot.slane %v617, 1
    %v619 = vadd.f32 %v617, %v618
    %v620 = vrot.slane %v593, 4
    %v621 = vadd.f32 %v593, %v620
    %v622 = vrot.slane %v621, 2
    %v623 = vadd.f32 %v621, %v622
    %v624 = vrot.slane %v623, 1
    %v625 = vadd.f32 %v623, %v624
    %v626 = vrot.slane %v595, 4
    %v627 = vadd.f32 %v595, %v626
    %v628 = vrot.slane %v627, 2
    %v629 = vadd.f32 %v627, %v628
    %v630 = vrot.slane %v629, 1
    %v631 = vadd.f32 %v629, %v630
    %v632 = vrot.slane %v597, 4
    %v633 = vadd.f32 %v597, %v632
    %v634 = vrot.slane %v633, 2
    %v635 = vadd.f32 %v633, %v634
    %v636 = vrot.slane %v635, 1
    %v637 = vadd.f32 %v635, %v636
    %v638 = vrot.slane %v599, 4
    %v639 = vadd.f32 %v599, %v638
    %v640 = vrot.slane %v639, 2
    %v641 = vadd.f32 %v639, %v640
    %v642 = vrot.slane %v641, 1
    %v643 = vadd.f32 %v641, %v642
    %v644 = vrot.slane %v601, 4
    %v645 = vadd.f32 %v601, %v644
    %v646 = vrot.slane %v645, 2
    %v647 = vadd.f32 %v645, %v646
    %v648 = vrot.slane %v647, 1
    %v649 = vadd.f32 %v647, %v648
    %v650 = vlog2.pop %v607
    %v651 = vmul.f32 %v650, 0.6931472
    %v652 = vlog2.pop %v613
    %v653 = vmul.f32 %v652, 0.6931472
    %v654 = vlog2.pop %v619
    %v655 = vmul.f32 %v654, 0.6931472
    %v656 = vlog2.pop %v625
    %v657 = vmul.f32 %v656, 0.6931472
    %v658 = vlog2.pop %v631
    %v659 = vmul.f32 %v658, 0.6931472
    %v660 = vlog2.pop %v637
    %v661 = vmul.f32 %v660, 0.6931472
    %v662 = vlog2.pop %v643
    %v663 = vmul.f32 %v662, 0.6931472
    %v664 = vlog2.pop %v649
    %v665 = vmul.f32 %v664, 0.6931472
    %v666 = vadd.f32 %v535, %v651
    %v667 = vadd.f32 %v541, %v653
    %v668 = vadd.f32 %v547, %v655
    %v669 = vadd.f32 %v553, %v657
    %v670 = vadd.f32 %v559, %v659
    %v671 = vadd.f32 %v565, %v661
    %v672 = vadd.f32 %v571, %v663
    %v673 = vadd.f32 %v577, %v665
    %v674 = vsub.f32 %v522, %v666
    %v675 = vsub.f32 %v523, %v667
    %v676 = vsub.f32 %v524, %v668
    %v677 = vsub.f32 %v525, %v669
    %v678 = vsub.f32 %v526, %v670
    %v679 = vsub.f32 %v527, %v671
    %v680 = vsub.f32 %v528, %v672
    %v681 = vsub.f32 %v529, %v673
    %v682 = vmax.f32 %v674, %v678
    %v683 = vmax.f32 %v675, %v679
    %v684 = vmax.f32 %v676, %v680
    %v685 = vmax.f32 %v677, %v681
    %v686 = vmax.f32 %v682, %v683
    %v687 = vmax.f32 %v684, %v685
    %v688 = vmax.f32 %v686, %v687
    %v689 = vsub.f32 %v674, %v688
    %v690 = vsub.f32 %v675, %v688
    %v691 = vsub.f32 %v676, %v688
    %v692 = vsub.f32 %v677, %v688
    %v693 = vsub.f32 %v678, %v688
    %v694 = vsub.f32 %v679, %v688
    %v695 = vsub.f32 %v680, %v688
    %v696 = vsub.f32 %v681, %v688
    %v697 = vmul.f32 %v689, 1.442695
    %v698 = vpow.pop %v697
    %v699 = vmul.f32 %v690, 1.442695
    %v700 = vpow.pop %v699
    %v701 = vmul.f32 %v691, 1.442695
    %v702 = vpow.pop %v701
    %v703 = vmul.f32 %v692, 1.442695
    %v704 = vpow.pop %v703
    %v705 = vmul.f32 %v693, 1.442695
    %v706 = vpow.pop %v705
    %v707 = vmul.f32 %v694, 1.442695
    %v708 = vpow.pop %v707
    %v709 = vmul.f32 %v695, 1.442695
    %v710 = vpow.pop %v709
    %v711 = vmul.f32 %v696, 1.442695
    %v712 = vpow.pop %v711
    %v713 = vadd.f32 %v698, %v700
    %v714 = vadd.f32 %v713, %v702
    %v715 = vadd.f32 %v714, %v704
    %v716 = vadd.f32 %v715, %v706
    %v717 = vadd.f32 %v716, %v708
    %v718 = vadd.f32 %v717, %v710
    %v719 = vadd.f32 %v718, %v712
    %v720 = vlog2.pop %v719
    %v721 = vmul.f32 %v720, 0.6931472
    %v722 = vadd.f32 %v688, %v721
    %v723 = vsub.f32 %v674, %v722
    %v724 = vsub.f32 %v675, %v722
    %v725 = vsub.f32 %v676, %v722
    %v726 = vsub.f32 %v677, %v722
    %v727 = vsub.f32 %v678, %v722
    %v728 = vsub.f32 %v679, %v722
    %v729 = vsub.f32 %v680, %v722
    %v730 = vsub.f32 %v681, %v722
    %v731 = vrot.slane %v723, 4
    %v732 = vmax.f32 %v723, %v731
    %v733 = vrot.slane %v732, 2
    %v734 = vmax.f32 %v732, %v733
    %v735 = vrot.slane %v734, 1
    %v736 = vmax.f32 %v734, %v735
    %v737 = vrot.slane %v724, 4
    %v738 = vmax.f32 %v724, %v737
    %v739 = vrot.slane %v738, 2
    %v740 = vmax.f32 %v738, %v739
    %v741 = vrot.slane %v740, 1
    %v742 = vmax.f32 %v740, %v741
    %v743 = vrot.slane %v725, 4
    %v744 = vmax.f32 %v725, %v743
    %v745 = vrot.slane %v744, 2
    %v746 = vmax.f32 %v744, %v745
    %v747 = vrot.slane %v746, 1
    %v748 = vmax.f32 %v746, %v747
    %v749 = vrot.slane %v726, 4
    %v750 = vmax.f32 %v726, %v749
    %v751 = vrot.slane %v750, 2
    %v752 = vmax.f32 %v750, %v751
    %v753 = vrot.slane %v752, 1
    %v754 = vmax.f32 %v752, %v753
    %v755 = vrot.slane %v727, 4
    %v756 = vmax.f32 %v727, %v755
    %v757 = vrot.slane %v756, 2
    %v758 = vmax.f32 %v756, %v757
    %v759 = vrot.slane %v758, 1
    %v760 = vmax.f32 %v758, %v759
    %v761 = vrot.slane %v728, 4
    %v762 = vmax.f32 %v728, %v761
    %v763 = vrot.slane %v762, 2
    %v764 = vmax.f32 %v762, %v763
    %v765 = vrot.slane %v764, 1
    %v766 = vmax.f32 %v764, %v765
    %v767 = vrot.slane %v729, 4
    %v768 = vmax.f32 %v729, %v767
    %v769 = vrot.slane %v768, 2
    %v770 = vmax.f32 %v768, %v769
    %v771 = vrot.slane %v770, 1
    %v772 = vmax.f32 %v770, %v771
    %v773 = vrot.slane %v730, 4
    %v774 = vmax.f32 %v730, %v773
    %v775 = vrot.slane %v774, 2
    %v776 = vmax.f32 %v774, %v775
    %v777 = vrot.slane %v776, 1
    %v778 = vmax.f32 %v776, %v777
    %v779 = vsub.f32 %v723, %v736
    %v780 = vsub.f32 %v724, %v742
    %v781 = vsub.f32 %v725, %v748
    %v782 = vsub.f32 %v726, %v754
    %v783 = vsub.f32 %v727, %v760
    %v784 = vsub.f32 %v728, %v766
    %v785 = vsub.f32 %v729, %v772
    %v786 = vsub.f32 %v730, %v778
    %v787 = vmul.f32 %v779, 1.442695
    %v788 = vpow.pop %v787
    %v789 = vmul.f32 %v780, 1.442695
    %v790 = vpow.pop %v789
    %v791 = vmul.f32 %v781, 1.442695
    %v792 = vpow.pop %v791
    %v793 = vmul.f32 %v782, 1.442695
    %v794 = vpow.pop %v793
    %v795 = vmul.f32 %v783, 1.442695
    %v796 = vpow.pop %v795
    %v797 = vmul.f32 %v784, 1.442695
    %v798 = vpow.pop %v797
    %v799 = vmul.f32 %v785, 1.442695
    %v800 = vpow.pop %v799
    %v801 = vmul.f32 %v786, 1.442695
    %v802 = vpow.pop %v801
    %v803 = vrot.slane %v788, 4
    %v804 = vadd.f32 %v788, %v803
    %v805 = vrot.slane %v804, 2
    %v806 = vadd.f32 %v804, %v805
    %v807 = vrot.slane %v806, 1
    %v808 = vadd.f32 %v806, %v807
    %v809 = vrot.slane %v790, 4
    %v810 = vadd.f32 %v790, %v809
    %v811 = vrot.slane %v810, 2
    %v812 = vadd.f32 %v810, %v811
    %v813 = vrot.slane %v812, 1
    %v814 = vadd.f32 %v812, %v813
    %v815 = vrot.slane %v792, 4
    %v816 = vadd.f32 %v792, %v815
    %v817 = vrot.slane %v816, 2
    %v818 = vadd.f32 %v816, %v817
    %v819 = vrot.slane %v818, 1
    %v820 = vadd.f32 %v818, %v819
    %v821 = vrot.slane %v794, 4
    %v822 = vadd.f32 %v794, %v821
    %v823 = vrot.slane %v822, 2
    %v824 = vadd.f32 %v822, %v823
    %v825 = vrot.slane %v824, 1
    %v826 = vadd.f32 %v824, %v825
    %v827 = vrot.slane %v796, 4
    %v828 = vadd.f32 %v796, %v827
    %v829 = vrot.slane %v828, 2
    %v830 = vadd.f32 %v828, %v829
    %v831 = vrot.slane %v830, 1
    %v832 = vadd.f32 %v830, %v831
    %v833 = vrot.slane %v798, 4
    %v834 = vadd.f32 %v798, %v833
    %v835 = vrot.slane %v834, 2
    %v836 = vadd.f32 %v834, %v835
    %v837 = vrot.slane %v836, 1
    %v838 = vadd.f32 %v836, %v837
    %v839 = vrot.slane %v800, 4
    %v840 = vadd.f32 %v800, %v839
    %v841 = vrot.slane %v840, 2
    %v842 = vadd.f32 %v840, %v841
    %v843 = vrot.slane %v842, 1
    %v844 = vadd.f32 %v842, %v843
    %v845 = vrot.slane %v802, 4
    %v846 = vadd.f32 %v802, %v845
    %v847 = vrot.slane %v846, 2
    %v848 = vadd.f32 %v846, %v847
    %v849 = vrot.slane %v848, 1
    %v850 = vadd.f32 %v848, %v849
    %v851 = vlog2.pop %v808
    %v852 = vmul.f32 %v851, 0.6931472
    %v853 = vlog2.pop %v814
    %v854 = vmul.f32 %v853, 0.6931472
    %v855 = vlog2.pop %v820
    %v856 = vmul.f32 %v855, 0.6931472
    %v857 = vlog2.pop %v826
    %v858 = vmul.f32 %v857, 0.6931472
    %v859 = vlog2.pop %v832
    %v860 = vmul.f32 %v859, 0.6931472
    %v861 = vlog2.pop %v838
    %v862 = vmul.f32 %v861, 0.6931472
    %v863 = vlog2.pop %v844
    %v864 = vmul.f32 %v863, 0.6931472
    %v865 = vlog2.pop %v850
    %v866 = vmul.f32 %v865, 0.6931472
    %v867 = vadd.f32 %v736, %v852
    %v868 = vadd.f32 %v742, %v854
    %v869 = vadd.f32 %v748, %v856
    %v870 = vadd.f32 %v754, %v858
    %v871 = vadd.f32 %v760, %v860
    %v872 = vadd.f32 %v766, %v862
    %v873 = vadd.f32 %v772, %v864
    %v874 = vadd.f32 %v778, %v866
    %v875 = vsub.f32 %v723, %v867
    %v876 = vsub.f32 %v724, %v868
    %v877 = vsub.f32 %v725, %v869
    %v878 = vsub.f32 %v726, %v870
    %v879 = vsub.f32 %v727, %v871
    %v880 = vsub.f32 %v728, %v872
    %v881 = vsub.f32 %v729, %v873
    %v882 = vsub.f32 %v730, %v874
    %v883 = vmax.f32 %v875, %v879
    %v884 = vmax.f32 %v876, %v880
    %v885 = vmax.f32 %v877, %v881
    %v886 = vmax.f32 %v878, %v882
    %v887 = vmax.f32 %v883, %v884
    %v888 = vmax.f32 %v885, %v886
    %v889 = vmax.f32 %v887, %v888
    %v890 = vsub.f32 %v875, %v889
    %v891 = vsub.f32 %v876, %v889
    %v892 = vsub.f32 %v877, %v889
    %v893 = vsub.f32 %v878, %v889
    %v894 = vsub.f32 %v879, %v889
    %v895 = vsub.f32 %v880, %v889
    %v896 = vsub.f32 %v881, %v889
    %v897 = vsub.f32 %v882, %v889
    %v898 = vmul.f32 %v890, 1.442695
    %v899 = vpow.pop %v898
    %v900 = vmul.f32 %v891, 1.442695
    %v901 = vpow.pop %v900
    %v902 = vmul.f32 %v892, 1.442695
    %v903 = vpow.pop %v902
    %v904 = vmul.f32 %v893, 1.442695
    %v905 = vpow.pop %v904
    %v906 = vmul.f32 %v894, 1.442695
    %v907 = vpow.pop %v906
    %v908 = vmul.f32 %v895, 1.442695
    %v909 = vpow.pop %v908
    %v910 = vmul.f32 %v896, 1.442695
    %v911 = vpow.pop %v910
    %v912 = vmul.f32 %v897, 1.442695
    %v913 = vpow.pop %v912
    %v914 = vadd.f32 %v899, %v901
    %v915 = vadd.f32 %v914, %v903
    %v916 = vadd.f32 %v915, %v905
    %v917 = vadd.f32 %v916, %v907
    %v918 = vadd.f32 %v917, %v909
    %v919 = vadd.f32 %v918, %v911
    %v920 = vadd.f32 %v919, %v913
    %v921 = vlog2.pop %v920
    %v922 = vmul.f32 %v921, 0.6931472
    %v923 = vadd.f32 %v889, %v922
    %v924 = vsub.f32 %v875, %v923
    %v925 = vsub.f32 %v876, %v923
    %v926 = vsub.f32 %v877, %v923
    %v927 = vsub.f32 %v878, %v923
    %v928 = vsub.f32 %v879, %v923
    %v929 = vsub.f32 %v880, %v923
    %v930 = vsub.f32 %v881, %v923
    %v931 = vsub.f32 %v882, %v923
    %v932 = vrot.slane %v924, 4
    %v933 = vmax.f32 %v924, %v932
    %v934 = vrot.slane %v933, 2
    %v935 = vmax.f32 %v933, %v934
    %v936 = vrot.slane %v935, 1
    %v937 = vmax.f32 %v935, %v936
    %v938 = vrot.slane %v925, 4
    %v939 = vmax.f32 %v925, %v938
    %v940 = vrot.slane %v939, 2
    %v941 = vmax.f32 %v939, %v940
    %v942 = vrot.slane %v941, 1
    %v943 = vmax.f32 %v941, %v942
    %v944 = vrot.slane %v926, 4
    %v945 = vmax.f32 %v926, %v944
    %v946 = vrot.slane %v945, 2
    %v947 = vmax.f32 %v945, %v946
    %v948 = vrot.slane %v947, 1
    %v949 = vmax.f32 %v947, %v948
    %v950 = vrot.slane %v927, 4
    %v951 = vmax.f32 %v927, %v950
    %v952 = vrot.slane %v951, 2
    %v953 = vmax.f32 %v951, %v952
    %v954 = vrot.slane %v953, 1
    %v955 = vmax.f32 %v953, %v954
    %v956 = vrot.slane %v928, 4
    %v957 = vmax.f32 %v928, %v956
    %v958 = vrot.slane %v957, 2
    %v959 = vmax.f32 %v957, %v958
    %v960 = vrot.slane %v959, 1
    %v961 = vmax.f32 %v959, %v960
    %v962 = vrot.slane %v929, 4
    %v963 = vmax.f32 %v929, %v962
    %v964 = vrot.slane %v963, 2
    %v965 = vmax.f32 %v963, %v964
    %v966 = vrot.slane %v965, 1
    %v967 = vmax.f32 %v965, %v966
    %v968 = vrot.slane %v930, 4
    %v969 = vmax.f32 %v930, %v968
    %v970 = vrot.slane %v969, 2
    %v971 = vmax.f32 %v969, %v970
    %v972 = vrot.slane %v971, 1
    %v973 = vmax.f32 %v971, %v972
    %v974 = vrot.slane %v931, 4
    %v975 = vmax.f32 %v931, %v974
    %v976 = vrot.slane %v975, 2
    %v977 = vmax.f32 %v975, %v976
    %v978 = vrot.slane %v977, 1
    %v979 = vmax.f32 %v977, %v978
    %v980 = vsub.f32 %v924, %v937
    %v981 = vsub.f32 %v925, %v943
    %v982 = vsub.f32 %v926, %v949
    %v983 = vsub.f32 %v927, %v955
    %v984 = vsub.f32 %v928, %v961
    %v985 = vsub.f32 %v929, %v967
    %v986 = vsub.f32 %v930, %v973
    %v987 = vsub.f32 %v931, %v979
    %v988 = vmul.f32 %v980, 1.442695
    %v989 = vpow.pop %v988
    %v990 = vmul.f32 %v981, 1.442695
    %v991 = vpow.pop %v990
    %v992 = vmul.f32 %v982, 1.442695
    %v993 = vpow.pop %v992
    %v994 = vmul.f32 %v983, 1.442695
    %v995 = vpow.pop %v994
    %v996 = vmul.f32 %v984, 1.442695
    %v997 = vpow.pop %v996
    %v998 = vmul.f32 %v985, 1.442695
    %v999 = vpow.pop %v998
    %v1000 = vmul.f32 %v986, 1.442695
    %v1001 = vpow.pop %v1000
    %v1002 = vmul.f32 %v987, 1.442695
    %v1003 = vpow.pop %v1002
    %v1004 = vrot.slane %v989, 4
    %v1005 = vadd.f32 %v989, %v1004
    %v1006 = vrot.slane %v1005, 2
    %v1007 = vadd.f32 %v1005, %v1006
    %v1008 = vrot.slane %v1007, 1
    %v1009 = vadd.f32 %v1007, %v1008
    %v1010 = vrot.slane %v991, 4
    %v1011 = vadd.f32 %v991, %v1010
    %v1012 = vrot.slane %v1011, 2
    %v1013 = vadd.f32 %v1011, %v1012
    %v1014 = vrot.slane %v1013, 1
    %v1015 = vadd.f32 %v1013, %v1014
    %v1016 = vrot.slane %v993, 4
    %v1017 = vadd.f32 %v993, %v1016
    %v1018 = vrot.slane %v1017, 2
    %v1019 = vadd.f32 %v1017, %v1018
    %v1020 = vrot.slane %v1019, 1
    %v1021 = vadd.f32 %v1019, %v1020
    %v1022 = vrot.slane %v995, 4
    %v1023 = vadd.f32 %v995, %v1022
    %v1024 = vrot.slane %v1023, 2
    %v1025 = vadd.f32 %v1023, %v1024
    %v1026 = vrot.slane %v1025, 1
    %v1027 = vadd.f32 %v1025, %v1026
    %v1028 = vrot.slane %v997, 4
    %v1029 = vadd.f32 %v997, %v1028
    %v1030 = vrot.slane %v1029, 2
    %v1031 = vadd.f32 %v1029, %v1030
    %v1032 = vrot.slane %v1031, 1
    %v1033 = vadd.f32 %v1031, %v1032
    %v1034 = vrot.slane %v999, 4
    %v1035 = vadd.f32 %v999, %v1034
    %v1036 = vrot.slane %v1035, 2
    %v1037 = vadd.f32 %v1035, %v1036
    %v1038 = vrot.slane %v1037, 1
    %v1039 = vadd.f32 %v1037, %v1038
    %v1040 = vrot.slane %v1001, 4
    %v1041 = vadd.f32 %v1001, %v1040
    %v1042 = vrot.slane %v1041, 2
    %v1043 = vadd.f32 %v1041, %v1042
    %v1044 = vrot.slane %v1043, 1
    %v1045 = vadd.f32 %v1043, %v1044
    %v1046 = vrot.slane %v1003, 4
    %v1047 = vadd.f32 %v1003, %v1046
    %v1048 = vrot.slane %v1047, 2
    %v1049 = vadd.f32 %v1047, %v1048
    %v1050 = vrot.slane %v1049, 1
    %v1051 = vadd.f32 %v1049, %v1050
    %v1052 = vlog2.pop %v1009
    %v1053 = vmul.f32 %v1052, 0.6931472
    %v1054 = vlog2.pop %v1015
    %v1055 = vmul.f32 %v1054, 0.6931472
    %v1056 = vlog2.pop %v1021
    %v1057 = vmul.f32 %v1056, 0.6931472
    %v1058 = vlog2.pop %v1027
    %v1059 = vmul.f32 %v1058, 0.6931472
    %v1060 = vlog2.pop %v1033
    %v1061 = vmul.f32 %v1060, 0.6931472
    %v1062 = vlog2.pop %v1039
    %v1063 = vmul.f32 %v1062, 0.6931472
    %v1064 = vlog2.pop %v1045
    %v1065 = vmul.f32 %v1064, 0.6931472
    %v1066 = vlog2.pop %v1051
    %v1067 = vmul.f32 %v1066, 0.6931472
    %v1068 = vadd.f32 %v937, %v1053
    %v1069 = vadd.f32 %v943, %v1055
    %v1070 = vadd.f32 %v949, %v1057
    %v1071 = vadd.f32 %v955, %v1059
    %v1072 = vadd.f32 %v961, %v1061
    %v1073 = vadd.f32 %v967, %v1063
    %v1074 = vadd.f32 %v973, %v1065
    %v1075 = vadd.f32 %v979, %v1067
    %v1076 = vsub.f32 %v924, %v1068
    %v1077 = vsub.f32 %v925, %v1069
    %v1078 = vsub.f32 %v926, %v1070
    %v1079 = vsub.f32 %v927, %v1071
    %v1080 = vsub.f32 %v928, %v1072
    %v1081 = vsub.f32 %v929, %v1073
    %v1082 = vsub.f32 %v930, %v1074
    %v1083 = vsub.f32 %v931, %v1075
    %v1084 = vmax.f32 %v1076, %v1080
    %v1085 = vmax.f32 %v1077, %v1081
    %v1086 = vmax.f32 %v1078, %v1082
    %v1087 = vmax.f32 %v1079, %v1083
    %v1088 = vmax.f32 %v1084, %v1085
    %v1089 = vmax.f32 %v1086, %v1087
    %v1090 = vmax.f32 %v1088, %v1089
    %v1091 = vsub.f32 %v1076, %v1090
    %v1092 = vsub.f32 %v1077, %v1090
    %v1093 = vsub.f32 %v1078, %v1090
    %v1094 = vsub.f32 %v1079, %v1090
    %v1095 = vsub.f32 %v1080, %v1090
    %v1096 = vsub.f32 %v1081, %v1090
    %v1097 = vsub.f32 %v1082, %v1090
    %v1098 = vsub.f32 %v1083, %v1090
    %v1099 = vmul.f32 %v1091, 1.442695
    %v1100 = vpow.pop %v1099
    %v1101 = vmul.f32 %v1092, 1.442695
    %v1102 = vpow.pop %v1101
    %v1103 = vmul.f32 %v1093, 1.442695
    %v1104 = vpow.pop %v1103
    %v1105 = vmul.f32 %v1094, 1.442695
    %v1106 = vpow.pop %v1105
    %v1107 = vmul.f32 %v1095, 1.442695
    %v1108 = vpow.pop %v1107
    %v1109 = vmul.f32 %v1096, 1.442695
    %v1110 = vpow.pop %v1109
    %v1111 = vmul.f32 %v1097, 1.442695
    %v1112 = vpow.pop %v1111
    %v1113 = vmul.f32 %v1098, 1.442695
    %v1114 = vpow.pop %v1113
    %v1115 = vadd.f32 %v1100, %v1102
    %v1116 = vadd.f32 %v1115, %v1104
    %v1117 = vadd.f32 %v1116, %v1106
    %v1118 = vadd.f32 %v1117, %v1108
    %v1119 = vadd.f32 %v1118, %v1110
    %v1120 = vadd.f32 %v1119, %v1112
    %v1121 = vadd.f32 %v1120, %v1114
    %v1122 = vlog2.pop %v1121
    %v1123 = vmul.f32 %v1122, 0.6931472
    %v1124 = vadd.f32 %v1090, %v1123
    %v1125 = vsub.f32 %v1076, %v1124
    %v1126 = vsub.f32 %v1077, %v1124
    %v1127 = vsub.f32 %v1078, %v1124
    %v1128 = vsub.f32 %v1079, %v1124
    %v1129 = vsub.f32 %v1080, %v1124
    %v1130 = vsub.f32 %v1081, %v1124
    %v1131 = vsub.f32 %v1082, %v1124
    %v1132 = vsub.f32 %v1083, %v1124
    %v1133 = vrot.slane %v1125, 4
    %v1134 = vmax.f32 %v1125, %v1133
    %v1135 = vrot.slane %v1134, 2
    %v1136 = vmax.f32 %v1134, %v1135
    %v1137 = vrot.slane %v1136, 1
    %v1138 = vmax.f32 %v1136, %v1137
    %v1139 = vrot.slane %v1126, 4
    %v1140 = vmax.f32 %v1126, %v1139
    %v1141 = vrot.slane %v1140, 2
    %v1142 = vmax.f32 %v1140, %v1141
    %v1143 = vrot.slane %v1142, 1
    %v1144 = vmax.f32 %v1142, %v1143
    %v1145 = vrot.slane %v1127, 4
    %v1146 = vmax.f32 %v1127, %v1145
    %v1147 = vrot.slane %v1146, 2
    %v1148 = vmax.f32 %v1146, %v1147
    %v1149 = vrot.slane %v1148, 1
    %v1150 = vmax.f32 %v1148, %v1149
    %v1151 = vrot.slane %v1128, 4
    %v1152 = vmax.f32 %v1128, %v1151
    %v1153 = vrot.slane %v1152, 2
    %v1154 = vmax.f32 %v1152, %v1153
    %v1155 = vrot.slane %v1154, 1
    %v1156 = vmax.f32 %v1154, %v1155
    %v1157 = vrot.slane %v1129, 4
    %v1158 = vmax.f32 %v1129, %v1157
    %v1159 = vrot.slane %v1158, 2
    %v1160 = vmax.f32 %v1158, %v1159
    %v1161 = vrot.slane %v1160, 1
    %v1162 = vmax.f32 %v1160, %v1161
    %v1163 = vrot.slane %v1130, 4
    %v1164 = vmax.f32 %v1130, %v1163
    %v1165 = vrot.slane %v1164, 2
    %v1166 = vmax.f32 %v1164, %v1165
    %v1167 = vrot.slane %v1166, 1
    %v1168 = vmax.f32 %v1166, %v1167
    %v1169 = vrot.slane %v1131, 4
    %v1170 = vmax.f32 %v1131, %v1169
    %v1171 = vrot.slane %v1170, 2
    %v1172 = vmax.f32 %v1170, %v1171
    %v1173 = vrot.slane %v1172, 1
    %v1174 = vmax.f32 %v1172, %v1173
    %v1175 = vrot.slane %v1132, 4
    %v1176 = vmax.f32 %v1132, %v1175
    %v1177 = vrot.slane %v1176, 2
    %v1178 = vmax.f32 %v1176, %v1177
    %v1179 = vrot.slane %v1178, 1
    %v1180 = vmax.f32 %v1178, %v1179
    %v1181 = vsub.f32 %v1125, %v1138
    %v1182 = vsub.f32 %v1126, %v1144
    %v1183 = vsub.f32 %v1127, %v1150
    %v1184 = vsub.f32 %v1128, %v1156
    %v1185 = vsub.f32 %v1129, %v1162
    %v1186 = vsub.f32 %v1130, %v1168
    %v1187 = vsub.f32 %v1131, %v1174
    %v1188 = vsub.f32 %v1132, %v1180
    %v1189 = vmul.f32 %v1181, 1.442695
    %v1190 = vpow.pop %v1189
    %v1191 = vmul.f32 %v1182, 1.442695
    %v1192 = vpow.pop %v1191
    %v1193 = vmul.f32 %v1183, 1.442695
    %v1194 = vpow.pop %v1193
    %v1195 = vmul.f32 %v1184, 1.442695
    %v1196 = vpow.pop %v1195
    %v1197 = vmul.f32 %v1185, 1.442695
    %v1198 = vpow.pop %v1197
    %v1199 = vmul.f32 %v1186, 1.442695
    %v1200 = vpow.pop %v1199
    %v1201 = vmul.f32 %v1187, 1.442695
    %v1202 = vpow.pop %v1201
    %v1203 = vmul.f32 %v1188, 1.442695
    %v1204 = vpow.pop %v1203
    %v1205 = vrot.slane %v1190, 4
    %v1206 = vadd.f32 %v1190, %v1205
    %v1207 = vrot.slane %v1206, 2
    %v1208 = vadd.f32 %v1206, %v1207
    %v1209 = vrot.slane %v1208, 1
    %v1210 = vadd.f32 %v1208, %v1209
    %v1211 = vrot.slane %v1192, 4
    %v1212 = vadd.f32 %v1192, %v1211
    %v1213 = vrot.slane %v1212, 2
    %v1214 = vadd.f32 %v1212, %v1213
    %v1215 = vrot.slane %v1214, 1
    %v1216 = vadd.f32 %v1214, %v1215
    %v1217 = vrot.slane %v1194, 4
    %v1218 = vadd.f32 %v1194, %v1217
    %v1219 = vrot.slane %v1218, 2
    %v1220 = vadd.f32 %v1218, %v1219
    %v1221 = vrot.slane %v1220, 1
    %v1222 = vadd.f32 %v1220, %v1221
    %v1223 = vrot.slane %v1196, 4
    %v1224 = vadd.f32 %v1196, %v1223
    %v1225 = vrot.slane %v1224, 2
    %v1226 = vadd.f32 %v1224, %v1225
    %v1227 = vrot.slane %v1226, 1
    %v1228 = vadd.f32 %v1226, %v1227
    %v1229 = vrot.slane %v1198, 4
    %v1230 = vadd.f32 %v1198, %v1229
    %v1231 = vrot.slane %v1230, 2
    %v1232 = vadd.f32 %v1230, %v1231
    %v1233 = vrot.slane %v1232, 1
    %v1234 = vadd.f32 %v1232, %v1233
    %v1235 = vrot.slane %v1200, 4
    %v1236 = vadd.f32 %v1200, %v1235
    %v1237 = vrot.slane %v1236, 2
    %v1238 = vadd.f32 %v1236, %v1237
    %v1239 = vrot.slane %v1238, 1
    %v1240 = vadd.f32 %v1238, %v1239
    %v1241 = vrot.slane %v1202, 4
    %v1242 = vadd.f32 %v1202, %v1241
    %v1243 = vrot.slane %v1242, 2
    %v1244 = vadd.f32 %v1242, %v1243
    %v1245 = vrot.slane %v1244, 1
    %v1246 = vadd.f32 %v1244, %v1245
    %v1247 = vrot.slane %v1204, 4
    %v1248 = vadd.f32 %v1204, %v1247
    %v1249 = vrot.slane %v1248, 2
    %v1250 = vadd.f32 %v1248, %v1249
    %v1251 = vrot.slane %v1250, 1
    %v1252 = vadd.f32 %v1250, %v1251
    %v1253 = vlog2.pop %v1210
    %v1254 = vmul.f32 %v1253, 0.6931472
    %v1255 = vlog2.pop %v1216
    %v1256 = vmul.f32 %v1255, 0.6931472
    %v1257 = vlog2.pop %v1222
    %v1258 = vmul.f32 %v1257, 0.6931472
    %v1259 = vlog2.pop %v1228
    %v1260 = vmul.f32 %v1259, 0.6931472
    %v1261 = vlog2.pop %v1234
    %v1262 = vmul.f32 %v1261, 0.6931472
    %v1263 = vlog2.pop %v1240
    %v1264 = vmul.f32 %v1263, 0.6931472
    %v1265 = vlog2.pop %v1246
    %v1266 = vmul.f32 %v1265, 0.6931472
    %v1267 = vlog2.pop %v1252
    %v1268 = vmul.f32 %v1267, 0.6931472
    %v1269 = vadd.f32 %v1138, %v1254
    %v1270 = vadd.f32 %v1144, %v1256
    %v1271 = vadd.f32 %v1150, %v1258
    %v1272 = vadd.f32 %v1156, %v1260
    %v1273 = vadd.f32 %v1162, %v1262
    %v1274 = vadd.f32 %v1168, %v1264
    %v1275 = vadd.f32 %v1174, %v1266
    %v1276 = vadd.f32 %v1180, %v1268
    %v1277 = vsub.f32 %v1125, %v1269
    %v1278 = vsub.f32 %v1126, %v1270
    %v1279 = vsub.f32 %v1127, %v1271
    %v1280 = vsub.f32 %v1128, %v1272
    %v1281 = vsub.f32 %v1129, %v1273
    %v1282 = vsub.f32 %v1130, %v1274
    %v1283 = vsub.f32 %v1131, %v1275
    %v1284 = vsub.f32 %v1132, %v1276
    %v1285 = vmax.f32 %v1277, %v1281
    %v1286 = vmax.f32 %v1278, %v1282
    %v1287 = vmax.f32 %v1279, %v1283
    %v1288 = vmax.f32 %v1280, %v1284
    %v1289 = vmax.f32 %v1285, %v1286
    %v1290 = vmax.f32 %v1287, %v1288
    %v1291 = vmax.f32 %v1289, %v1290
    %v1292 = vsub.f32 %v1277, %v1291
    %v1293 = vsub.f32 %v1278, %v1291
    %v1294 = vsub.f32 %v1279, %v1291
    %v1295 = vsub.f32 %v1280, %v1291
    %v1296 = vsub.f32 %v1281, %v1291
    %v1297 = vsub.f32 %v1282, %v1291
    %v1298 = vsub.f32 %v1283, %v1291
    %v1299 = vsub.f32 %v1284, %v1291
    %v1300 = vmul.f32 %v1292, 1.442695
    %v1301 = vpow.pop %v1300
    %v1302 = vmul.f32 %v1293, 1.442695
    %v1303 = vpow.pop %v1302
    %v1304 = vmul.f32 %v1294, 1.442695
    %v1305 = vpow.pop %v1304
    %v1306 = vmul.f32 %v1295, 1.442695
    %v1307 = vpow.pop %v1306
    %v1308 = vmul.f32 %v1296, 1.442695
    %v1309 = vpow.pop %v1308
    %v1310 = vmul.f32 %v1297, 1.442695
    %v1311 = vpow.pop %v1310
    %v1312 = vmul.f32 %v1298, 1.442695
    %v1313 = vpow.pop %v1312
    %v1314 = vmul.f32 %v1299, 1.442695
    %v1315 = vpow.pop %v1314
    %v1316 = vadd.f32 %v1301, %v1303
    %v1317 = vadd.f32 %v1316, %v1305
    %v1318 = vadd.f32 %v1317, %v1307
    %v1319 = vadd.f32 %v1318, %v1309
    %v1320 = vadd.f32 %v1319, %v1311
    %v1321 = vadd.f32 %v1320, %v1313
    %v1322 = vadd.f32 %v1321, %v1315
    %v1323 = vlog2.pop %v1322
    %v1324 = vmul.f32 %v1323, 0.6931472
    %v1325 = vadd.f32 %v1291, %v1324
    %v1326 = vsub.f32 %v1277, %v1325
    %v1327 = vsub.f32 %v1278, %v1325
    %v1328 = vsub.f32 %v1279, %v1325
    %v1329 = vsub.f32 %v1280, %v1325
    %v1330 = vsub.f32 %v1281, %v1325
    %v1331 = vsub.f32 %v1282, %v1325
    %v1332 = vsub.f32 %v1283, %v1325
    %v1333 = vsub.f32 %v1284, %v1325
    %v1334 = vrot.slane %v1326, 4
    %v1335 = vmax.f32 %v1326, %v1334
    %v1336 = vrot.slane %v1335, 2
    %v1337 = vmax.f32 %v1335, %v1336
    %v1338 = vrot.slane %v1337, 1
    %v1339 = vmax.f32 %v1337, %v1338
    %v1340 = vrot.slane %v1327, 4
    %v1341 = vmax.f32 %v1327, %v1340
    %v1342 = vrot.slane %v1341, 2
    %v1343 = vmax.f32 %v1341, %v1342
    %v1344 = vrot.slane %v1343, 1
    %v1345 = vmax.f32 %v1343, %v1344
    %v1346 = vrot.slane %v1328, 4
    %v1347 = vmax.f32 %v1328, %v1346
    %v1348 = vrot.slane %v1347, 2
    %v1349 = vmax.f32 %v1347, %v1348
    %v1350 = vrot.slane %v1349, 1
    %v1351 = vmax.f32 %v1349, %v1350
    %v1352 = vrot.slane %v1329, 4
    %v1353 = vmax.f32 %v1329, %v1352
    %v1354 = vrot.slane %v1353, 2
    %v1355 = vmax.f32 %v1353, %v1354
    %v1356 = vrot.slane %v1355, 1
    %v1357 = vmax.f32 %v1355, %v1356
    %v1358 = vrot.slane %v1330, 4
    %v1359 = vmax.f32 %v1330, %v1358
    %v1360 = vrot.slane %v1359, 2
    %v1361 = vmax.f32 %v1359, %v1360
    %v1362 = vrot.slane %v1361, 1
    %v1363 = vmax.f32 %v1361, %v1362
    %v1364 = vrot.slane %v1331, 4
    %v1365 = vmax.f32 %v1331, %v1364
    %v1366 = vrot.slane %v1365, 2
    %v1367 = vmax.f32 %v1365, %v1366
    %v1368 = vrot.slane %v1367, 1
    %v1369 = vmax.f32 %v1367, %v1368
    %v1370 = vrot.slane %v1332, 4
    %v1371 = vmax.f32 %v1332, %v1370
    %v1372 = vrot.slane %v1371, 2
    %v1373 = vmax.f32 %v1371, %v1372
    %v1374 = vrot.slane %v1373, 1
    %v1375 = vmax.f32 %v1373, %v1374
    %v1376 = vrot.slane %v1333, 4
    %v1377 = vmax.f32 %v1333, %v1376
    %v1378 = vrot.slane %v1377, 2
    %v1379 = vmax.f32 %v1377, %v1378
    %v1380 = vrot.slane %v1379, 1
    %v1381 = vmax.f32 %v1379, %v1380
    %v1382 = vsub.f32 %v1326, %v1339
    %v1383 = vsub.f32 %v1327, %v1345
    %v1384 = vsub.f32 %v1328, %v1351
    %v1385 = vsub.f32 %v1329, %v1357
    %v1386 = vsub.f32 %v1330, %v1363
    %v1387 = vsub.f32 %v1331, %v1369
    %v1388 = vsub.f32 %v1332, %v1375
    %v1389 = vsub.f32 %v1333, %v1381
    %v1390 = vmul.f32 %v1382, 1.442695
    %v1391 = vpow.pop %v1390
    %v1392 = vmul.f32 %v1383, 1.442695
    %v1393 = vpow.pop %v1392
    %v1394 = vmul.f32 %v1384, 1.442695
    %v1395 = vpow.pop %v1394
    %v1396 = vmul.f32 %v1385, 1.442695
    %v1397 = vpow.pop %v1396
    %v1398 = vmul.f32 %v1386, 1.442695
    %v1399 = vpow.pop %v1398
    %v1400 = vmul.f32 %v1387, 1.442695
    %v1401 = vpow.pop %v1400
    %v1402 = vmul.f32 %v1388, 1.442695
    %v1403 = vpow.pop %v1402
    %v1404 = vmul.f32 %v1389, 1.442695
    %v1405 = vpow.pop %v1404
    %v1406 = vrot.slane %v1391, 4
    %v1407 = vadd.f32 %v1391, %v1406
    %v1408 = vrot.slane %v1407, 2
    %v1409 = vadd.f32 %v1407, %v1408
    %v1410 = vrot.slane %v1409, 1
    %v1411 = vadd.f32 %v1409, %v1410
    %v1412 = vrot.slane %v1393, 4
    %v1413 = vadd.f32 %v1393, %v1412
    %v1414 = vrot.slane %v1413, 2
    %v1415 = vadd.f32 %v1413, %v1414
    %v1416 = vrot.slane %v1415, 1
    %v1417 = vadd.f32 %v1415, %v1416
    %v1418 = vrot.slane %v1395, 4
    %v1419 = vadd.f32 %v1395, %v1418
    %v1420 = vrot.slane %v1419, 2
    %v1421 = vadd.f32 %v1419, %v1420
    %v1422 = vrot.slane %v1421, 1
    %v1423 = vadd.f32 %v1421, %v1422
    %v1424 = vrot.slane %v1397, 4
    %v1425 = vadd.f32 %v1397, %v1424
    %v1426 = vrot.slane %v1425, 2
    %v1427 = vadd.f32 %v1425, %v1426
    %v1428 = vrot.slane %v1427, 1
    %v1429 = vadd.f32 %v1427, %v1428
    %v1430 = vrot.slane %v1399, 4
    %v1431 = vadd.f32 %v1399, %v1430
    %v1432 = vrot.slane %v1431, 2
    %v1433 = vadd.f32 %v1431, %v1432
    %v1434 = vrot.slane %v1433, 1
    %v1435 = vadd.f32 %v1433, %v1434
    %v1436 = vrot.slane %v1401, 4
    %v1437 = vadd.f32 %v1401, %v1436
    %v1438 = vrot.slane %v1437, 2
    %v1439 = vadd.f32 %v1437, %v1438
    %v1440 = vrot.slane %v1439, 1
    %v1441 = vadd.f32 %v1439, %v1440
    %v1442 = vrot.slane %v1403, 4
    %v1443 = vadd.f32 %v1403, %v1442
    %v1444 = vrot.slane %v1443, 2
    %v1445 = vadd.f32 %v1443, %v1444
    %v1446 = vrot.slane %v1445, 1
    %v1447 = vadd.f32 %v1445, %v1446
    %v1448 = vrot.slane %v1405, 4
    %v1449 = vadd.f32 %v1405, %v1448
    %v1450 = vrot.slane %v1449, 2
    %v1451 = vadd.f32 %v1449, %v1450
    %v1452 = vrot.slane %v1451, 1
    %v1453 = vadd.f32 %v1451, %v1452
    %v1454 = vlog2.pop %v1411
    %v1455 = vmul.f32 %v1454, 0.6931472
    %v1456 = vlog2.pop %v1417
    %v1457 = vmul.f32 %v1456, 0.6931472
    %v1458 = vlog2.pop %v1423
    %v1459 = vmul.f32 %v1458, 0.6931472
    %v1460 = vlog2.pop %v1429
    %v1461 = vmul.f32 %v1460, 0.6931472
    %v1462 = vlog2.pop %v1435
    %v1463 = vmul.f32 %v1462, 0.6931472
    %v1464 = vlog2.pop %v1441
    %v1465 = vmul.f32 %v1464, 0.6931472
    %v1466 = vlog2.pop %v1447
    %v1467 = vmul.f32 %v1466, 0.6931472
    %v1468 = vlog2.pop %v1453
    %v1469 = vmul.f32 %v1468, 0.6931472
    %v1470 = vadd.f32 %v1339, %v1455
    %v1471 = vadd.f32 %v1345, %v1457
    %v1472 = vadd.f32 %v1351, %v1459
    %v1473 = vadd.f32 %v1357, %v1461
    %v1474 = vadd.f32 %v1363, %v1463
    %v1475 = vadd.f32 %v1369, %v1465
    %v1476 = vadd.f32 %v1375, %v1467
    %v1477 = vadd.f32 %v1381, %v1469
    %v1478 = vsub.f32 %v1326, %v1470
    %v1479 = vsub.f32 %v1327, %v1471
    %v1480 = vsub.f32 %v1328, %v1472
    %v1481 = vsub.f32 %v1329, %v1473
    %v1482 = vsub.f32 %v1330, %v1474
    %v1483 = vsub.f32 %v1331, %v1475
    %v1484 = vsub.f32 %v1332, %v1476
    %v1485 = vsub.f32 %v1333, %v1477
    %v1486 = vmax.f32 %v1478, %v1482
    %v1487 = vmax.f32 %v1479, %v1483
    %v1488 = vmax.f32 %v1480, %v1484
    %v1489 = vmax.f32 %v1481, %v1485
    %v1490 = vmax.f32 %v1486, %v1487
    %v1491 = vmax.f32 %v1488, %v1489
    %v1492 = vmax.f32 %v1490, %v1491
    %v1493 = vsub.f32 %v1478, %v1492
    %v1494 = vsub.f32 %v1479, %v1492
    %v1495 = vsub.f32 %v1480, %v1492
    %v1496 = vsub.f32 %v1481, %v1492
    %v1497 = vsub.f32 %v1482, %v1492
    %v1498 = vsub.f32 %v1483, %v1492
    %v1499 = vsub.f32 %v1484, %v1492
    %v1500 = vsub.f32 %v1485, %v1492
    %v1501 = vmul.f32 %v1493, 1.442695
    %v1502 = vpow.pop %v1501
    %v1503 = vmul.f32 %v1494, 1.442695
    %v1504 = vpow.pop %v1503
    %v1505 = vmul.f32 %v1495, 1.442695
    %v1506 = vpow.pop %v1505
    %v1507 = vmul.f32 %v1496, 1.442695
    %v1508 = vpow.pop %v1507
    %v1509 = vmul.f32 %v1497, 1.442695
    %v1510 = vpow.pop %v1509
    %v1511 = vmul.f32 %v1498, 1.442695
    %v1512 = vpow.pop %v1511
    %v1513 = vmul.f32 %v1499, 1.442695
    %v1514 = vpow.pop %v1513
    %v1515 = vmul.f32 %v1500, 1.442695
    %v1516 = vpow.pop %v1515
    %v1517 = vadd.f32 %v1502, %v1504
    %v1518 = vadd.f32 %v1517, %v1506
    %v1519 = vadd.f32 %v1518, %v1508
    %v1520 = vadd.f32 %v1519, %v1510
    %v1521 = vadd.f32 %v1520, %v1512
    %v1522 = vadd.f32 %v1521, %v1514
    %v1523 = vadd.f32 %v1522, %v1516
    %v1524 = vlog2.pop %v1523
    %v1525 = vmul.f32 %v1524, 0.6931472
    %v1526 = vadd.f32 %v1492, %v1525
    %v1527 = vsub.f32 %v1478, %v1526
    %v1528 = vsub.f32 %v1479, %v1526
    %v1529 = vsub.f32 %v1480, %v1526
    %v1530 = vsub.f32 %v1481, %v1526
    %v1531 = vsub.f32 %v1482, %v1526
    %v1532 = vsub.f32 %v1483, %v1526
    %v1533 = vsub.f32 %v1484, %v1526
    %v1534 = vsub.f32 %v1485, %v1526
    %v1535 = vrot.slane %v1527, 4
    %v1536 = vmax.f32 %v1527, %v1535
    %v1537 = vrot.slane %v1536, 2
    %v1538 = vmax.f32 %v1536, %v1537
    %v1539 = vrot.slane %v1538, 1
    %v1540 = vmax.f32 %v1538, %v1539
    %v1541 = vrot.slane %v1528, 4
    %v1542 = vmax.f32 %v1528, %v1541
    %v1543 = vrot.slane %v1542, 2
    %v1544 = vmax.f32 %v1542, %v1543
    %v1545 = vrot.slane %v1544, 1
    %v1546 = vmax.f32 %v1544, %v1545
    %v1547 = vrot.slane %v1529, 4
    %v1548 = vmax.f32 %v1529, %v1547
    %v1549 = vrot.slane %v1548, 2
    %v1550 = vmax.f32 %v1548, %v1549
    %v1551 = vrot.slane %v1550, 1
    %v1552 = vmax.f32 %v1550, %v1551
    %v1553 = vrot.slane %v1530, 4
    %v1554 = vmax.f32 %v1530, %v1553
    %v1555 = vrot.slane %v1554, 2
    %v1556 = vmax.f32 %v1554, %v1555
    %v1557 = vrot.slane %v1556, 1
    %v1558 = vmax.f32 %v1556, %v1557
    %v1559 = vrot.slane %v1531, 4
    %v1560 = vmax.f32 %v1531, %v1559
    %v1561 = vrot.slane %v1560, 2
    %v1562 = vmax.f32 %v1560, %v1561
    %v1563 = vrot.slane %v1562, 1
    %v1564 = vmax.f32 %v1562, %v1563
    %v1565 = vrot.slane %v1532, 4
    %v1566 = vmax.f32 %v1532, %v1565
    %v1567 = vrot.slane %v1566, 2
    %v1568 = vmax.f32 %v1566, %v1567
    %v1569 = vrot.slane %v1568, 1
    %v1570 = vmax.f32 %v1568, %v1569
    %v1571 = vrot.slane %v1533, 4
    %v1572 = vmax.f32 %v1533, %v1571
    %v1573 = vrot.slane %v1572, 2
    %v1574 = vmax.f32 %v1572, %v1573
    %v1575 = vrot.slane %v1574, 1
    %v1576 = vmax.f32 %v1574, %v1575
    %v1577 = vrot.slane %v1534, 4
    %v1578 = vmax.f32 %v1534, %v1577
    %v1579 = vrot.slane %v1578, 2
    %v1580 = vmax.f32 %v1578, %v1579
    %v1581 = vrot.slane %v1580, 1
    %v1582 = vmax.f32 %v1580, %v1581
    %v1583 = vsub.f32 %v1527, %v1540
    %v1584 = vsub.f32 %v1528, %v1546
    %v1585 = vsub.f32 %v1529, %v1552
    %v1586 = vsub.f32 %v1530, %v1558
    %v1587 = vsub.f32 %v1531, %v1564
    %v1588 = vsub.f32 %v1532, %v1570
    %v1589 = vsub.f32 %v1533, %v1576
    %v1590 = vsub.f32 %v1534, %v1582
    %v1591 = vmul.f32 %v1583, 1.442695
    %v1592 = vpow.pop %v1591
    %v1593 = vmul.f32 %v1584, 1.442695
    %v1594 = vpow.pop %v1593
    %v1595 = vmul.f32 %v1585, 1.442695
    %v1596 = vpow.pop %v1595
    %v1597 = vmul.f32 %v1586, 1.442695
    %v1598 = vpow.pop %v1597
    %v1599 = vmul.f32 %v1587, 1.442695
    %v1600 = vpow.pop %v1599
    %v1601 = vmul.f32 %v1588, 1.442695
    %v1602 = vpow.pop %v1601
    %v1603 = vmul.f32 %v1589, 1.442695
    %v1604 = vpow.pop %v1603
    %v1605 = vmul.f32 %v1590, 1.442695
    %v1606 = vpow.pop %v1605
    %v1607 = vrot.slane %v1592, 4
    %v1608 = vadd.f32 %v1592, %v1607
    %v1609 = vrot.slane %v1608, 2
    %v1610 = vadd.f32 %v1608, %v1609
    %v1611 = vrot.slane %v1610, 1
    %v1612 = vadd.f32 %v1610, %v1611
    %v1613 = vrot.slane %v1594, 4
    %v1614 = vadd.f32 %v1594, %v1613
    %v1615 = vrot.slane %v1614, 2
    %v1616 = vadd.f32 %v1614, %v1615
    %v1617 = vrot.slane %v1616, 1
    %v1618 = vadd.f32 %v1616, %v1617
    %v1619 = vrot.slane %v1596, 4
    %v1620 = vadd.f32 %v1596, %v1619
    %v1621 = vrot.slane %v1620, 2
    %v1622 = vadd.f32 %v1620, %v1621
    %v1623 = vrot.slane %v1622, 1
    %v1624 = vadd.f32 %v1622, %v1623
    %v1625 = vrot.slane %v1598, 4
    %v1626 = vadd.f32 %v1598, %v1625
    %v1627 = vrot.slane %v1626, 2
    %v1628 = vadd.f32 %v1626, %v1627
    %v1629 = vrot.slane %v1628, 1
    %v1630 = vadd.f32 %v1628, %v1629
    %v1631 = vrot.slane %v1600, 4
    %v1632 = vadd.f32 %v1600, %v1631
    %v1633 = vrot.slane %v1632, 2
    %v1634 = vadd.f32 %v1632, %v1633
    %v1635 = vrot.slane %v1634, 1
    %v1636 = vadd.f32 %v1634, %v1635
    %v1637 = vrot.slane %v1602, 4
    %v1638 = vadd.f32 %v1602, %v1637
    %v1639 = vrot.slane %v1638, 2
    %v1640 = vadd.f32 %v1638, %v1639
    %v1641 = vrot.slane %v1640, 1
    %v1642 = vadd.f32 %v1640, %v1641
    %v1643 = vrot.slane %v1604, 4
    %v1644 = vadd.f32 %v1604, %v1643
    %v1645 = vrot.slane %v1644, 2
    %v1646 = vadd.f32 %v1644, %v1645
    %v1647 = vrot.slane %v1646, 1
    %v1648 = vadd.f32 %v1646, %v1647
    %v1649 = vrot.slane %v1606, 4
    %v1650 = vadd.f32 %v1606, %v1649
    %v1651 = vrot.slane %v1650, 2
    %v1652 = vadd.f32 %v1650, %v1651
    %v1653 = vrot.slane %v1652, 1
    %v1654 = vadd.f32 %v1652, %v1653
    %v1655 = vlog2.pop %v1612
    %v1656 = vmul.f32 %v1655, 0.6931472
    %v1657 = vlog2.pop %v1618
    %v1658 = vmul.f32 %v1657, 0.6931472
    %v1659 = vlog2.pop %v1624
    %v1660 = vmul.f32 %v1659, 0.6931472
    %v1661 = vlog2.pop %v1630
    %v1662 = vmul.f32 %v1661, 0.6931472
    %v1663 = vlog2.pop %v1636
    %v1664 = vmul.f32 %v1663, 0.6931472
    %v1665 = vlog2.pop %v1642
    %v1666 = vmul.f32 %v1665, 0.6931472
    %v1667 = vlog2.pop %v1648
    %v1668 = vmul.f32 %v1667, 0.6931472
    %v1669 = vlog2.pop %v1654
    %v1670 = vmul.f32 %v1669, 0.6931472
    %v1671 = vadd.f32 %v1540, %v1656
    %v1672 = vadd.f32 %v1546, %v1658
    %v1673 = vadd.f32 %v1552, %v1660
    %v1674 = vadd.f32 %v1558, %v1662
    %v1675 = vadd.f32 %v1564, %v1664
    %v1676 = vadd.f32 %v1570, %v1666
    %v1677 = vadd.f32 %v1576, %v1668
    %v1678 = vadd.f32 %v1582, %v1670
    %v1679 = vsub.f32 %v1527, %v1671
    %v1680 = vsub.f32 %v1528, %v1672
    %v1681 = vsub.f32 %v1529, %v1673
    %v1682 = vsub.f32 %v1530, %v1674
    %v1683 = vsub.f32 %v1531, %v1675
    %v1684 = vsub.f32 %v1532, %v1676
    %v1685 = vsub.f32 %v1533, %v1677
    %v1686 = vsub.f32 %v1534, %v1678
    %v1687 = vmax.f32 %v1679, %v1683
    %v1688 = vmax.f32 %v1680, %v1684
    %v1689 = vmax.f32 %v1681, %v1685
    %v1690 = vmax.f32 %v1682, %v1686
    %v1691 = vmax.f32 %v1687, %v1688
    %v1692 = vmax.f32 %v1689, %v1690
    %v1693 = vmax.f32 %v1691, %v1692
    %v1694 = vsub.f32 %v1679, %v1693
    %v1695 = vsub.f32 %v1680, %v1693
    %v1696 = vsub.f32 %v1681, %v1693
    %v1697 = vsub.f32 %v1682, %v1693
    %v1698 = vsub.f32 %v1683, %v1693
    %v1699 = vsub.f32 %v1684, %v1693
    %v1700 = vsub.f32 %v1685, %v1693
    %v1701 = vsub.f32 %v1686, %v1693
    %v1702 = vmul.f32 %v1694, 1.442695
    %v1703 = vpow.pop %v1702
    %v1704 = vmul.f32 %v1695, 1.442695
    %v1705 = vpow.pop %v1704
    %v1706 = vmul.f32 %v1696, 1.442695
    %v1707 = vpow.pop %v1706
    %v1708 = vmul.f32 %v1697, 1.442695
    %v1709 = vpow.pop %v1708
    %v1710 = vmul.f32 %v1698, 1.442695
    %v1711 = vpow.pop %v1710
    %v1712 = vmul.f32 %v1699, 1.442695
    %v1713 = vpow.pop %v1712
    %v1714 = vmul.f32 %v1700, 1.442695
    %v1715 = vpow.pop %v1714
    %v1716 = vmul.f32 %v1701, 1.442695
    %v1717 = vpow.pop %v1716
    %v1718 = vadd.f32 %v1703, %v1705
    %v1719 = vadd.f32 %v1718, %v1707
    %v1720 = vadd.f32 %v1719, %v1709
    %v1721 = vadd.f32 %v1720, %v1711
    %v1722 = vadd.f32 %v1721, %v1713
    %v1723 = vadd.f32 %v1722, %v1715
    %v1724 = vadd.f32 %v1723, %v1717
    %v1725 = vlog2.pop %v1724
    %v1726 = vmul.f32 %v1725, 0.6931472
    %v1727 = vadd.f32 %v1693, %v1726
    %v1728 = vsub.f32 %v1679, %v1727
    %v1729 = vsub.f32 %v1680, %v1727
    %v1730 = vsub.f32 %v1681, %v1727
    %v1731 = vsub.f32 %v1682, %v1727
    %v1732 = vsub.f32 %v1683, %v1727
    %v1733 = vsub.f32 %v1684, %v1727
    %v1734 = vsub.f32 %v1685, %v1727
    %v1735 = vsub.f32 %v1686, %v1727
    %v1736 = vrot.slane %v1728, 4
    %v1737 = vmax.f32 %v1728, %v1736
    %v1738 = vrot.slane %v1737, 2
    %v1739 = vmax.f32 %v1737, %v1738
    %v1740 = vrot.slane %v1739, 1
    %v1741 = vmax.f32 %v1739, %v1740
    %v1742 = vrot.slane %v1729, 4
    %v1743 = vmax.f32 %v1729, %v1742
    %v1744 = vrot.slane %v1743, 2
    %v1745 = vmax.f32 %v1743, %v1744
    %v1746 = vrot.slane %v1745, 1
    %v1747 = vmax.f32 %v1745, %v1746
    %v1748 = vrot.slane %v1730, 4
    %v1749 = vmax.f32 %v1730, %v1748
    %v1750 = vrot.slane %v1749, 2
    %v1751 = vmax.f32 %v1749, %v1750
    %v1752 = vrot.slane %v1751, 1
    %v1753 = vmax.f32 %v1751, %v1752
    %v1754 = vrot.slane %v1731, 4
    %v1755 = vmax.f32 %v1731, %v1754
    %v1756 = vrot.slane %v1755, 2
    %v1757 = vmax.f32 %v1755, %v1756
    %v1758 = vrot.slane %v1757, 1
    %v1759 = vmax.f32 %v1757, %v1758
    %v1760 = vrot.slane %v1732, 4
    %v1761 = vmax.f32 %v1732, %v1760
    %v1762 = vrot.slane %v1761, 2
    %v1763 = vmax.f32 %v1761, %v1762
    %v1764 = vrot.slane %v1763, 1
    %v1765 = vmax.f32 %v1763, %v1764
    %v1766 = vrot.slane %v1733, 4
    %v1767 = vmax.f32 %v1733, %v1766
    %v1768 = vrot.slane %v1767, 2
    %v1769 = vmax.f32 %v1767, %v1768
    %v1770 = vrot.slane %v1769, 1
    %v1771 = vmax.f32 %v1769, %v1770
    %v1772 = vrot.slane %v1734, 4
    %v1773 = vmax.f32 %v1734, %v1772
    %v1774 = vrot.slane %v1773, 2
    %v1775 = vmax.f32 %v1773, %v1774
    %v1776 = vrot.slane %v1775, 1
    %v1777 = vmax.f32 %v1775, %v1776
    %v1778 = vrot.slane %v1735, 4
    %v1779 = vmax.f32 %v1735, %v1778
    %v1780 = vrot.slane %v1779, 2
    %v1781 = vmax.f32 %v1779, %v1780
    %v1782 = vrot.slane %v1781, 1
    %v1783 = vmax.f32 %v1781, %v1782
    %v1784 = vsub.f32 %v1728, %v1741
    %v1785 = vsub.f32 %v1729, %v1747
    %v1786 = vsub.f32 %v1730, %v1753
    %v1787 = vsub.f32 %v1731, %v1759
    %v1788 = vsub.f32 %v1732, %v1765
    %v1789 = vsub.f32 %v1733, %v1771
    %v1790 = vsub.f32 %v1734, %v1777
    %v1791 = vsub.f32 %v1735, %v1783
    %v1792 = vmul.f32 %v1784, 1.442695
    %v1793 = vpow.pop %v1792
    %v1794 = vmul.f32 %v1785, 1.442695
    %v1795 = vpow.pop %v1794
    %v1796 = vmul.f32 %v1786, 1.442695
    %v1797 = vpow.pop %v1796
    %v1798 = vmul.f32 %v1787, 1.442695
    %v1799 = vpow.pop %v1798
    %v1800 = vmul.f32 %v1788, 1.442695
    %v1801 = vpow.pop %v1800
    %v1802 = vmul.f32 %v1789, 1.442695
    %v1803 = vpow.pop %v1802
    %v1804 = vmul.f32 %v1790, 1.442695
    %v1805 = vpow.pop %v1804
    %v1806 = vmul.f32 %v1791, 1.442695
    %v1807 = vpow.pop %v1806
    %v1808 = vrot.slane %v1793, 4
    %v1809 = vadd.f32 %v1793, %v1808
    %v1810 = vrot.slane %v1809, 2
    %v1811 = vadd.f32 %v1809, %v1810
    %v1812 = vrot.slane %v1811, 1
    %v1813 = vadd.f32 %v1811, %v1812
    %v1814 = vrot.slane %v1795, 4
    %v1815 = vadd.f32 %v1795, %v1814
    %v1816 = vrot.slane %v1815, 2
    %v1817 = vadd.f32 %v1815, %v1816
    %v1818 = vrot.slane %v1817, 1
    %v1819 = vadd.f32 %v1817, %v1818
    %v1820 = vrot.slane %v1797, 4
    %v1821 = vadd.f32 %v1797, %v1820
    %v1822 = vrot.slane %v1821, 2
    %v1823 = vadd.f32 %v1821, %v1822
    %v1824 = vrot.slane %v1823, 1
    %v1825 = vadd.f32 %v1823, %v1824
    %v1826 = vrot.slane %v1799, 4
    %v1827 = vadd.f32 %v1799, %v1826
    %v1828 = vrot.slane %v1827, 2
    %v1829 = vadd.f32 %v1827, %v1828
    %v1830 = vrot.slane %v1829, 1
    %v1831 = vadd.f32 %v1829, %v1830
    %v1832 = vrot.slane %v1801, 4
    %v1833 = vadd.f32 %v1801, %v1832
    %v1834 = vrot.slane %v1833, 2
    %v1835 = vadd.f32 %v1833, %v1834
    %v1836 = vrot.slane %v1835, 1
    %v1837 = vadd.f32 %v1835, %v1836
    %v1838 = vrot.slane %v1803, 4
    %v1839 = vadd.f32 %v1803, %v1838
    %v1840 = vrot.slane %v1839, 2
    %v1841 = vadd.f32 %v1839, %v1840
    %v1842 = vrot.slane %v1841, 1
    %v1843 = vadd.f32 %v1841, %v1842
    %v1844 = vrot.slane %v1805, 4
    %v1845 = vadd.f32 %v1805, %v1844
    %v1846 = vrot.slane %v1845, 2
    %v1847 = vadd.f32 %v1845, %v1846
    %v1848 = vrot.slane %v1847, 1
    %v1849 = vadd.f32 %v1847, %v1848
    %v1850 = vrot.slane %v1807, 4
    %v1851 = vadd.f32 %v1807, %v1850
    %v1852 = vrot.slane %v1851, 2
    %v1853 = vadd.f32 %v1851, %v1852
    %v1854 = vrot.slane %v1853, 1
    %v1855 = vadd.f32 %v1853, %v1854
    %v1856 = vlog2.pop %v1813
    %v1857 = vmul.f32 %v1856, 0.6931472
    %v1858 = vlog2.pop %v1819
    %v1859 = vmul.f32 %v1858, 0.6931472
    %v1860 = vlog2.pop %v1825
    %v1861 = vmul.f32 %v1860, 0.6931472
    %v1862 = vlog2.pop %v1831
    %v1863 = vmul.f32 %v1862, 0.6931472
    %v1864 = vlog2.pop %v1837
    %v1865 = vmul.f32 %v1864, 0.6931472
    %v1866 = vlog2.pop %v1843
    %v1867 = vmul.f32 %v1866, 0.6931472
    %v1868 = vlog2.pop %v1849
    %v1869 = vmul.f32 %v1868, 0.6931472
    %v1870 = vlog2.pop %v1855
    %v1871 = vmul.f32 %v1870, 0.6931472
    %v1872 = vadd.f32 %v1741, %v1857
    %v1873 = vadd.f32 %v1747, %v1859
    %v1874 = vadd.f32 %v1753, %v1861
    %v1875 = vadd.f32 %v1759, %v1863
    %v1876 = vadd.f32 %v1765, %v1865
    %v1877 = vadd.f32 %v1771, %v1867
    %v1878 = vadd.f32 %v1777, %v1869
    %v1879 = vadd.f32 %v1783, %v1871
    %v1880 = vsub.f32 %v1728, %v1872
    %v1881 = vsub.f32 %v1729, %v1873
    %v1882 = vsub.f32 %v1730, %v1874
    %v1883 = vsub.f32 %v1731, %v1875
    %v1884 = vsub.f32 %v1732, %v1876
    %v1885 = vsub.f32 %v1733, %v1877
    %v1886 = vsub.f32 %v1734, %v1878
    %v1887 = vsub.f32 %v1735, %v1879
    %v1888 = vmax.f32 %v1880, %v1884
    %v1889 = vmax.f32 %v1881, %v1885
    %v1890 = vmax.f32 %v1882, %v1886
    %v1891 = vmax.f32 %v1883, %v1887
    %v1892 = vmax.f32 %v1888, %v1889
    %v1893 = vmax.f32 %v1890, %v1891
    %v1894 = vmax.f32 %v1892, %v1893
    %v1895 = vsub.f32 %v1880, %v1894
    %v1896 = vsub.f32 %v1881, %v1894
    %v1897 = vsub.f32 %v1882, %v1894
    %v1898 = vsub.f32 %v1883, %v1894
    %v1899 = vsub.f32 %v1884, %v1894
    %v1900 = vsub.f32 %v1885, %v1894
    %v1901 = vsub.f32 %v1886, %v1894
    %v1902 = vsub.f32 %v1887, %v1894
    %v1903 = vmul.f32 %v1895, 1.442695
    %v1904 = vpow.pop %v1903
    %v1905 = vmul.f32 %v1896, 1.442695
    %v1906 = vpow.pop %v1905
    %v1907 = vmul.f32 %v1897, 1.442695
    %v1908 = vpow.pop %v1907
    %v1909 = vmul.f32 %v1898, 1.442695
    %v1910 = vpow.pop %v1909
    %v1911 = vmul.f32 %v1899, 1.442695
    %v1912 = vpow.pop %v1911
    %v1913 = vmul.f32 %v1900, 1.442695
    %v1914 = vpow.pop %v1913
    %v1915 = vmul.f32 %v1901, 1.442695
    %v1916 = vpow.pop %v1915
    %v1917 = vmul.f32 %v1902, 1.442695
    %v1918 = vpow.pop %v1917
    %v1919 = vadd.f32 %v1904, %v1906
    %v1920 = vadd.f32 %v1919, %v1908
    %v1921 = vadd.f32 %v1920, %v1910
    %v1922 = vadd.f32 %v1921, %v1912
    %v1923 = vadd.f32 %v1922, %v1914
    %v1924 = vadd.f32 %v1923, %v1916
    %v1925 = vadd.f32 %v1924, %v1918
    %v1926 = vlog2.pop %v1925
    %v1927 = vmul.f32 %v1926, 0.6931472
    %v1928 = vadd.f32 %v1894, %v1927
    %v1929 = vsub.f32 %v1880, %v1928
    %v1930 = vsub.f32 %v1881, %v1928
    %v1931 = vsub.f32 %v1882, %v1928
    %v1932 = vsub.f32 %v1883, %v1928
    %v1933 = vsub.f32 %v1884, %v1928
    %v1934 = vsub.f32 %v1885, %v1928
    %v1935 = vsub.f32 %v1886, %v1928
    %v1936 = vsub.f32 %v1887, %v1928
    %v1937 = vrot.slane %v1929, 4
    %v1938 = vmax.f32 %v1929, %v1937
    %v1939 = vrot.slane %v1938, 2
    %v1940 = vmax.f32 %v1938, %v1939
    %v1941 = vrot.slane %v1940, 1
    %v1942 = vmax.f32 %v1940, %v1941
    %v1943 = vrot.slane %v1930, 4
    %v1944 = vmax.f32 %v1930, %v1943
    %v1945 = vrot.slane %v1944, 2
    %v1946 = vmax.f32 %v1944, %v1945
    %v1947 = vrot.slane %v1946, 1
    %v1948 = vmax.f32 %v1946, %v1947
    %v1949 = vrot.slane %v1931, 4
    %v1950 = vmax.f32 %v1931, %v1949
    %v1951 = vrot.slane %v1950, 2
    %v1952 = vmax.f32 %v1950, %v1951
    %v1953 = vrot.slane %v1952, 1
    %v1954 = vmax.f32 %v1952, %v1953
    %v1955 = vrot.slane %v1932, 4
    %v1956 = vmax.f32 %v1932, %v1955
    %v1957 = vrot.slane %v1956, 2
    %v1958 = vmax.f32 %v1956, %v1957
    %v1959 = vrot.slane %v1958, 1
    %v1960 = vmax.f32 %v1958, %v1959
    %v1961 = vrot.slane %v1933, 4
    %v1962 = vmax.f32 %v1933, %v1961
    %v1963 = vrot.slane %v1962, 2
    %v1964 = vmax.f32 %v1962, %v1963
    %v1965 = vrot.slane %v1964, 1
    %v1966 = vmax.f32 %v1964, %v1965
    %v1967 = vrot.slane %v1934, 4
    %v1968 = vmax.f32 %v1934, %v1967
    %v1969 = vrot.slane %v1968, 2
    %v1970 = vmax.f32 %v1968, %v1969
    %v1971 = vrot.slane %v1970, 1
    %v1972 = vmax.f32 %v1970, %v1971
    %v1973 = vrot.slane %v1935, 4
    %v1974 = vmax.f32 %v1935, %v1973
    %v1975 = vrot.slane %v1974, 2
    %v1976 = vmax.f32 %v1974, %v1975
    %v1977 = vrot.slane %v1976, 1
    %v1978 = vmax.f32 %v1976, %v1977
    %v1979 = vrot.slane %v1936, 4
    %v1980 = vmax.f32 %v1936, %v1979
    %v1981 = vrot.slane %v1980, 2
    %v1982 = vmax.f32 %v1980, %v1981
    %v1983 = vrot.slane %v1982, 1
    %v1984 = vmax.f32 %v1982, %v1983
    %v1985 = vsub.f32 %v1929, %v1942
    %v1986 = vsub.f32 %v1930, %v1948
    %v1987 = vsub.f32 %v1931, %v1954
    %v1988 = vsub.f32 %v1932, %v1960
    %v1989 = vsub.f32 %v1933, %v1966
    %v1990 = vsub.f32 %v1934, %v1972
    %v1991 = vsub.f32 %v1935, %v1978
    %v1992 = vsub.f32 %v1936, %v1984
    %v1993 = vmul.f32 %v1985, 1.442695
    %v1994 = vpow.pop %v1993
    %v1995 = vmul.f32 %v1986, 1.442695
    %v1996 = vpow.pop %v1995
    %v1997 = vmul.f32 %v1987, 1.442695
    %v1998 = vpow.pop %v1997
    %v1999 = vmul.f32 %v1988, 1.442695
    %v2000 = vpow.pop %v1999
    %v2001 = vmul.f32 %v1989, 1.442695
    %v2002 = vpow.pop %v2001
    %v2003 = vmul.f32 %v1990, 1.442695
    %v2004 = vpow.pop %v2003
    %v2005 = vmul.f32 %v1991, 1.442695
    %v2006 = vpow.pop %v2005
    %v2007 = vmul.f32 %v1992, 1.442695
    %v2008 = vpow.pop %v2007
    %v2009 = vrot.slane %v1994, 4
    %v2010 = vadd.f32 %v1994, %v2009
    %v2011 = vrot.slane %v2010, 2
    %v2012 = vadd.f32 %v2010, %v2011
    %v2013 = vrot.slane %v2012, 1
    %v2014 = vadd.f32 %v2012, %v2013
    %v2015 = vrot.slane %v1996, 4
    %v2016 = vadd.f32 %v1996, %v2015
    %v2017 = vrot.slane %v2016, 2
    %v2018 = vadd.f32 %v2016, %v2017
    %v2019 = vrot.slane %v2018, 1
    %v2020 = vadd.f32 %v2018, %v2019
    %v2021 = vrot.slane %v1998, 4
    %v2022 = vadd.f32 %v1998, %v2021
    %v2023 = vrot.slane %v2022, 2
    %v2024 = vadd.f32 %v2022, %v2023
    %v2025 = vrot.slane %v2024, 1
    %v2026 = vadd.f32 %v2024, %v2025
    %v2027 = vrot.slane %v2000, 4
    %v2028 = vadd.f32 %v2000, %v2027
    %v2029 = vrot.slane %v2028, 2
    %v2030 = vadd.f32 %v2028, %v2029
    %v2031 = vrot.slane %v2030, 1
    %v2032 = vadd.f32 %v2030, %v2031
    %v2033 = vrot.slane %v2002, 4
    %v2034 = vadd.f32 %v2002, %v2033
    %v2035 = vrot.slane %v2034, 2
    %v2036 = vadd.f32 %v2034, %v2035
    %v2037 = vrot.slane %v2036, 1
    %v2038 = vadd.f32 %v2036, %v2037
    %v2039 = vrot.slane %v2004, 4
    %v2040 = vadd.f32 %v2004, %v2039
    %v2041 = vrot.slane %v2040, 2
    %v2042 = vadd.f32 %v2040, %v2041
    %v2043 = vrot.slane %v2042, 1
    %v2044 = vadd.f32 %v2042, %v2043
    %v2045 = vrot.slane %v2006, 4
    %v2046 = vadd.f32 %v2006, %v2045
    %v2047 = vrot.slane %v2046, 2
    %v2048 = vadd.f32 %v2046, %v2047
    %v2049 = vrot.slane %v2048, 1
    %v2050 = vadd.f32 %v2048, %v2049
    %v2051 = vrot.slane %v2008, 4
    %v2052 = vadd.f32 %v2008, %v2051
    %v2053 = vrot.slane %v2052, 2
    %v2054 = vadd.f32 %v2052, %v2053
    %v2055 = vrot.slane %v2054, 1
    %v2056 = vadd.f32 %v2054, %v2055
    %v2057 = vlog2.pop %v2014
    %v2058 = vmul.f32 %v2057, 0.6931472
    %v2059 = vlog2.pop %v2020
    %v2060 = vmul.f32 %v2059, 0.6931472
    %v2061 = vlog2.pop %v2026
    %v2062 = vmul.f32 %v2061, 0.6931472
    %v2063 = vlog2.pop %v2032
    %v2064 = vmul.f32 %v2063, 0.6931472
    %v2065 = vlog2.pop %v2038
    %v2066 = vmul.f32 %v2065, 0.6931472
    %v2067 = vlog2.pop %v2044
    %v2068 = vmul.f32 %v2067, 0.6931472
    %v2069 = vlog2.pop %v2050
    %v2070 = vmul.f32 %v2069, 0.6931472
    %v2071 = vlog2.pop %v2056
    %v2072 = vmul.f32 %v2071, 0.6931472
    %v2073 = vadd.f32 %v1942, %v2058
    %v2074 = vadd.f32 %v1948, %v2060
    %v2075 = vadd.f32 %v1954, %v2062
    %v2076 = vadd.f32 %v1960, %v2064
    %v2077 = vadd.f32 %v1966, %v2066
    %v2078 = vadd.f32 %v1972, %v2068
    %v2079 = vadd.f32 %v1978, %v2070
    %v2080 = vadd.f32 %v1984, %v2072
    %v2081 = vsub.f32 %v1929, %v2073
    %v2082 = vsub.f32 %v1930, %v2074
    %v2083 = vsub.f32 %v1931, %v2075
    %v2084 = vsub.f32 %v1932, %v2076
    %v2085 = vsub.f32 %v1933, %v2077
    %v2086 = vsub.f32 %v1934, %v2078
    %v2087 = vsub.f32 %v1935, %v2079
    %v2088 = vsub.f32 %v1936, %v2080
    %v2089 = vmax.f32 %v2081, %v2085
    %v2090 = vmax.f32 %v2082, %v2086
    %v2091 = vmax.f32 %v2083, %v2087
    %v2092 = vmax.f32 %v2084, %v2088
    %v2093 = vmax.f32 %v2089, %v2090
    %v2094 = vmax.f32 %v2091, %v2092
    %v2095 = vmax.f32 %v2093, %v2094
    %v2096 = vsub.f32 %v2081, %v2095
    %v2097 = vsub.f32 %v2082, %v2095
    %v2098 = vsub.f32 %v2083, %v2095
    %v2099 = vsub.f32 %v2084, %v2095
    %v2100 = vsub.f32 %v2085, %v2095
    %v2101 = vsub.f32 %v2086, %v2095
    %v2102 = vsub.f32 %v2087, %v2095
    %v2103 = vsub.f32 %v2088, %v2095
    %v2104 = vmul.f32 %v2096, 1.442695
    %v2105 = vpow.pop %v2104
    %v2106 = vmul.f32 %v2097, 1.442695
    %v2107 = vpow.pop %v2106
    %v2108 = vmul.f32 %v2098, 1.442695
    %v2109 = vpow.pop %v2108
    %v2110 = vmul.f32 %v2099, 1.442695
    %v2111 = vpow.pop %v2110
    %v2112 = vmul.f32 %v2100, 1.442695
    %v2113 = vpow.pop %v2112
    %v2114 = vmul.f32 %v2101, 1.442695
    %v2115 = vpow.pop %v2114
    %v2116 = vmul.f32 %v2102, 1.442695
    %v2117 = vpow.pop %v2116
    %v2118 = vmul.f32 %v2103, 1.442695
    %v2119 = vpow.pop %v2118
    %v2120 = vadd.f32 %v2105, %v2107
    %v2121 = vadd.f32 %v2120, %v2109
    %v2122 = vadd.f32 %v2121, %v2111
    %v2123 = vadd.f32 %v2122, %v2113
    %v2124 = vadd.f32 %v2123, %v2115
    %v2125 = vadd.f32 %v2124, %v2117
    %v2126 = vadd.f32 %v2125, %v2119
    %v2127 = vlog2.pop %v2126
    %v2128 = vmul.f32 %v2127, 0.6931472
    %v2129 = vadd.f32 %v2095, %v2128
    %v2130 = vsub.f32 %v2081, %v2129
    %v2131 = vsub.f32 %v2082, %v2129
    %v2132 = vsub.f32 %v2083, %v2129
    %v2133 = vsub.f32 %v2084, %v2129
    %v2134 = vsub.f32 %v2085, %v2129
    %v2135 = vsub.f32 %v2086, %v2129
    %v2136 = vsub.f32 %v2087, %v2129
    %v2137 = vsub.f32 %v2088, %v2129
    %v2138 = vrot.slane %v2130, 4
    %v2139 = vmax.f32 %v2130, %v2138
    %v2140 = vrot.slane %v2139, 2
    %v2141 = vmax.f32 %v2139, %v2140
    %v2142 = vrot.slane %v2141, 1
    %v2143 = vmax.f32 %v2141, %v2142
    %v2144 = vrot.slane %v2131, 4
    %v2145 = vmax.f32 %v2131, %v2144
    %v2146 = vrot.slane %v2145, 2
    %v2147 = vmax.f32 %v2145, %v2146
    %v2148 = vrot.slane %v2147, 1
    %v2149 = vmax.f32 %v2147, %v2148
    %v2150 = vrot.slane %v2132, 4
    %v2151 = vmax.f32 %v2132, %v2150
    %v2152 = vrot.slane %v2151, 2
    %v2153 = vmax.f32 %v2151, %v2152
    %v2154 = vrot.slane %v2153, 1
    %v2155 = vmax.f32 %v2153, %v2154
    %v2156 = vrot.slane %v2133, 4
    %v2157 = vmax.f32 %v2133, %v2156
    %v2158 = vrot.slane %v2157, 2
    %v2159 = vmax.f32 %v2157, %v2158
    %v2160 = vrot.slane %v2159, 1
    %v2161 = vmax.f32 %v2159, %v2160
    %v2162 = vrot.slane %v2134, 4
    %v2163 = vmax.f32 %v2134, %v2162
    %v2164 = vrot.slane %v2163, 2
    %v2165 = vmax.f32 %v2163, %v2164
    %v2166 = vrot.slane %v2165, 1
    %v2167 = vmax.f32 %v2165, %v2166
    %v2168 = vrot.slane %v2135, 4
    %v2169 = vmax.f32 %v2135, %v2168
    %v2170 = vrot.slane %v2169, 2
    %v2171 = vmax.f32 %v2169, %v2170
    %v2172 = vrot.slane %v2171, 1
    %v2173 = vmax.f32 %v2171, %v2172
    %v2174 = vrot.slane %v2136, 4
    %v2175 = vmax.f32 %v2136, %v2174
    %v2176 = vrot.slane %v2175, 2
    %v2177 = vmax.f32 %v2175, %v2176
    %v2178 = vrot.slane %v2177, 1
    %v2179 = vmax.f32 %v2177, %v2178
    %v2180 = vrot.slane %v2137, 4
    %v2181 = vmax.f32 %v2137, %v2180
    %v2182 = vrot.slane %v2181, 2
    %v2183 = vmax.f32 %v2181, %v2182
    %v2184 = vrot.slane %v2183, 1
    %v2185 = vmax.f32 %v2183, %v2184
    %v2186 = vsub.f32 %v2130, %v2143
    %v2187 = vsub.f32 %v2131, %v2149
    %v2188 = vsub.f32 %v2132, %v2155
    %v2189 = vsub.f32 %v2133, %v2161
    %v2190 = vsub.f32 %v2134, %v2167
    %v2191 = vsub.f32 %v2135, %v2173
    %v2192 = vsub.f32 %v2136, %v2179
    %v2193 = vsub.f32 %v2137, %v2185
    %v2194 = vmul.f32 %v2186, 1.442695
    %v2195 = vpow.pop %v2194
    %v2196 = vmul.f32 %v2187, 1.442695
    %v2197 = vpow.pop %v2196
    %v2198 = vmul.f32 %v2188, 1.442695
    %v2199 = vpow.pop %v2198
    %v2200 = vmul.f32 %v2189, 1.442695
    %v2201 = vpow.pop %v2200
    %v2202 = vmul.f32 %v2190, 1.442695
    %v2203 = vpow.pop %v2202
    %v2204 = vmul.f32 %v2191, 1.442695
    %v2205 = vpow.pop %v2204
    %v2206 = vmul.f32 %v2192, 1.442695
    %v2207 = vpow.pop %v2206
    %v2208 = vmul.f32 %v2193, 1.442695
    %v2209 = vpow.pop %v2208
    %v2210 = vrot.slane %v2195, 4
    %v2211 = vadd.f32 %v2195, %v2210
    %v2212 = vrot.slane %v2211, 2
    %v2213 = vadd.f32 %v2211, %v2212
    %v2214 = vrot.slane %v2213, 1
    %v2215 = vadd.f32 %v2213, %v2214
    %v2216 = vrot.slane %v2197, 4
    %v2217 = vadd.f32 %v2197, %v2216
    %v2218 = vrot.slane %v2217, 2
    %v2219 = vadd.f32 %v2217, %v2218
    %v2220 = vrot.slane %v2219, 1
    %v2221 = vadd.f32 %v2219, %v2220
    %v2222 = vrot.slane %v2199, 4
    %v2223 = vadd.f32 %v2199, %v2222
    %v2224 = vrot.slane %v2223, 2
    %v2225 = vadd.f32 %v2223, %v2224
    %v2226 = vrot.slane %v2225, 1
    %v2227 = vadd.f32 %v2225, %v2226
    %v2228 = vrot.slane %v2201, 4
    %v2229 = vadd.f32 %v2201, %v2228
    %v2230 = vrot.slane %v2229, 2
    %v2231 = vadd.f32 %v2229, %v2230
    %v2232 = vrot.slane %v2231, 1
    %v2233 = vadd.f32 %v2231, %v2232
    %v2234 = vrot.slane %v2203, 4
    %v2235 = vadd.f32 %v2203, %v2234
    %v2236 = vrot.slane %v2235, 2
    %v2237 = vadd.f32 %v2235, %v2236
    %v2238 = vrot.slane %v2237, 1
    %v2239 = vadd.f32 %v2237, %v2238
    %v2240 = vrot.slane %v2205, 4
    %v2241 = vadd.f32 %v2205, %v2240
    %v2242 = vrot.slane %v2241, 2
    %v2243 = vadd.f32 %v2241, %v2242
    %v2244 = vrot.slane %v2243, 1
    %v2245 = vadd.f32 %v2243, %v2244
    %v2246 = vrot.slane %v2207, 4
    %v2247 = vadd.f32 %v2207, %v2246
    %v2248 = vrot.slane %v2247, 2
    %v2249 = vadd.f32 %v2247, %v2248
    %v2250 = vrot.slane %v2249, 1
    %v2251 = vadd.f32 %v2249, %v2250
    %v2252 = vrot.slane %v2209, 4
    %v2253 = vadd.f32 %v2209, %v2252
    %v2254 = vrot.slane %v2253, 2
    %v2255 = vadd.f32 %v2253, %v2254
    %v2256 = vrot.slane %v2255, 1
    %v2257 = vadd.f32 %v2255, %v2256
    %v2258 = vlog2.pop %v2215
    %v2259 = vmul.f32 %v2258, 0.6931472
    %v2260 = vlog2.pop %v2221
    %v2261 = vmul.f32 %v2260, 0.6931472
    %v2262 = vlog2.pop %v2227
    %v2263 = vmul.f32 %v2262, 0.6931472
    %v2264 = vlog2.pop %v2233
    %v2265 = vmul.f32 %v2264, 0.6931472
    %v2266 = vlog2.pop %v2239
    %v2267 = vmul.f32 %v2266, 0.6931472
    %v2268 = vlog2.pop %v2245
    %v2269 = vmul.f32 %v2268, 0.6931472
    %v2270 = vlog2.pop %v2251
    %v2271 = vmul.f32 %v2270, 0.6931472
    %v2272 = vlog2.pop %v2257
    %v2273 = vmul.f32 %v2272, 0.6931472
    %v2274 = vadd.f32 %v2143, %v2259
    %v2275 = vadd.f32 %v2149, %v2261
    %v2276 = vadd.f32 %v2155, %v2263
    %v2277 = vadd.f32 %v2161, %v2265
    %v2278 = vadd.f32 %v2167, %v2267
    %v2279 = vadd.f32 %v2173, %v2269
    %v2280 = vadd.f32 %v2179, %v2271
    %v2281 = vadd.f32 %v2185, %v2273
    %v2282 = vsub.f32 %v2130, %v2274
    %v2283 = vsub.f32 %v2131, %v2275
    %v2284 = vsub.f32 %v2132, %v2276
    %v2285 = vsub.f32 %v2133, %v2277
    %v2286 = vsub.f32 %v2134, %v2278
    %v2287 = vsub.f32 %v2135, %v2279
    %v2288 = vsub.f32 %v2136, %v2280
    %v2289 = vsub.f32 %v2137, %v2281
    %v2290 = vmax.f32 %v2282, %v2286
    %v2291 = vmax.f32 %v2283, %v2287
    %v2292 = vmax.f32 %v2284, %v2288
    %v2293 = vmax.f32 %v2285, %v2289
    %v2294 = vmax.f32 %v2290, %v2291
    %v2295 = vmax.f32 %v2292, %v2293
    %v2296 = vmax.f32 %v2294, %v2295
    %v2297 = vsub.f32 %v2282, %v2296
    %v2298 = vsub.f32 %v2283, %v2296
    %v2299 = vsub.f32 %v2284, %v2296
    %v2300 = vsub.f32 %v2285, %v2296
    %v2301 = vsub.f32 %v2286, %v2296
    %v2302 = vsub.f32 %v2287, %v2296
    %v2303 = vsub.f32 %v2288, %v2296
    %v2304 = vsub.f32 %v2289, %v2296
    %v2305 = vmul.f32 %v2297, 1.442695
    %v2306 = vpow.pop %v2305
    %v2307 = vmul.f32 %v2298, 1.442695
    %v2308 = vpow.pop %v2307
    %v2309 = vmul.f32 %v2299, 1.442695
    %v2310 = vpow.pop %v2309
    %v2311 = vmul.f32 %v2300, 1.442695
    %v2312 = vpow.pop %v2311
    %v2313 = vmul.f32 %v2301, 1.442695
    %v2314 = vpow.pop %v2313
    %v2315 = vmul.f32 %v2302, 1.442695
    %v2316 = vpow.pop %v2315
    %v2317 = vmul.f32 %v2303, 1.442695
    %v2318 = vpow.pop %v2317
    %v2319 = vmul.f32 %v2304, 1.442695
    %v2320 = vpow.pop %v2319
    %v2321 = vadd.f32 %v2306, %v2308
    %v2322 = vadd.f32 %v2321, %v2310
    %v2323 = vadd.f32 %v2322, %v2312
    %v2324 = vadd.f32 %v2323, %v2314
    %v2325 = vadd.f32 %v2324, %v2316
    %v2326 = vadd.f32 %v2325, %v2318
    %v2327 = vadd.f32 %v2326, %v2320
    %v2328 = vlog2.pop %v2327
    %v2329 = vmul.f32 %v2328, 0.6931472
    %v2330 = vadd.f32 %v2296, %v2329
    %v2331 = vsub.f32 %v2282, %v2330
    %v2332 = vsub.f32 %v2283, %v2330
    %v2333 = vsub.f32 %v2284, %v2330
    %v2334 = vsub.f32 %v2285, %v2330
    %v2335 = vsub.f32 %v2286, %v2330
    %v2336 = vsub.f32 %v2287, %v2330
    %v2337 = vsub.f32 %v2288, %v2330
    %v2338 = vsub.f32 %v2289, %v2330
    %v2339 = vrot.slane %v2331, 4
    %v2340 = vmax.f32 %v2331, %v2339
    %v2341 = vrot.slane %v2340, 2
    %v2342 = vmax.f32 %v2340, %v2341
    %v2343 = vrot.slane %v2342, 1
    %v2344 = vmax.f32 %v2342, %v2343
    %v2345 = vrot.slane %v2332, 4
    %v2346 = vmax.f32 %v2332, %v2345
    %v2347 = vrot.slane %v2346, 2
    %v2348 = vmax.f32 %v2346, %v2347
    %v2349 = vrot.slane %v2348, 1
    %v2350 = vmax.f32 %v2348, %v2349
    %v2351 = vrot.slane %v2333, 4
    %v2352 = vmax.f32 %v2333, %v2351
    %v2353 = vrot.slane %v2352, 2
    %v2354 = vmax.f32 %v2352, %v2353
    %v2355 = vrot.slane %v2354, 1
    %v2356 = vmax.f32 %v2354, %v2355
    %v2357 = vrot.slane %v2334, 4
    %v2358 = vmax.f32 %v2334, %v2357
    %v2359 = vrot.slane %v2358, 2
    %v2360 = vmax.f32 %v2358, %v2359
    %v2361 = vrot.slane %v2360, 1
    %v2362 = vmax.f32 %v2360, %v2361
    %v2363 = vrot.slane %v2335, 4
    %v2364 = vmax.f32 %v2335, %v2363
    %v2365 = vrot.slane %v2364, 2
    %v2366 = vmax.f32 %v2364, %v2365
    %v2367 = vrot.slane %v2366, 1
    %v2368 = vmax.f32 %v2366, %v2367
    %v2369 = vrot.slane %v2336, 4
    %v2370 = vmax.f32 %v2336, %v2369
    %v2371 = vrot.slane %v2370, 2
    %v2372 = vmax.f32 %v2370, %v2371
    %v2373 = vrot.slane %v2372, 1
    %v2374 = vmax.f32 %v2372, %v2373
    %v2375 = vrot.slane %v2337, 4
    %v2376 = vmax.f32 %v2337, %v2375
    %v2377 = vrot.slane %v2376, 2
    %v2378 = vmax.f32 %v2376, %v2377
    %v2379 = vrot.slane %v2378, 1
    %v2380 = vmax.f32 %v2378, %v2379
    %v2381 = vrot.slane %v2338, 4
    %v2382 = vmax.f32 %v2338, %v2381
    %v2383 = vrot.slane %v2382, 2
    %v2384 = vmax.f32 %v2382, %v2383
    %v2385 = vrot.slane %v2384, 1
    %v2386 = vmax.f32 %v2384, %v2385
    %v2387 = vsub.f32 %v2331, %v2344
    %v2388 = vsub.f32 %v2332, %v2350
    %v2389 = vsub.f32 %v2333, %v2356
    %v2390 = vsub.f32 %v2334, %v2362
    %v2391 = vsub.f32 %v2335, %v2368
    %v2392 = vsub.f32 %v2336, %v2374
    %v2393 = vsub.f32 %v2337, %v2380
    %v2394 = vsub.f32 %v2338, %v2386
    %v2395 = vmul.f32 %v2387, 1.442695
    %v2396 = vpow.pop %v2395
    %v2397 = vmul.f32 %v2388, 1.442695
    %v2398 = vpow.pop %v2397
    %v2399 = vmul.f32 %v2389, 1.442695
    %v2400 = vpow.pop %v2399
    %v2401 = vmul.f32 %v2390, 1.442695
    %v2402 = vpow.pop %v2401
    %v2403 = vmul.f32 %v2391, 1.442695
    %v2404 = vpow.pop %v2403
    %v2405 = vmul.f32 %v2392, 1.442695
    %v2406 = vpow.pop %v2405
    %v2407 = vmul.f32 %v2393, 1.442695
    %v2408 = vpow.pop %v2407
    %v2409 = vmul.f32 %v2394, 1.442695
    %v2410 = vpow.pop %v2409
    %v2411 = vrot.slane %v2396, 4
    %v2412 = vadd.f32 %v2396, %v2411
    %v2413 = vrot.slane %v2412, 2
    %v2414 = vadd.f32 %v2412, %v2413
    %v2415 = vrot.slane %v2414, 1
    %v2416 = vadd.f32 %v2414, %v2415
    %v2417 = vrot.slane %v2398, 4
    %v2418 = vadd.f32 %v2398, %v2417
    %v2419 = vrot.slane %v2418, 2
    %v2420 = vadd.f32 %v2418, %v2419
    %v2421 = vrot.slane %v2420, 1
    %v2422 = vadd.f32 %v2420, %v2421
    %v2423 = vrot.slane %v2400, 4
    %v2424 = vadd.f32 %v2400, %v2423
    %v2425 = vrot.slane %v2424, 2
    %v2426 = vadd.f32 %v2424, %v2425
    %v2427 = vrot.slane %v2426, 1
    %v2428 = vadd.f32 %v2426, %v2427
    %v2429 = vrot.slane %v2402, 4
    %v2430 = vadd.f32 %v2402, %v2429
    %v2431 = vrot.slane %v2430, 2
    %v2432 = vadd.f32 %v2430, %v2431
    %v2433 = vrot.slane %v2432, 1
    %v2434 = vadd.f32 %v2432, %v2433
    %v2435 = vrot.slane %v2404, 4
    %v2436 = vadd.f32 %v2404, %v2435
    %v2437 = vrot.slane %v2436, 2
    %v2438 = vadd.f32 %v2436, %v2437
    %v2439 = vrot.slane %v2438, 1
    %v2440 = vadd.f32 %v2438, %v2439
    %v2441 = vrot.slane %v2406, 4
    %v2442 = vadd.f32 %v2406, %v2441
    %v2443 = vrot.slane %v2442, 2
    %v2444 = vadd.f32 %v2442, %v2443
    %v2445 = vrot.slane %v2444, 1
    %v2446 = vadd.f32 %v2444, %v2445
    %v2447 = vrot.slane %v2408, 4
    %v2448 = vadd.f32 %v2408, %v2447
    %v2449 = vrot.slane %v2448, 2
    %v2450 = vadd.f32 %v2448, %v2449
    %v2451 = vrot.slane %v2450, 1
    %v2452 = vadd.f32 %v2450, %v2451
    %v2453 = vrot.slane %v2410, 4
    %v2454 = vadd.f32 %v2410, %v2453
    %v2455 = vrot.slane %v2454, 2
    %v2456 = vadd.f32 %v2454, %v2455
    %v2457 = vrot.slane %v2456, 1
    %v2458 = vadd.f32 %v2456, %v2457
    %v2459 = vlog2.pop %v2416
    %v2460 = vmul.f32 %v2459, 0.6931472
    %v2461 = vlog2.pop %v2422
    %v2462 = vmul.f32 %v2461, 0.6931472
    %v2463 = vlog2.pop %v2428
    %v2464 = vmul.f32 %v2463, 0.6931472
    %v2465 = vlog2.pop %v2434
    %v2466 = vmul.f32 %v2465, 0.6931472
    %v2467 = vlog2.pop %v2440
    %v2468 = vmul.f32 %v2467, 0.6931472
    %v2469 = vlog2.pop %v2446
    %v2470 = vmul.f32 %v2469, 0.6931472
    %v2471 = vlog2.pop %v2452
    %v2472 = vmul.f32 %v2471, 0.6931472
    %v2473 = vlog2.pop %v2458
    %v2474 = vmul.f32 %v2473, 0.6931472
    %v2475 = vadd.f32 %v2344, %v2460
    %v2476 = vadd.f32 %v2350, %v2462
    %v2477 = vadd.f32 %v2356, %v2464
    %v2478 = vadd.f32 %v2362, %v2466
    %v2479 = vadd.f32 %v2368, %v2468
    %v2480 = vadd.f32 %v2374, %v2470
    %v2481 = vadd.f32 %v2380, %v2472
    %v2482 = vadd.f32 %v2386, %v2474
    %v2483 = vsub.f32 %v2331, %v2475
    %v2484 = vsub.f32 %v2332, %v2476
    %v2485 = vsub.f32 %v2333, %v2477
    %v2486 = vsub.f32 %v2334, %v2478
    %v2487 = vsub.f32 %v2335, %v2479
    %v2488 = vsub.f32 %v2336, %v2480
    %v2489 = vsub.f32 %v2337, %v2481
    %v2490 = vsub.f32 %v2338, %v2482
    %v2491 = vmax.f32 %v2483, %v2487
    %v2492 = vmax.f32 %v2484, %v2488
    %v2493 = vmax.f32 %v2485, %v2489
    %v2494 = vmax.f32 %v2486, %v2490
    %v2495 = vmax.f32 %v2491, %v2492
    %v2496 = vmax.f32 %v2493, %v2494
    %v2497 = vmax.f32 %v2495, %v2496
    %v2498 = vsub.f32 %v2483, %v2497
    %v2499 = vsub.f32 %v2484, %v2497
    %v2500 = vsub.f32 %v2485, %v2497
    %v2501 = vsub.f32 %v2486, %v2497
    %v2502 = vsub.f32 %v2487, %v2497
    %v2503 = vsub.f32 %v2488, %v2497
    %v2504 = vsub.f32 %v2489, %v2497
    %v2505 = vsub.f32 %v2490, %v2497
    %v2506 = vmul.f32 %v2498, 1.442695
    %v2507 = vpow.pop %v2506
    %v2508 = vmul.f32 %v2499, 1.442695
    %v2509 = vpow.pop %v2508
    %v2510 = vmul.f32 %v2500, 1.442695
    %v2511 = vpow.pop %v2510
    %v2512 = vmul.f32 %v2501, 1.442695
    %v2513 = vpow.pop %v2512
    %v2514 = vmul.f32 %v2502, 1.442695
    %v2515 = vpow.pop %v2514
    %v2516 = vmul.f32 %v2503, 1.442695
    %v2517 = vpow.pop %v2516
    %v2518 = vmul.f32 %v2504, 1.442695
    %v2519 = vpow.pop %v2518
    %v2520 = vmul.f32 %v2505, 1.442695
    %v2521 = vpow.pop %v2520
    %v2522 = vadd.f32 %v2507, %v2509
    %v2523 = vadd.f32 %v2522, %v2511
    %v2524 = vadd.f32 %v2523, %v2513
    %v2525 = vadd.f32 %v2524, %v2515
    %v2526 = vadd.f32 %v2525, %v2517
    %v2527 = vadd.f32 %v2526, %v2519
    %v2528 = vadd.f32 %v2527, %v2521
    %v2529 = vlog2.pop %v2528
    %v2530 = vmul.f32 %v2529, 0.6931472
    %v2531 = vadd.f32 %v2497, %v2530
    %v2532 = vsub.f32 %v2483, %v2531
    %v2533 = vsub.f32 %v2484, %v2531
    %v2534 = vsub.f32 %v2485, %v2531
    %v2535 = vsub.f32 %v2486, %v2531
    %v2536 = vsub.f32 %v2487, %v2531
    %v2537 = vsub.f32 %v2488, %v2531
    %v2538 = vsub.f32 %v2489, %v2531
    %v2539 = vsub.f32 %v2490, %v2531
    %v2540 = vrot.slane %v2532, 4
    %v2541 = vmax.f32 %v2532, %v2540
    %v2542 = vrot.slane %v2541, 2
    %v2543 = vmax.f32 %v2541, %v2542
    %v2544 = vrot.slane %v2543, 1
    %v2545 = vmax.f32 %v2543, %v2544
    %v2546 = vrot.slane %v2533, 4
    %v2547 = vmax.f32 %v2533, %v2546
    %v2548 = vrot.slane %v2547, 2
    %v2549 = vmax.f32 %v2547, %v2548
    %v2550 = vrot.slane %v2549, 1
    %v2551 = vmax.f32 %v2549, %v2550
    %v2552 = vrot.slane %v2534, 4
    %v2553 = vmax.f32 %v2534, %v2552
    %v2554 = vrot.slane %v2553, 2
    %v2555 = vmax.f32 %v2553, %v2554
    %v2556 = vrot.slane %v2555, 1
    %v2557 = vmax.f32 %v2555, %v2556
    %v2558 = vrot.slane %v2535, 4
    %v2559 = vmax.f32 %v2535, %v2558
    %v2560 = vrot.slane %v2559, 2
    %v2561 = vmax.f32 %v2559, %v2560
    %v2562 = vrot.slane %v2561, 1
    %v2563 = vmax.f32 %v2561, %v2562
    %v2564 = vrot.slane %v2536, 4
    %v2565 = vmax.f32 %v2536, %v2564
    %v2566 = vrot.slane %v2565, 2
    %v2567 = vmax.f32 %v2565, %v2566
    %v2568 = vrot.slane %v2567, 1
    %v2569 = vmax.f32 %v2567, %v2568
    %v2570 = vrot.slane %v2537, 4
    %v2571 = vmax.f32 %v2537, %v2570
    %v2572 = vrot.slane %v2571, 2
    %v2573 = vmax.f32 %v2571, %v2572
    %v2574 = vrot.slane %v2573, 1
    %v2575 = vmax.f32 %v2573, %v2574
    %v2576 = vrot.slane %v2538, 4
    %v2577 = vmax.f32 %v2538, %v2576
    %v2578 = vrot.slane %v2577, 2
    %v2579 = vmax.f32 %v2577, %v2578
    %v2580 = vrot.slane %v2579, 1
    %v2581 = vmax.f32 %v2579, %v2580
    %v2582 = vrot.slane %v2539, 4
    %v2583 = vmax.f32 %v2539, %v2582
    %v2584 = vrot.slane %v2583, 2
    %v2585 = vmax.f32 %v2583, %v2584
    %v2586 = vrot.slane %v2585, 1
    %v2587 = vmax.f32 %v2585, %v2586
    %v2588 = vsub.f32 %v2532, %v2545
    %v2589 = vsub.f32 %v2533, %v2551
    %v2590 = vsub.f32 %v2534, %v2557
    %v2591 = vsub.f32 %v2535, %v2563
    %v2592 = vsub.f32 %v2536, %v2569
    %v2593 = vsub.f32 %v2537, %v2575
    %v2594 = vsub.f32 %v2538, %v2581
    %v2595 = vsub.f32 %v2539, %v2587
    %v2596 = vmul.f32 %v2588, 1.442695
    %v2597 = vpow.pop %v2596
    %v2598 = vmul.f32 %v2589, 1.442695
    %v2599 = vpow.pop %v2598
    %v2600 = vmul.f32 %v2590, 1.442695
    %v2601 = vpow.pop %v2600
    %v2602 = vmul.f32 %v2591, 1.442695
    %v2603 = vpow.pop %v2602
    %v2604 = vmul.f32 %v2592, 1.442695
    %v2605 = vpow.pop %v2604
    %v2606 = vmul.f32 %v2593, 1.442695
    %v2607 = vpow.pop %v2606
    %v2608 = vmul.f32 %v2594, 1.442695
    %v2609 = vpow.pop %v2608
    %v2610 = vmul.f32 %v2595, 1.442695
    %v2611 = vpow.pop %v2610
    %v2612 = vrot.slane %v2597, 4
    %v2613 = vadd.f32 %v2597, %v2612
    %v2614 = vrot.slane %v2613, 2
    %v2615 = vadd.f32 %v2613, %v2614
    %v2616 = vrot.slane %v2615, 1
    %v2617 = vadd.f32 %v2615, %v2616
    %v2618 = vrot.slane %v2599, 4
    %v2619 = vadd.f32 %v2599, %v2618
    %v2620 = vrot.slane %v2619, 2
    %v2621 = vadd.f32 %v2619, %v2620
    %v2622 = vrot.slane %v2621, 1
    %v2623 = vadd.f32 %v2621, %v2622
    %v2624 = vrot.slane %v2601, 4
    %v2625 = vadd.f32 %v2601, %v2624
    %v2626 = vrot.slane %v2625, 2
    %v2627 = vadd.f32 %v2625, %v2626
    %v2628 = vrot.slane %v2627, 1
    %v2629 = vadd.f32 %v2627, %v2628
    %v2630 = vrot.slane %v2603, 4
    %v2631 = vadd.f32 %v2603, %v2630
    %v2632 = vrot.slane %v2631, 2
    %v2633 = vadd.f32 %v2631, %v2632
    %v2634 = vrot.slane %v2633, 1
    %v2635 = vadd.f32 %v2633, %v2634
    %v2636 = vrot.slane %v2605, 4
    %v2637 = vadd.f32 %v2605, %v2636
    %v2638 = vrot.slane %v2637, 2
    %v2639 = vadd.f32 %v2637, %v2638
    %v2640 = vrot.slane %v2639, 1
    %v2641 = vadd.f32 %v2639, %v2640
    %v2642 = vrot.slane %v2607, 4
    %v2643 = vadd.f32 %v2607, %v2642
    %v2644 = vrot.slane %v2643, 2
    %v2645 = vadd.f32 %v2643, %v2644
    %v2646 = vrot.slane %v2645, 1
    %v2647 = vadd.f32 %v2645, %v2646
    %v2648 = vrot.slane %v2609, 4
    %v2649 = vadd.f32 %v2609, %v2648
    %v2650 = vrot.slane %v2649, 2
    %v2651 = vadd.f32 %v2649, %v2650
    %v2652 = vrot.slane %v2651, 1
    %v2653 = vadd.f32 %v2651, %v2652
    %v2654 = vrot.slane %v2611, 4
    %v2655 = vadd.f32 %v2611, %v2654
    %v2656 = vrot.slane %v2655, 2
    %v2657 = vadd.f32 %v2655, %v2656
    %v2658 = vrot.slane %v2657, 1
    %v2659 = vadd.f32 %v2657, %v2658
    %v2660 = vlog2.pop %v2617
    %v2661 = vmul.f32 %v2660, 0.6931472
    %v2662 = vlog2.pop %v2623
    %v2663 = vmul.f32 %v2662, 0.6931472
    %v2664 = vlog2.pop %v2629
    %v2665 = vmul.f32 %v2664, 0.6931472
    %v2666 = vlog2.pop %v2635
    %v2667 = vmul.f32 %v2666, 0.6931472
    %v2668 = vlog2.pop %v2641
    %v2669 = vmul.f32 %v2668, 0.6931472
    %v2670 = vlog2.pop %v2647
    %v2671 = vmul.f32 %v2670, 0.6931472
    %v2672 = vlog2.pop %v2653
    %v2673 = vmul.f32 %v2672, 0.6931472
    %v2674 = vlog2.pop %v2659
    %v2675 = vmul.f32 %v2674, 0.6931472
    %v2676 = vadd.f32 %v2545, %v2661
    %v2677 = vadd.f32 %v2551, %v2663
    %v2678 = vadd.f32 %v2557, %v2665
    %v2679 = vadd.f32 %v2563, %v2667
    %v2680 = vadd.f32 %v2569, %v2669
    %v2681 = vadd.f32 %v2575, %v2671
    %v2682 = vadd.f32 %v2581, %v2673
    %v2683 = vadd.f32 %v2587, %v2675
    %v2684 = vsub.f32 %v2532, %v2676
    %v2685 = vsub.f32 %v2533, %v2677
    %v2686 = vsub.f32 %v2534, %v2678
    %v2687 = vsub.f32 %v2535, %v2679
    %v2688 = vsub.f32 %v2536, %v2680
    %v2689 = vsub.f32 %v2537, %v2681
    %v2690 = vsub.f32 %v2538, %v2682
    %v2691 = vsub.f32 %v2539, %v2683
    %v2692 = vmax.f32 %v2684, %v2688
    %v2693 = vmax.f32 %v2685, %v2689
    %v2694 = vmax.f32 %v2686, %v2690
    %v2695 = vmax.f32 %v2687, %v2691
    %v2696 = vmax.f32 %v2692, %v2693
    %v2697 = vmax.f32 %v2694, %v2695
    %v2698 = vmax.f32 %v2696, %v2697
    %v2699 = vsub.f32 %v2684, %v2698
    %v2700 = vsub.f32 %v2685, %v2698
    %v2701 = vsub.f32 %v2686, %v2698
    %v2702 = vsub.f32 %v2687, %v2698
    %v2703 = vsub.f32 %v2688, %v2698
    %v2704 = vsub.f32 %v2689, %v2698
    %v2705 = vsub.f32 %v2690, %v2698
    %v2706 = vsub.f32 %v2691, %v2698
    %v2707 = vmul.f32 %v2699, 1.442695
    %v2708 = vpow.pop %v2707
    %v2709 = vmul.f32 %v2700, 1.442695
    %v2710 = vpow.pop %v2709
    %v2711 = vmul.f32 %v2701, 1.442695
    %v2712 = vpow.pop %v2711
    %v2713 = vmul.f32 %v2702, 1.442695
    %v2714 = vpow.pop %v2713
    %v2715 = vmul.f32 %v2703, 1.442695
    %v2716 = vpow.pop %v2715
    %v2717 = vmul.f32 %v2704, 1.442695
    %v2718 = vpow.pop %v2717
    %v2719 = vmul.f32 %v2705, 1.442695
    %v2720 = vpow.pop %v2719
    %v2721 = vmul.f32 %v2706, 1.442695
    %v2722 = vpow.pop %v2721
    %v2723 = vadd.f32 %v2708, %v2710
    %v2724 = vadd.f32 %v2723, %v2712
    %v2725 = vadd.f32 %v2724, %v2714
    %v2726 = vadd.f32 %v2725, %v2716
    %v2727 = vadd.f32 %v2726, %v2718
    %v2728 = vadd.f32 %v2727, %v2720
    %v2729 = vadd.f32 %v2728, %v2722
    %v2730 = vlog2.pop %v2729
    %v2731 = vmul.f32 %v2730, 0.6931472
    %v2732 = vadd.f32 %v2698, %v2731
    %v2733 = vsub.f32 %v2684, %v2732
    %v2734 = vsub.f32 %v2685, %v2732
    %v2735 = vsub.f32 %v2686, %v2732
    %v2736 = vsub.f32 %v2687, %v2732
    %v2737 = vsub.f32 %v2688, %v2732
    %v2738 = vsub.f32 %v2689, %v2732
    %v2739 = vsub.f32 %v2690, %v2732
    %v2740 = vsub.f32 %v2691, %v2732
    %v2741 = vrot.slane %v2733, 4
    %v2742 = vmax.f32 %v2733, %v2741
    %v2743 = vrot.slane %v2742, 2
    %v2744 = vmax.f32 %v2742, %v2743
    %v2745 = vrot.slane %v2744, 1
    %v2746 = vmax.f32 %v2744, %v2745
    %v2747 = vrot.slane %v2734, 4
    %v2748 = vmax.f32 %v2734, %v2747
    %v2749 = vrot.slane %v2748, 2
    %v2750 = vmax.f32 %v2748, %v2749
    %v2751 = vrot.slane %v2750, 1
    %v2752 = vmax.f32 %v2750, %v2751
    %v2753 = vrot.slane %v2735, 4
    %v2754 = vmax.f32 %v2735, %v2753
    %v2755 = vrot.slane %v2754, 2
    %v2756 = vmax.f32 %v2754, %v2755
    %v2757 = vrot.slane %v2756, 1
    %v2758 = vmax.f32 %v2756, %v2757
    %v2759 = vrot.slane %v2736, 4
    %v2760 = vmax.f32 %v2736, %v2759
    %v2761 = vrot.slane %v2760, 2
    %v2762 = vmax.f32 %v2760, %v2761
    %v2763 = vrot.slane %v2762, 1
    %v2764 = vmax.f32 %v2762, %v2763
    %v2765 = vrot.slane %v2737, 4
    %v2766 = vmax.f32 %v2737, %v2765
    %v2767 = vrot.slane %v2766, 2
    %v2768 = vmax.f32 %v2766, %v2767
    %v2769 = vrot.slane %v2768, 1
    %v2770 = vmax.f32 %v2768, %v2769
    %v2771 = vrot.slane %v2738, 4
    %v2772 = vmax.f32 %v2738, %v2771
    %v2773 = vrot.slane %v2772, 2
    %v2774 = vmax.f32 %v2772, %v2773
    %v2775 = vrot.slane %v2774, 1
    %v2776 = vmax.f32 %v2774, %v2775
    %v2777 = vrot.slane %v2739, 4
    %v2778 = vmax.f32 %v2739, %v2777
    %v2779 = vrot.slane %v2778, 2
    %v2780 = vmax.f32 %v2778, %v2779
    %v2781 = vrot.slane %v2780, 1
    %v2782 = vmax.f32 %v2780, %v2781
    %v2783 = vrot.slane %v2740, 4
    %v2784 = vmax.f32 %v2740, %v2783
    %v2785 = vrot.slane %v2784, 2
    %v2786 = vmax.f32 %v2784, %v2785
    %v2787 = vrot.slane %v2786, 1
    %v2788 = vmax.f32 %v2786, %v2787
    %v2789 = vsub.f32 %v2733, %v2746
    %v2790 = vsub.f32 %v2734, %v2752
    %v2791 = vsub.f32 %v2735, %v2758
    %v2792 = vsub.f32 %v2736, %v2764
    %v2793 = vsub.f32 %v2737, %v2770
    %v2794 = vsub.f32 %v2738, %v2776
    %v2795 = vsub.f32 %v2739, %v2782
    %v2796 = vsub.f32 %v2740, %v2788
    %v2797 = vmul.f32 %v2789, 1.442695
    %v2798 = vpow.pop %v2797
    %v2799 = vmul.f32 %v2790, 1.442695
    %v2800 = vpow.pop %v2799
    %v2801 = vmul.f32 %v2791, 1.442695
    %v2802 = vpow.pop %v2801
    %v2803 = vmul.f32 %v2792, 1.442695
    %v2804 = vpow.pop %v2803
    %v2805 = vmul.f32 %v2793, 1.442695
    %v2806 = vpow.pop %v2805
    %v2807 = vmul.f32 %v2794, 1.442695
    %v2808 = vpow.pop %v2807
    %v2809 = vmul.f32 %v2795, 1.442695
    %v2810 = vpow.pop %v2809
    %v2811 = vmul.f32 %v2796, 1.442695
    %v2812 = vpow.pop %v2811
    %v2813 = vrot.slane %v2798, 4
    %v2814 = vadd.f32 %v2798, %v2813
    %v2815 = vrot.slane %v2814, 2
    %v2816 = vadd.f32 %v2814, %v2815
    %v2817 = vrot.slane %v2816, 1
    %v2818 = vadd.f32 %v2816, %v2817
    %v2819 = vrot.slane %v2800, 4
    %v2820 = vadd.f32 %v2800, %v2819
    %v2821 = vrot.slane %v2820, 2
    %v2822 = vadd.f32 %v2820, %v2821
    %v2823 = vrot.slane %v2822, 1
    %v2824 = vadd.f32 %v2822, %v2823
    %v2825 = vrot.slane %v2802, 4
    %v2826 = vadd.f32 %v2802, %v2825
    %v2827 = vrot.slane %v2826, 2
    %v2828 = vadd.f32 %v2826, %v2827
    %v2829 = vrot.slane %v2828, 1
    %v2830 = vadd.f32 %v2828, %v2829
    %v2831 = vrot.slane %v2804, 4
    %v2832 = vadd.f32 %v2804, %v2831
    %v2833 = vrot.slane %v2832, 2
    %v2834 = vadd.f32 %v2832, %v2833
    %v2835 = vrot.slane %v2834, 1
    %v2836 = vadd.f32 %v2834, %v2835
    %v2837 = vrot.slane %v2806, 4
    %v2838 = vadd.f32 %v2806, %v2837
    %v2839 = vrot.slane %v2838, 2
    %v2840 = vadd.f32 %v2838, %v2839
    %v2841 = vrot.slane %v2840, 1
    %v2842 = vadd.f32 %v2840, %v2841
    %v2843 = vrot.slane %v2808, 4
    %v2844 = vadd.f32 %v2808, %v2843
    %v2845 = vrot.slane %v2844, 2
    %v2846 = vadd.f32 %v2844, %v2845
    %v2847 = vrot.slane %v2846, 1
    %v2848 = vadd.f32 %v2846, %v2847
    %v2849 = vrot.slane %v2810, 4
    %v2850 = vadd.f32 %v2810, %v2849
    %v2851 = vrot.slane %v2850, 2
    %v2852 = vadd.f32 %v2850, %v2851
    %v2853 = vrot.slane %v2852, 1
    %v2854 = vadd.f32 %v2852, %v2853
    %v2855 = vrot.slane %v2812, 4
    %v2856 = vadd.f32 %v2812, %v2855
    %v2857 = vrot.slane %v2856, 2
    %v2858 = vadd.f32 %v2856, %v2857
    %v2859 = vrot.slane %v2858, 1
    %v2860 = vadd.f32 %v2858, %v2859
    %v2861 = vlog2.pop %v2818
    %v2862 = vmul.f32 %v2861, 0.6931472
    %v2863 = vlog2.pop %v2824
    %v2864 = vmul.f32 %v2863, 0.6931472
    %v2865 = vlog2.pop %v2830
    %v2866 = vmul.f32 %v2865, 0.6931472
    %v2867 = vlog2.pop %v2836
    %v2868 = vmul.f32 %v2867, 0.6931472
    %v2869 = vlog2.pop %v2842
    %v2870 = vmul.f32 %v2869, 0.6931472
    %v2871 = vlog2.pop %v2848
    %v2872 = vmul.f32 %v2871, 0.6931472
    %v2873 = vlog2.pop %v2854
    %v2874 = vmul.f32 %v2873, 0.6931472
    %v2875 = vlog2.pop %v2860
    %v2876 = vmul.f32 %v2875, 0.6931472
    %v2877 = vadd.f32 %v2746, %v2862
    %v2878 = vadd.f32 %v2752, %v2864
    %v2879 = vadd.f32 %v2758, %v2866
    %v2880 = vadd.f32 %v2764, %v2868
    %v2881 = vadd.f32 %v2770, %v2870
    %v2882 = vadd.f32 %v2776, %v2872
    %v2883 = vadd.f32 %v2782, %v2874
    %v2884 = vadd.f32 %v2788, %v2876
    %v2885 = vsub.f32 %v2733, %v2877
    %v2886 = vsub.f32 %v2734, %v2878
    %v2887 = vsub.f32 %v2735, %v2879
    %v2888 = vsub.f32 %v2736, %v2880
    %v2889 = vsub.f32 %v2737, %v2881
    %v2890 = vsub.f32 %v2738, %v2882
    %v2891 = vsub.f32 %v2739, %v2883
    %v2892 = vsub.f32 %v2740, %v2884
    %v2893 = vmax.f32 %v2885, %v2889
    %v2894 = vmax.f32 %v2886, %v2890
    %v2895 = vmax.f32 %v2887, %v2891
    %v2896 = vmax.f32 %v2888, %v2892
    %v2897 = vmax.f32 %v2893, %v2894
    %v2898 = vmax.f32 %v2895, %v2896
    %v2899 = vmax.f32 %v2897, %v2898
    %v2900 = vsub.f32 %v2885, %v2899
    %v2901 = vsub.f32 %v2886, %v2899
    %v2902 = vsub.f32 %v2887, %v2899
    %v2903 = vsub.f32 %v2888, %v2899
    %v2904 = vsub.f32 %v2889, %v2899
    %v2905 = vsub.f32 %v2890, %v2899
    %v2906 = vsub.f32 %v2891, %v2899
    %v2907 = vsub.f32 %v2892, %v2899
    %v2908 = vmul.f32 %v2900, 1.442695
    %v2909 = vpow.pop %v2908
    %v2910 = vmul.f32 %v2901, 1.442695
    %v2911 = vpow.pop %v2910
    %v2912 = vmul.f32 %v2902, 1.442695
    %v2913 = vpow.pop %v2912
    %v2914 = vmul.f32 %v2903, 1.442695
    %v2915 = vpow.pop %v2914
    %v2916 = vmul.f32 %v2904, 1.442695
    %v2917 = vpow.pop %v2916
    %v2918 = vmul.f32 %v2905, 1.442695
    %v2919 = vpow.pop %v2918
    %v2920 = vmul.f32 %v2906, 1.442695
    %v2921 = vpow.pop %v2920
    %v2922 = vmul.f32 %v2907, 1.442695
    %v2923 = vpow.pop %v2922
    %v2924 = vadd.f32 %v2909, %v2911
    %v2925 = vadd.f32 %v2924, %v2913
    %v2926 = vadd.f32 %v2925, %v2915
    %v2927 = vadd.f32 %v2926, %v2917
    %v2928 = vadd.f32 %v2927, %v2919
    %v2929 = vadd.f32 %v2928, %v2921
    %v2930 = vadd.f32 %v2929, %v2923
    %v2931 = vlog2.pop %v2930
    %v2932 = vmul.f32 %v2931, 0.6931472
    %v2933 = vadd.f32 %v2899, %v2932
    %v2934 = vsub.f32 %v2885, %v2933
    %v2935 = vsub.f32 %v2886, %v2933
    %v2936 = vsub.f32 %v2887, %v2933
    %v2937 = vsub.f32 %v2888, %v2933
    %v2938 = vsub.f32 %v2889, %v2933
    %v2939 = vsub.f32 %v2890, %v2933
    %v2940 = vsub.f32 %v2891, %v2933
    %v2941 = vsub.f32 %v2892, %v2933
    %v2942 = vrot.slane %v2934, 4
    %v2943 = vmax.f32 %v2934, %v2942
    %v2944 = vrot.slane %v2943, 2
    %v2945 = vmax.f32 %v2943, %v2944
    %v2946 = vrot.slane %v2945, 1
    %v2947 = vmax.f32 %v2945, %v2946
    %v2948 = vrot.slane %v2935, 4
    %v2949 = vmax.f32 %v2935, %v2948
    %v2950 = vrot.slane %v2949, 2
    %v2951 = vmax.f32 %v2949, %v2950
    %v2952 = vrot.slane %v2951, 1
    %v2953 = vmax.f32 %v2951, %v2952
    %v2954 = vrot.slane %v2936, 4
    %v2955 = vmax.f32 %v2936, %v2954
    %v2956 = vrot.slane %v2955, 2
    %v2957 = vmax.f32 %v2955, %v2956
    %v2958 = vrot.slane %v2957, 1
    %v2959 = vmax.f32 %v2957, %v2958
    %v2960 = vrot.slane %v2937, 4
    %v2961 = vmax.f32 %v2937, %v2960
    %v2962 = vrot.slane %v2961, 2
    %v2963 = vmax.f32 %v2961, %v2962
    %v2964 = vrot.slane %v2963, 1
    %v2965 = vmax.f32 %v2963, %v2964
    %v2966 = vrot.slane %v2938, 4
    %v2967 = vmax.f32 %v2938, %v2966
    %v2968 = vrot.slane %v2967, 2
    %v2969 = vmax.f32 %v2967, %v2968
    %v2970 = vrot.slane %v2969, 1
    %v2971 = vmax.f32 %v2969, %v2970
    %v2972 = vrot.slane %v2939, 4
    %v2973 = vmax.f32 %v2939, %v2972
    %v2974 = vrot.slane %v2973, 2
    %v2975 = vmax.f32 %v2973, %v2974
    %v2976 = vrot.slane %v2975, 1
    %v2977 = vmax.f32 %v2975, %v2976
    %v2978 = vrot.slane %v2940, 4
    %v2979 = vmax.f32 %v2940, %v2978
    %v2980 = vrot.slane %v2979, 2
    %v2981 = vmax.f32 %v2979, %v2980
    %v2982 = vrot.slane %v2981, 1
    %v2983 = vmax.f32 %v2981, %v2982
    %v2984 = vrot.slane %v2941, 4
    %v2985 = vmax.f32 %v2941, %v2984
    %v2986 = vrot.slane %v2985, 2
    %v2987 = vmax.f32 %v2985, %v2986
    %v2988 = vrot.slane %v2987, 1
    %v2989 = vmax.f32 %v2987, %v2988
    %v2990 = vsub.f32 %v2934, %v2947
    %v2991 = vsub.f32 %v2935, %v2953
    %v2992 = vsub.f32 %v2936, %v2959
    %v2993 = vsub.f32 %v2937, %v2965
    %v2994 = vsub.f32 %v2938, %v2971
    %v2995 = vsub.f32 %v2939, %v2977
    %v2996 = vsub.f32 %v2940, %v2983
    %v2997 = vsub.f32 %v2941, %v2989
    %v2998 = vmul.f32 %v2990, 1.442695
    %v2999 = vpow.pop %v2998
    %v3000 = vmul.f32 %v2991, 1.442695
    %v3001 = vpow.pop %v3000
    %v3002 = vmul.f32 %v2992, 1.442695
    %v3003 = vpow.pop %v3002
    %v3004 = vmul.f32 %v2993, 1.442695
    %v3005 = vpow.pop %v3004
    %v3006 = vmul.f32 %v2994, 1.442695
    %v3007 = vpow.pop %v3006
    %v3008 = vmul.f32 %v2995, 1.442695
    %v3009 = vpow.pop %v3008
    %v3010 = vmul.f32 %v2996, 1.442695
    %v3011 = vpow.pop %v3010
    %v3012 = vmul.f32 %v2997, 1.442695
    %v3013 = vpow.pop %v3012
    %v3014 = vrot.slane %v2999, 4
    %v3015 = vadd.f32 %v2999, %v3014
    %v3016 = vrot.slane %v3015, 2
    %v3017 = vadd.f32 %v3015, %v3016
    %v3018 = vrot.slane %v3017, 1
    %v3019 = vadd.f32 %v3017, %v3018
    %v3020 = vrot.slane %v3001, 4
    %v3021 = vadd.f32 %v3001, %v3020
    %v3022 = vrot.slane %v3021, 2
    %v3023 = vadd.f32 %v3021, %v3022
    %v3024 = vrot.slane %v3023, 1
    %v3025 = vadd.f32 %v3023, %v3024
    %v3026 = vrot.slane %v3003, 4
    %v3027 = vadd.f32 %v3003, %v3026
    %v3028 = vrot.slane %v3027, 2
    %v3029 = vadd.f32 %v3027, %v3028
    %v3030 = vrot.slane %v3029, 1
    %v3031 = vadd.f32 %v3029, %v3030
    %v3032 = vrot.slane %v3005, 4
    %v3033 = vadd.f32 %v3005, %v3032
    %v3034 = vrot.slane %v3033, 2
    %v3035 = vadd.f32 %v3033, %v3034
    %v3036 = vrot.slane %v3035, 1
    %v3037 = vadd.f32 %v3035, %v3036
    %v3038 = vrot.slane %v3007, 4
    %v3039 = vadd.f32 %v3007, %v3038
    %v3040 = vrot.slane %v3039, 2
    %v3041 = vadd.f32 %v3039, %v3040
    %v3042 = vrot.slane %v3041, 1
    %v3043 = vadd.f32 %v3041, %v3042
    %v3044 = vrot.slane %v3009, 4
    %v3045 = vadd.f32 %v3009, %v3044
    %v3046 = vrot.slane %v3045, 2
    %v3047 = vadd.f32 %v3045, %v3046
    %v3048 = vrot.slane %v3047, 1
    %v3049 = vadd.f32 %v3047, %v3048
    %v3050 = vrot.slane %v3011, 4
    %v3051 = vadd.f32 %v3011, %v3050
    %v3052 = vrot.slane %v3051, 2
    %v3053 = vadd.f32 %v3051, %v3052
    %v3054 = vrot.slane %v3053, 1
    %v3055 = vadd.f32 %v3053, %v3054
    %v3056 = vrot.slane %v3013, 4
    %v3057 = vadd.f32 %v3013, %v3056
    %v3058 = vrot.slane %v3057, 2
    %v3059 = vadd.f32 %v3057, %v3058
    %v3060 = vrot.slane %v3059, 1
    %v3061 = vadd.f32 %v3059, %v3060
    %v3062 = vlog2.pop %v3019
    %v3063 = vmul.f32 %v3062, 0.6931472
    %v3064 = vlog2.pop %v3025
    %v3065 = vmul.f32 %v3064, 0.6931472
    %v3066 = vlog2.pop %v3031
    %v3067 = vmul.f32 %v3066, 0.6931472
    %v3068 = vlog2.pop %v3037
    %v3069 = vmul.f32 %v3068, 0.6931472
    %v3070 = vlog2.pop %v3043
    %v3071 = vmul.f32 %v3070, 0.6931472
    %v3072 = vlog2.pop %v3049
    %v3073 = vmul.f32 %v3072, 0.6931472
    %v3074 = vlog2.pop %v3055
    %v3075 = vmul.f32 %v3074, 0.6931472
    %v3076 = vlog2.pop %v3061
    %v3077 = vmul.f32 %v3076, 0.6931472
    %v3078 = vadd.f32 %v2947, %v3063
    %v3079 = vadd.f32 %v2953, %v3065
    %v3080 = vadd.f32 %v2959, %v3067
    %v3081 = vadd.f32 %v2965, %v3069
    %v3082 = vadd.f32 %v2971, %v3071
    %v3083 = vadd.f32 %v2977, %v3073
    %v3084 = vadd.f32 %v2983, %v3075
    %v3085 = vadd.f32 %v2989, %v3077
    %v3086 = vsub.f32 %v2934, %v3078
    %v3087 = vsub.f32 %v2935, %v3079
    %v3088 = vsub.f32 %v2936, %v3080
    %v3089 = vsub.f32 %v2937, %v3081
    %v3090 = vsub.f32 %v2938, %v3082
    %v3091 = vsub.f32 %v2939, %v3083
    %v3092 = vsub.f32 %v2940, %v3084
    %v3093 = vsub.f32 %v2941, %v3085
    %v3094 = vmax.f32 %v3086, %v3090
    %v3095 = vmax.f32 %v3087, %v3091
    %v3096 = vmax.f32 %v3088, %v3092
    %v3097 = vmax.f32 %v3089, %v3093
    %v3098 = vmax.f32 %v3094, %v3095
    %v3099 = vmax.f32 %v3096, %v3097
    %v3100 = vmax.f32 %v3098, %v3099
    %v3101 = vsub.f32 %v3086, %v3100
    %v3102 = vsub.f32 %v3087, %v3100
    %v3103 = vsub.f32 %v3088, %v3100
    %v3104 = vsub.f32 %v3089, %v3100
    %v3105 = vsub.f32 %v3090, %v3100
    %v3106 = vsub.f32 %v3091, %v3100
    %v3107 = vsub.f32 %v3092, %v3100
    %v3108 = vsub.f32 %v3093, %v3100
    %v3109 = vmul.f32 %v3101, 1.442695
    %v3110 = vpow.pop %v3109
    %v3111 = vmul.f32 %v3102, 1.442695
    %v3112 = vpow.pop %v3111
    %v3113 = vmul.f32 %v3103, 1.442695
    %v3114 = vpow.pop %v3113
    %v3115 = vmul.f32 %v3104, 1.442695
    %v3116 = vpow.pop %v3115
    %v3117 = vmul.f32 %v3105, 1.442695
    %v3118 = vpow.pop %v3117
    %v3119 = vmul.f32 %v3106, 1.442695
    %v3120 = vpow.pop %v3119
    %v3121 = vmul.f32 %v3107, 1.442695
    %v3122 = vpow.pop %v3121
    %v3123 = vmul.f32 %v3108, 1.442695
    %v3124 = vpow.pop %v3123
    %v3125 = vadd.f32 %v3110, %v3112
    %v3126 = vadd.f32 %v3125, %v3114
    %v3127 = vadd.f32 %v3126, %v3116
    %v3128 = vadd.f32 %v3127, %v3118
    %v3129 = vadd.f32 %v3128, %v3120
    %v3130 = vadd.f32 %v3129, %v3122
    %v3131 = vadd.f32 %v3130, %v3124
    %v3132 = vlog2.pop %v3131
    %v3133 = vmul.f32 %v3132, 0.6931472
    %v3134 = vadd.f32 %v3100, %v3133
    %v3135 = vsub.f32 %v3086, %v3134
    %v3136 = vsub.f32 %v3087, %v3134
    %v3137 = vsub.f32 %v3088, %v3134
    %v3138 = vsub.f32 %v3089, %v3134
    %v3139 = vsub.f32 %v3090, %v3134
    %v3140 = vsub.f32 %v3091, %v3134
    %v3141 = vsub.f32 %v3092, %v3134
    %v3142 = vsub.f32 %v3093, %v3134
    %v3143 = vrot.slane %v3135, 4
    %v3144 = vmax.f32 %v3135, %v3143
    %v3145 = vrot.slane %v3144, 2
    %v3146 = vmax.f32 %v3144, %v3145
    %v3147 = vrot.slane %v3146, 1
    %v3148 = vmax.f32 %v3146, %v3147
    %v3149 = vrot.slane %v3136, 4
    %v3150 = vmax.f32 %v3136, %v3149
    %v3151 = vrot.slane %v3150, 2
    %v3152 = vmax.f32 %v3150, %v3151
    %v3153 = vrot.slane %v3152, 1
    %v3154 = vmax.f32 %v3152, %v3153
    %v3155 = vrot.slane %v3137, 4
    %v3156 = vmax.f32 %v3137, %v3155
    %v3157 = vrot.slane %v3156, 2
    %v3158 = vmax.f32 %v3156, %v3157
    %v3159 = vrot.slane %v3158, 1
    %v3160 = vmax.f32 %v3158, %v3159
    %v3161 = vrot.slane %v3138, 4
    %v3162 = vmax.f32 %v3138, %v3161
    %v3163 = vrot.slane %v3162, 2
    %v3164 = vmax.f32 %v3162, %v3163
    %v3165 = vrot.slane %v3164, 1
    %v3166 = vmax.f32 %v3164, %v3165
    %v3167 = vrot.slane %v3139, 4
    %v3168 = vmax.f32 %v3139, %v3167
    %v3169 = vrot.slane %v3168, 2
    %v3170 = vmax.f32 %v3168, %v3169
    %v3171 = vrot.slane %v3170, 1
    %v3172 = vmax.f32 %v3170, %v3171
    %v3173 = vrot.slane %v3140, 4
    %v3174 = vmax.f32 %v3140, %v3173
    %v3175 = vrot.slane %v3174, 2
    %v3176 = vmax.f32 %v3174, %v3175
    %v3177 = vrot.slane %v3176, 1
    %v3178 = vmax.f32 %v3176, %v3177
    %v3179 = vrot.slane %v3141, 4
    %v3180 = vmax.f32 %v3141, %v3179
    %v3181 = vrot.slane %v3180, 2
    %v3182 = vmax.f32 %v3180, %v3181
    %v3183 = vrot.slane %v3182, 1
    %v3184 = vmax.f32 %v3182, %v3183
    %v3185 = vrot.slane %v3142, 4
    %v3186 = vmax.f32 %v3142, %v3185
    %v3187 = vrot.slane %v3186, 2
    %v3188 = vmax.f32 %v3186, %v3187
    %v3189 = vrot.slane %v3188, 1
    %v3190 = vmax.f32 %v3188, %v3189
    %v3191 = vsub.f32 %v3135, %v3148
    %v3192 = vsub.f32 %v3136, %v3154
    %v3193 = vsub.f32 %v3137, %v3160
    %v3194 = vsub.f32 %v3138, %v3166
    %v3195 = vsub.f32 %v3139, %v3172
    %v3196 = vsub.f32 %v3140, %v3178
    %v3197 = vsub.f32 %v3141, %v3184
    %v3198 = vsub.f32 %v3142, %v3190
    %v3199 = vmul.f32 %v3191, 1.442695
    %v3200 = vpow.pop %v3199
    %v3201 = vmul.f32 %v3192, 1.442695
    %v3202 = vpow.pop %v3201
    %v3203 = vmul.f32 %v3193, 1.442695
    %v3204 = vpow.pop %v3203
    %v3205 = vmul.f32 %v3194, 1.442695
    %v3206 = vpow.pop %v3205
    %v3207 = vmul.f32 %v3195, 1.442695
    %v3208 = vpow.pop %v3207
    %v3209 = vmul.f32 %v3196, 1.442695
    %v3210 = vpow.pop %v3209
    %v3211 = vmul.f32 %v3197, 1.442695
    %v3212 = vpow.pop %v3211
    %v3213 = vmul.f32 %v3198, 1.442695
    %v3214 = vpow.pop %v3213
    %v3215 = vrot.slane %v3200, 4
    %v3216 = vadd.f32 %v3200, %v3215
    %v3217 = vrot.slane %v3216, 2
    %v3218 = vadd.f32 %v3216, %v3217
    %v3219 = vrot.slane %v3218, 1
    %v3220 = vadd.f32 %v3218, %v3219
    %v3221 = vrot.slane %v3202, 4
    %v3222 = vadd.f32 %v3202, %v3221
    %v3223 = vrot.slane %v3222, 2
    %v3224 = vadd.f32 %v3222, %v3223
    %v3225 = vrot.slane %v3224, 1
    %v3226 = vadd.f32 %v3224, %v3225
    %v3227 = vrot.slane %v3204, 4
    %v3228 = vadd.f32 %v3204, %v3227
    %v3229 = vrot.slane %v3228, 2
    %v3230 = vadd.f32 %v3228, %v3229
    %v3231 = vrot.slane %v3230, 1
    %v3232 = vadd.f32 %v3230, %v3231
    %v3233 = vrot.slane %v3206, 4
    %v3234 = vadd.f32 %v3206, %v3233
    %v3235 = vrot.slane %v3234, 2
    %v3236 = vadd.f32 %v3234, %v3235
    %v3237 = vrot.slane %v3236, 1
    %v3238 = vadd.f32 %v3236, %v3237
    %v3239 = vrot.slane %v3208, 4
    %v3240 = vadd.f32 %v3208, %v3239
    %v3241 = vrot.slane %v3240, 2
    %v3242 = vadd.f32 %v3240, %v3241
    %v3243 = vrot.slane %v3242, 1
    %v3244 = vadd.f32 %v3242, %v3243
    %v3245 = vrot.slane %v3210, 4
    %v3246 = vadd.f32 %v3210, %v3245
    %v3247 = vrot.slane %v3246, 2
    %v3248 = vadd.f32 %v3246, %v3247
    %v3249 = vrot.slane %v3248, 1
    %v3250 = vadd.f32 %v3248, %v3249
    %v3251 = vrot.slane %v3212, 4
    %v3252 = vadd.f32 %v3212, %v3251
    %v3253 = vrot.slane %v3252, 2
    %v3254 = vadd.f32 %v3252, %v3253
    %v3255 = vrot.slane %v3254, 1
    %v3256 = vadd.f32 %v3254, %v3255
    %v3257 = vrot.slane %v3214, 4
    %v3258 = vadd.f32 %v3214, %v3257
    %v3259 = vrot.slane %v3258, 2
    %v3260 = vadd.f32 %v3258, %v3259
    %v3261 = vrot.slane %v3260, 1
    %v3262 = vadd.f32 %v3260, %v3261
    %v3263 = vlog2.pop %v3220
    %v3264 = vmul.f32 %v3263, 0.6931472
    %v3265 = vlog2.pop %v3226
    %v3266 = vmul.f32 %v3265, 0.6931472
    %v3267 = vlog2.pop %v3232
    %v3268 = vmul.f32 %v3267, 0.6931472
    %v3269 = vlog2.pop %v3238
    %v3270 = vmul.f32 %v3269, 0.6931472
    %v3271 = vlog2.pop %v3244
    %v3272 = vmul.f32 %v3271, 0.6931472
    %v3273 = vlog2.pop %v3250
    %v3274 = vmul.f32 %v3273, 0.6931472
    %v3275 = vlog2.pop %v3256
    %v3276 = vmul.f32 %v3275, 0.6931472
    %v3277 = vlog2.pop %v3262
    %v3278 = vmul.f32 %v3277, 0.6931472
    %v3279 = vadd.f32 %v3148, %v3264
    %v3280 = vadd.f32 %v3154, %v3266
    %v3281 = vadd.f32 %v3160, %v3268
    %v3282 = vadd.f32 %v3166, %v3270
    %v3283 = vadd.f32 %v3172, %v3272
    %v3284 = vadd.f32 %v3178, %v3274
    %v3285 = vadd.f32 %v3184, %v3276
    %v3286 = vadd.f32 %v3190, %v3278
    %v3287 = vsub.f32 %v3135, %v3279
    %v3288 = vsub.f32 %v3136, %v3280
    %v3289 = vsub.f32 %v3137, %v3281
    %v3290 = vsub.f32 %v3138, %v3282
    %v3291 = vsub.f32 %v3139, %v3283
    %v3292 = vsub.f32 %v3140, %v3284
    %v3293 = vsub.f32 %v3141, %v3285
    %v3294 = vsub.f32 %v3142, %v3286
    %v3295 = vmax.f32 %v3287, %v3291
    %v3296 = vmax.f32 %v3288, %v3292
    %v3297 = vmax.f32 %v3289, %v3293
    %v3298 = vmax.f32 %v3290, %v3294
    %v3299 = vmax.f32 %v3295, %v3296
    %v3300 = vmax.f32 %v3297, %v3298
    %v3301 = vmax.f32 %v3299, %v3300
    %v3302 = vsub.f32 %v3287, %v3301
    %v3303 = vsub.f32 %v3288, %v3301
    %v3304 = vsub.f32 %v3289, %v3301
    %v3305 = vsub.f32 %v3290, %v3301
    %v3306 = vsub.f32 %v3291, %v3301
    %v3307 = vsub.f32 %v3292, %v3301
    %v3308 = vsub.f32 %v3293, %v3301
    %v3309 = vsub.f32 %v3294, %v3301
    %v3310 = vmul.f32 %v3302, 1.442695
    %v3311 = vpow.pop %v3310
    %v3312 = vmul.f32 %v3303, 1.442695
    %v3313 = vpow.pop %v3312
    %v3314 = vmul.f32 %v3304, 1.442695
    %v3315 = vpow.pop %v3314
    %v3316 = vmul.f32 %v3305, 1.442695
    %v3317 = vpow.pop %v3316
    %v3318 = vmul.f32 %v3306, 1.442695
    %v3319 = vpow.pop %v3318
    %v3320 = vmul.f32 %v3307, 1.442695
    %v3321 = vpow.pop %v3320
    %v3322 = vmul.f32 %v3308, 1.442695
    %v3323 = vpow.pop %v3322
    %v3324 = vmul.f32 %v3309, 1.442695
    %v3325 = vpow.pop %v3324
    %v3326 = vadd.f32 %v3311, %v3313
    %v3327 = vadd.f32 %v3326, %v3315
    %v3328 = vadd.f32 %v3327, %v3317
    %v3329 = vadd.f32 %v3328, %v3319
    %v3330 = vadd.f32 %v3329, %v3321
    %v3331 = vadd.f32 %v3330, %v3323
    %v3332 = vadd.f32 %v3331, %v3325
    %v3333 = vlog2.pop %v3332
    %v3334 = vmul.f32 %v3333, 0.6931472
    %v3335 = vadd.f32 %v3301, %v3334
    %v3336 = vsub.f32 %v3287, %v3335
    %v3337 = vsub.f32 %v3288, %v3335
    %v3338 = vsub.f32 %v3289, %v3335
    %v3339 = vsub.f32 %v3290, %v3335
    %v3340 = vsub.f32 %v3291, %v3335
    %v3341 = vsub.f32 %v3292, %v3335
    %v3342 = vsub.f32 %v3293, %v3335
    %v3343 = vsub.f32 %v3294, %v3335
    %v3344 = vrot.slane %v3336, 4
    %v3345 = vmax.f32 %v3336, %v3344
    %v3346 = vrot.slane %v3345, 2
    %v3347 = vmax.f32 %v3345, %v3346
    %v3348 = vrot.slane %v3347, 1
    %v3349 = vmax.f32 %v3347, %v3348
    %v3350 = vrot.slane %v3337, 4
    %v3351 = vmax.f32 %v3337, %v3350
    %v3352 = vrot.slane %v3351, 2
    %v3353 = vmax.f32 %v3351, %v3352
    %v3354 = vrot.slane %v3353, 1
    %v3355 = vmax.f32 %v3353, %v3354
    %v3356 = vrot.slane %v3338, 4
    %v3357 = vmax.f32 %v3338, %v3356
    %v3358 = vrot.slane %v3357, 2
    %v3359 = vmax.f32 %v3357, %v3358
    %v3360 = vrot.slane %v3359, 1
    %v3361 = vmax.f32 %v3359, %v3360
    %v3362 = vrot.slane %v3339, 4
    %v3363 = vmax.f32 %v3339, %v3362
    %v3364 = vrot.slane %v3363, 2
    %v3365 = vmax.f32 %v3363, %v3364
    %v3366 = vrot.slane %v3365, 1
    %v3367 = vmax.f32 %v3365, %v3366
    %v3368 = vrot.slane %v3340, 4
    %v3369 = vmax.f32 %v3340, %v3368
    %v3370 = vrot.slane %v3369, 2
    %v3371 = vmax.f32 %v3369, %v3370
    %v3372 = vrot.slane %v3371, 1
    %v3373 = vmax.f32 %v3371, %v3372
    %v3374 = vrot.slane %v3341, 4
    %v3375 = vmax.f32 %v3341, %v3374
    %v3376 = vrot.slane %v3375, 2
    %v3377 = vmax.f32 %v3375, %v3376
    %v3378 = vrot.slane %v3377, 1
    %v3379 = vmax.f32 %v3377, %v3378
    %v3380 = vrot.slane %v3342, 4
    %v3381 = vmax.f32 %v3342, %v3380
    %v3382 = vrot.slane %v3381, 2
    %v3383 = vmax.f32 %v3381, %v3382
    %v3384 = vrot.slane %v3383, 1
    %v3385 = vmax.f32 %v3383, %v3384
    %v3386 = vrot.slane %v3343, 4
    %v3387 = vmax.f32 %v3343, %v3386
    %v3388 = vrot.slane %v3387, 2
    %v3389 = vmax.f32 %v3387, %v3388
    %v3390 = vrot.slane %v3389, 1
    %v3391 = vmax.f32 %v3389, %v3390
    %v3392 = vsub.f32 %v3336, %v3349
    %v3393 = vsub.f32 %v3337, %v3355
    %v3394 = vsub.f32 %v3338, %v3361
    %v3395 = vsub.f32 %v3339, %v3367
    %v3396 = vsub.f32 %v3340, %v3373
    %v3397 = vsub.f32 %v3341, %v3379
    %v3398 = vsub.f32 %v3342, %v3385
    %v3399 = vsub.f32 %v3343, %v3391
    %v3400 = vmul.f32 %v3392, 1.442695
    %v3401 = vpow.pop %v3400
    %v3402 = vmul.f32 %v3393, 1.442695
    %v3403 = vpow.pop %v3402
    %v3404 = vmul.f32 %v3394, 1.442695
    %v3405 = vpow.pop %v3404
    %v3406 = vmul.f32 %v3395, 1.442695
    %v3407 = vpow.pop %v3406
    %v3408 = vmul.f32 %v3396, 1.442695
    %v3409 = vpow.pop %v3408
    %v3410 = vmul.f32 %v3397, 1.442695
    %v3411 = vpow.pop %v3410
    %v3412 = vmul.f32 %v3398, 1.442695
    %v3413 = vpow.pop %v3412
    %v3414 = vmul.f32 %v3399, 1.442695
    %v3415 = vpow.pop %v3414
    %v3416 = vrot.slane %v3401, 4
    %v3417 = vadd.f32 %v3401, %v3416
    %v3418 = vrot.slane %v3417, 2
    %v3419 = vadd.f32 %v3417, %v3418
    %v3420 = vrot.slane %v3419, 1
    %v3421 = vadd.f32 %v3419, %v3420
    %v3422 = vrot.slane %v3403, 4
    %v3423 = vadd.f32 %v3403, %v3422
    %v3424 = vrot.slane %v3423, 2
    %v3425 = vadd.f32 %v3423, %v3424
    %v3426 = vrot.slane %v3425, 1
    %v3427 = vadd.f32 %v3425, %v3426
    %v3428 = vrot.slane %v3405, 4
    %v3429 = vadd.f32 %v3405, %v3428
    %v3430 = vrot.slane %v3429, 2
    %v3431 = vadd.f32 %v3429, %v3430
    %v3432 = vrot.slane %v3431, 1
    %v3433 = vadd.f32 %v3431, %v3432
    %v3434 = vrot.slane %v3407, 4
    %v3435 = vadd.f32 %v3407, %v3434
    %v3436 = vrot.slane %v3435, 2
    %v3437 = vadd.f32 %v3435, %v3436
    %v3438 = vrot.slane %v3437, 1
    %v3439 = vadd.f32 %v3437, %v3438
    %v3440 = vrot.slane %v3409, 4
    %v3441 = vadd.f32 %v3409, %v3440
    %v3442 = vrot.slane %v3441, 2
    %v3443 = vadd.f32 %v3441, %v3442
    %v3444 = vrot.slane %v3443, 1
    %v3445 = vadd.f32 %v3443, %v3444
    %v3446 = vrot.slane %v3411, 4
    %v3447 = vadd.f32 %v3411, %v3446
    %v3448 = vrot.slane %v3447, 2
    %v3449 = vadd.f32 %v3447, %v3448
    %v3450 = vrot.slane %v3449, 1
    %v3451 = vadd.f32 %v3449, %v3450
    %v3452 = vrot.slane %v3413, 4
    %v3453 = vadd.f32 %v3413, %v3452
    %v3454 = vrot.slane %v3453, 2
    %v3455 = vadd.f32 %v3453, %v3454
    %v3456 = vrot.slane %v3455, 1
    %v3457 = vadd.f32 %v3455, %v3456
    %v3458 = vrot.slane %v3415, 4
    %v3459 = vadd.f32 %v3415, %v3458
    %v3460 = vrot.slane %v3459, 2
    %v3461 = vadd.f32 %v3459, %v3460
    %v3462 = vrot.slane %v3461, 1
    %v3463 = vadd.f32 %v3461, %v3462
    %v3464 = vlog2.pop %v3421
    %v3465 = vmul.f32 %v3464, 0.6931472
    %v3466 = vlog2.pop %v3427
    %v3467 = vmul.f32 %v3466, 0.6931472
    %v3468 = vlog2.pop %v3433
    %v3469 = vmul.f32 %v3468, 0.6931472
    %v3470 = vlog2.pop %v3439
    %v3471 = vmul.f32 %v3470, 0.6931472
    %v3472 = vlog2.pop %v3445
    %v3473 = vmul.f32 %v3472, 0.6931472
    %v3474 = vlog2.pop %v3451
    %v3475 = vmul.f32 %v3474, 0.6931472
    %v3476 = vlog2.pop %v3457
    %v3477 = vmul.f32 %v3476, 0.6931472
    %v3478 = vlog2.pop %v3463
    %v3479 = vmul.f32 %v3478, 0.6931472
    %v3480 = vadd.f32 %v3349, %v3465
    %v3481 = vadd.f32 %v3355, %v3467
    %v3482 = vadd.f32 %v3361, %v3469
    %v3483 = vadd.f32 %v3367, %v3471
    %v3484 = vadd.f32 %v3373, %v3473
    %v3485 = vadd.f32 %v3379, %v3475
    %v3486 = vadd.f32 %v3385, %v3477
    %v3487 = vadd.f32 %v3391, %v3479
    %v3488 = vsub.f32 %v3336, %v3480
    %v3489 = vsub.f32 %v3337, %v3481
    %v3490 = vsub.f32 %v3338, %v3482
    %v3491 = vsub.f32 %v3339, %v3483
    %v3492 = vsub.f32 %v3340, %v3484
    %v3493 = vsub.f32 %v3341, %v3485
    %v3494 = vsub.f32 %v3342, %v3486
    %v3495 = vsub.f32 %v3343, %v3487
    %v3496 = vmax.f32 %v3488, %v3492
    %v3497 = vmax.f32 %v3489, %v3493
    %v3498 = vmax.f32 %v3490, %v3494
    %v3499 = vmax.f32 %v3491, %v3495
    %v3500 = vmax.f32 %v3496, %v3497
    %v3501 = vmax.f32 %v3498, %v3499
    %v3502 = vmax.f32 %v3500, %v3501
    %v3503 = vsub.f32 %v3488, %v3502
    %v3504 = vsub.f32 %v3489, %v3502
    %v3505 = vsub.f32 %v3490, %v3502
    %v3506 = vsub.f32 %v3491, %v3502
    %v3507 = vsub.f32 %v3492, %v3502
    %v3508 = vsub.f32 %v3493, %v3502
    %v3509 = vsub.f32 %v3494, %v3502
    %v3510 = vsub.f32 %v3495, %v3502
    %v3511 = vmul.f32 %v3503, 1.442695
    %v3512 = vpow.pop %v3511
    %v3513 = vmul.f32 %v3504, 1.442695
    %v3514 = vpow.pop %v3513
    %v3515 = vmul.f32 %v3505, 1.442695
    %v3516 = vpow.pop %v3515
    %v3517 = vmul.f32 %v3506, 1.442695
    %v3518 = vpow.pop %v3517
    %v3519 = vmul.f32 %v3507, 1.442695
    %v3520 = vpow.pop %v3519
    %v3521 = vmul.f32 %v3508, 1.442695
    %v3522 = vpow.pop %v3521
    %v3523 = vmul.f32 %v3509, 1.442695
    %v3524 = vpow.pop %v3523
    %v3525 = vmul.f32 %v3510, 1.442695
    %v3526 = vpow.pop %v3525
    %v3527 = vadd.f32 %v3512, %v3514
    %v3528 = vadd.f32 %v3527, %v3516
    %v3529 = vadd.f32 %v3528, %v3518
    %v3530 = vadd.f32 %v3529, %v3520
    %v3531 = vadd.f32 %v3530, %v3522
    %v3532 = vadd.f32 %v3531, %v3524
    %v3533 = vadd.f32 %v3532, %v3526
    %v3534 = vlog2.pop %v3533
    %v3535 = vmul.f32 %v3534, 0.6931472
    %v3536 = vadd.f32 %v3502, %v3535
    %v3537 = vsub.f32 %v3488, %v3536
    %v3538 = vsub.f32 %v3489, %v3536
    %v3539 = vsub.f32 %v3490, %v3536
    %v3540 = vsub.f32 %v3491, %v3536
    %v3541 = vsub.f32 %v3492, %v3536
    %v3542 = vsub.f32 %v3493, %v3536
    %v3543 = vsub.f32 %v3494, %v3536
    %v3544 = vsub.f32 %v3495, %v3536
    %v3545 = vrot.slane %v3537, 4
    %v3546 = vmax.f32 %v3537, %v3545
    %v3547 = vrot.slane %v3546, 2
    %v3548 = vmax.f32 %v3546, %v3547
    %v3549 = vrot.slane %v3548, 1
    %v3550 = vmax.f32 %v3548, %v3549
    %v3551 = vrot.slane %v3538, 4
    %v3552 = vmax.f32 %v3538, %v3551
    %v3553 = vrot.slane %v3552, 2
    %v3554 = vmax.f32 %v3552, %v3553
    %v3555 = vrot.slane %v3554, 1
    %v3556 = vmax.f32 %v3554, %v3555
    %v3557 = vrot.slane %v3539, 4
    %v3558 = vmax.f32 %v3539, %v3557
    %v3559 = vrot.slane %v3558, 2
    %v3560 = vmax.f32 %v3558, %v3559
    %v3561 = vrot.slane %v3560, 1
    %v3562 = vmax.f32 %v3560, %v3561
    %v3563 = vrot.slane %v3540, 4
    %v3564 = vmax.f32 %v3540, %v3563
    %v3565 = vrot.slane %v3564, 2
    %v3566 = vmax.f32 %v3564, %v3565
    %v3567 = vrot.slane %v3566, 1
    %v3568 = vmax.f32 %v3566, %v3567
    %v3569 = vrot.slane %v3541, 4
    %v3570 = vmax.f32 %v3541, %v3569
    %v3571 = vrot.slane %v3570, 2
    %v3572 = vmax.f32 %v3570, %v3571
    %v3573 = vrot.slane %v3572, 1
    %v3574 = vmax.f32 %v3572, %v3573
    %v3575 = vrot.slane %v3542, 4
    %v3576 = vmax.f32 %v3542, %v3575
    %v3577 = vrot.slane %v3576, 2
    %v3578 = vmax.f32 %v3576, %v3577
    %v3579 = vrot.slane %v3578, 1
    %v3580 = vmax.f32 %v3578, %v3579
    %v3581 = vrot.slane %v3543, 4
    %v3582 = vmax.f32 %v3543, %v3581
    %v3583 = vrot.slane %v3582, 2
    %v3584 = vmax.f32 %v3582, %v3583
    %v3585 = vrot.slane %v3584, 1
    %v3586 = vmax.f32 %v3584, %v3585
    %v3587 = vrot.slane %v3544, 4
    %v3588 = vmax.f32 %v3544, %v3587
    %v3589 = vrot.slane %v3588, 2
    %v3590 = vmax.f32 %v3588, %v3589
    %v3591 = vrot.slane %v3590, 1
    %v3592 = vmax.f32 %v3590, %v3591
    %v3593 = vsub.f32 %v3537, %v3550
    %v3594 = vsub.f32 %v3538, %v3556
    %v3595 = vsub.f32 %v3539, %v3562
    %v3596 = vsub.f32 %v3540, %v3568
    %v3597 = vsub.f32 %v3541, %v3574
    %v3598 = vsub.f32 %v3542, %v3580
    %v3599 = vsub.f32 %v3543, %v3586
    %v3600 = vsub.f32 %v3544, %v3592
    %v3601 = vmul.f32 %v3593, 1.442695
    %v3602 = vpow.pop %v3601
    %v3603 = vmul.f32 %v3594, 1.442695
    %v3604 = vpow.pop %v3603
    %v3605 = vmul.f32 %v3595, 1.442695
    %v3606 = vpow.pop %v3605
    %v3607 = vmul.f32 %v3596, 1.442695
    %v3608 = vpow.pop %v3607
    %v3609 = vmul.f32 %v3597, 1.442695
    %v3610 = vpow.pop %v3609
    %v3611 = vmul.f32 %v3598, 1.442695
    %v3612 = vpow.pop %v3611
    %v3613 = vmul.f32 %v3599, 1.442695
    %v3614 = vpow.pop %v3613
    %v3615 = vmul.f32 %v3600, 1.442695
    %v3616 = vpow.pop %v3615
    %v3617 = vrot.slane %v3602, 4
    %v3618 = vadd.f32 %v3602, %v3617
    %v3619 = vrot.slane %v3618, 2
    %v3620 = vadd.f32 %v3618, %v3619
    %v3621 = vrot.slane %v3620, 1
    %v3622 = vadd.f32 %v3620, %v3621
    %v3623 = vrot.slane %v3604, 4
    %v3624 = vadd.f32 %v3604, %v3623
    %v3625 = vrot.slane %v3624, 2
    %v3626 = vadd.f32 %v3624, %v3625
    %v3627 = vrot.slane %v3626, 1
    %v3628 = vadd.f32 %v3626, %v3627
    %v3629 = vrot.slane %v3606, 4
    %v3630 = vadd.f32 %v3606, %v3629
    %v3631 = vrot.slane %v3630, 2
    %v3632 = vadd.f32 %v3630, %v3631
    %v3633 = vrot.slane %v3632, 1
    %v3634 = vadd.f32 %v3632, %v3633
    %v3635 = vrot.slane %v3608, 4
    %v3636 = vadd.f32 %v3608, %v3635
    %v3637 = vrot.slane %v3636, 2
    %v3638 = vadd.f32 %v3636, %v3637
    %v3639 = vrot.slane %v3638, 1
    %v3640 = vadd.f32 %v3638, %v3639
    %v3641 = vrot.slane %v3610, 4
    %v3642 = vadd.f32 %v3610, %v3641
    %v3643 = vrot.slane %v3642, 2
    %v3644 = vadd.f32 %v3642, %v3643
    %v3645 = vrot.slane %v3644, 1
    %v3646 = vadd.f32 %v3644, %v3645
    %v3647 = vrot.slane %v3612, 4
    %v3648 = vadd.f32 %v3612, %v3647
    %v3649 = vrot.slane %v3648, 2
    %v3650 = vadd.f32 %v3648, %v3649
    %v3651 = vrot.slane %v3650, 1
    %v3652 = vadd.f32 %v3650, %v3651
    %v3653 = vrot.slane %v3614, 4
    %v3654 = vadd.f32 %v3614, %v3653
    %v3655 = vrot.slane %v3654, 2
    %v3656 = vadd.f32 %v3654, %v3655
    %v3657 = vrot.slane %v3656, 1
    %v3658 = vadd.f32 %v3656, %v3657
    %v3659 = vrot.slane %v3616, 4
    %v3660 = vadd.f32 %v3616, %v3659
    %v3661 = vrot.slane %v3660, 2
    %v3662 = vadd.f32 %v3660, %v3661
    %v3663 = vrot.slane %v3662, 1
    %v3664 = vadd.f32 %v3662, %v3663
    %v3665 = vlog2.pop %v3622
    %v3666 = vmul.f32 %v3665, 0.6931472
    %v3667 = vlog2.pop %v3628
    %v3668 = vmul.f32 %v3667, 0.6931472
    %v3669 = vlog2.pop %v3634
    %v3670 = vmul.f32 %v3669, 0.6931472
    %v3671 = vlog2.pop %v3640
    %v3672 = vmul.f32 %v3671, 0.6931472
    %v3673 = vlog2.pop %v3646
    %v3674 = vmul.f32 %v3673, 0.6931472
    %v3675 = vlog2.pop %v3652
    %v3676 = vmul.f32 %v3675, 0.6931472
    %v3677 = vlog2.pop %v3658
    %v3678 = vmul.f32 %v3677, 0.6931472
    %v3679 = vlog2.pop %v3664
    %v3680 = vmul.f32 %v3679, 0.6931472
    %v3681 = vadd.f32 %v3550, %v3666
    %v3682 = vadd.f32 %v3556, %v3668
    %v3683 = vadd.f32 %v3562, %v3670
    %v3684 = vadd.f32 %v3568, %v3672
    %v3685 = vadd.f32 %v3574, %v3674
    %v3686 = vadd.f32 %v3580, %v3676
    %v3687 = vadd.f32 %v3586, %v3678
    %v3688 = vadd.f32 %v3592, %v3680
    %v3689 = vsub.f32 %v3537, %v3681
    %v3690 = vsub.f32 %v3538, %v3682
    %v3691 = vsub.f32 %v3539, %v3683
    %v3692 = vsub.f32 %v3540, %v3684
    %v3693 = vsub.f32 %v3541, %v3685
    %v3694 = vsub.f32 %v3542, %v3686
    %v3695 = vsub.f32 %v3543, %v3687
    %v3696 = vsub.f32 %v3544, %v3688
    %v3697 = vmax.f32 %v3689, %v3693
    %v3698 = vmax.f32 %v3690, %v3694
    %v3699 = vmax.f32 %v3691, %v3695
    %v3700 = vmax.f32 %v3692, %v3696
    %v3701 = vmax.f32 %v3697, %v3698
    %v3702 = vmax.f32 %v3699, %v3700
    %v3703 = vmax.f32 %v3701, %v3702
    %v3704 = vsub.f32 %v3689, %v3703
    %v3705 = vsub.f32 %v3690, %v3703
    %v3706 = vsub.f32 %v3691, %v3703
    %v3707 = vsub.f32 %v3692, %v3703
    %v3708 = vsub.f32 %v3693, %v3703
    %v3709 = vsub.f32 %v3694, %v3703
    %v3710 = vsub.f32 %v3695, %v3703
    %v3711 = vsub.f32 %v3696, %v3703
    %v3712 = vmul.f32 %v3704, 1.442695
    %v3713 = vpow.pop %v3712
    %v3714 = vmul.f32 %v3705, 1.442695
    %v3715 = vpow.pop %v3714
    %v3716 = vmul.f32 %v3706, 1.442695
    %v3717 = vpow.pop %v3716
    %v3718 = vmul.f32 %v3707, 1.442695
    %v3719 = vpow.pop %v3718
    %v3720 = vmul.f32 %v3708, 1.442695
    %v3721 = vpow.pop %v3720
    %v3722 = vmul.f32 %v3709, 1.442695
    %v3723 = vpow.pop %v3722
    %v3724 = vmul.f32 %v3710, 1.442695
    %v3725 = vpow.pop %v3724
    %v3726 = vmul.f32 %v3711, 1.442695
    %v3727 = vpow.pop %v3726
    %v3728 = vadd.f32 %v3713, %v3715
    %v3729 = vadd.f32 %v3728, %v3717
    %v3730 = vadd.f32 %v3729, %v3719
    %v3731 = vadd.f32 %v3730, %v3721
    %v3732 = vadd.f32 %v3731, %v3723
    %v3733 = vadd.f32 %v3732, %v3725
    %v3734 = vadd.f32 %v3733, %v3727
    %v3735 = vlog2.pop %v3734
    %v3736 = vmul.f32 %v3735, 0.6931472
    %v3737 = vadd.f32 %v3703, %v3736
    %v3738 = vsub.f32 %v3689, %v3737
    %v3739 = vsub.f32 %v3690, %v3737
    %v3740 = vsub.f32 %v3691, %v3737
    %v3741 = vsub.f32 %v3692, %v3737
    %v3742 = vsub.f32 %v3693, %v3737
    %v3743 = vsub.f32 %v3694, %v3737
    %v3744 = vsub.f32 %v3695, %v3737
    %v3745 = vsub.f32 %v3696, %v3737
    %v3746 = vrot.slane %v3738, 4
    %v3747 = vmax.f32 %v3738, %v3746
    %v3748 = vrot.slane %v3747, 2
    %v3749 = vmax.f32 %v3747, %v3748
    %v3750 = vrot.slane %v3749, 1
    %v3751 = vmax.f32 %v3749, %v3750
    %v3752 = vrot.slane %v3739, 4
    %v3753 = vmax.f32 %v3739, %v3752
    %v3754 = vrot.slane %v3753, 2
    %v3755 = vmax.f32 %v3753, %v3754
    %v3756 = vrot.slane %v3755, 1
    %v3757 = vmax.f32 %v3755, %v3756
    %v3758 = vrot.slane %v3740, 4
    %v3759 = vmax.f32 %v3740, %v3758
    %v3760 = vrot.slane %v3759, 2
    %v3761 = vmax.f32 %v3759, %v3760
    %v3762 = vrot.slane %v3761, 1
    %v3763 = vmax.f32 %v3761, %v3762
    %v3764 = vrot.slane %v3741, 4
    %v3765 = vmax.f32 %v3741, %v3764
    %v3766 = vrot.slane %v3765, 2
    %v3767 = vmax.f32 %v3765, %v3766
    %v3768 = vrot.slane %v3767, 1
    %v3769 = vmax.f32 %v3767, %v3768
    %v3770 = vrot.slane %v3742, 4
    %v3771 = vmax.f32 %v3742, %v3770
    %v3772 = vrot.slane %v3771, 2
    %v3773 = vmax.f32 %v3771, %v3772
    %v3774 = vrot.slane %v3773, 1
    %v3775 = vmax.f32 %v3773, %v3774
    %v3776 = vrot.slane %v3743, 4
    %v3777 = vmax.f32 %v3743, %v3776
    %v3778 = vrot.slane %v3777, 2
    %v3779 = vmax.f32 %v3777, %v3778
    %v3780 = vrot.slane %v3779, 1
    %v3781 = vmax.f32 %v3779, %v3780
    %v3782 = vrot.slane %v3744, 4
    %v3783 = vmax.f32 %v3744, %v3782
    %v3784 = vrot.slane %v3783, 2
    %v3785 = vmax.f32 %v3783, %v3784
    %v3786 = vrot.slane %v3785, 1
    %v3787 = vmax.f32 %v3785, %v3786
    %v3788 = vrot.slane %v3745, 4
    %v3789 = vmax.f32 %v3745, %v3788
    %v3790 = vrot.slane %v3789, 2
    %v3791 = vmax.f32 %v3789, %v3790
    %v3792 = vrot.slane %v3791, 1
    %v3793 = vmax.f32 %v3791, %v3792
    %v3794 = vsub.f32 %v3738, %v3751
    %v3795 = vsub.f32 %v3739, %v3757
    %v3796 = vsub.f32 %v3740, %v3763
    %v3797 = vsub.f32 %v3741, %v3769
    %v3798 = vsub.f32 %v3742, %v3775
    %v3799 = vsub.f32 %v3743, %v3781
    %v3800 = vsub.f32 %v3744, %v3787
    %v3801 = vsub.f32 %v3745, %v3793
    %v3802 = vmul.f32 %v3794, 1.442695
    %v3803 = vpow.pop %v3802
    %v3804 = vmul.f32 %v3795, 1.442695
    %v3805 = vpow.pop %v3804
    %v3806 = vmul.f32 %v3796, 1.442695
    %v3807 = vpow.pop %v3806
    %v3808 = vmul.f32 %v3797, 1.442695
    %v3809 = vpow.pop %v3808
    %v3810 = vmul.f32 %v3798, 1.442695
    %v3811 = vpow.pop %v3810
    %v3812 = vmul.f32 %v3799, 1.442695
    %v3813 = vpow.pop %v3812
    %v3814 = vmul.f32 %v3800, 1.442695
    %v3815 = vpow.pop %v3814
    %v3816 = vmul.f32 %v3801, 1.442695
    %v3817 = vpow.pop %v3816
    %v3818 = vrot.slane %v3803, 4
    %v3819 = vadd.f32 %v3803, %v3818
    %v3820 = vrot.slane %v3819, 2
    %v3821 = vadd.f32 %v3819, %v3820
    %v3822 = vrot.slane %v3821, 1
    %v3823 = vadd.f32 %v3821, %v3822
    %v3824 = vrot.slane %v3805, 4
    %v3825 = vadd.f32 %v3805, %v3824
    %v3826 = vrot.slane %v3825, 2
    %v3827 = vadd.f32 %v3825, %v3826
    %v3828 = vrot.slane %v3827, 1
    %v3829 = vadd.f32 %v3827, %v3828
    %v3830 = vrot.slane %v3807, 4
    %v3831 = vadd.f32 %v3807, %v3830
    %v3832 = vrot.slane %v3831, 2
    %v3833 = vadd.f32 %v3831, %v3832
    %v3834 = vrot.slane %v3833, 1
    %v3835 = vadd.f32 %v3833, %v3834
    %v3836 = vrot.slane %v3809, 4
    %v3837 = vadd.f32 %v3809, %v3836
    %v3838 = vrot.slane %v3837, 2
    %v3839 = vadd.f32 %v3837, %v3838
    %v3840 = vrot.slane %v3839, 1
    %v3841 = vadd.f32 %v3839, %v3840
    %v3842 = vrot.slane %v3811, 4
    %v3843 = vadd.f32 %v3811, %v3842
    %v3844 = vrot.slane %v3843, 2
    %v3845 = vadd.f32 %v3843, %v3844
    %v3846 = vrot.slane %v3845, 1
    %v3847 = vadd.f32 %v3845, %v3846
    %v3848 = vrot.slane %v3813, 4
    %v3849 = vadd.f32 %v3813, %v3848
    %v3850 = vrot.slane %v3849, 2
    %v3851 = vadd.f32 %v3849, %v3850
    %v3852 = vrot.slane %v3851, 1
    %v3853 = vadd.f32 %v3851, %v3852
    %v3854 = vrot.slane %v3815, 4
    %v3855 = vadd.f32 %v3815, %v3854
    %v3856 = vrot.slane %v3855, 2
    %v3857 = vadd.f32 %v3855, %v3856
    %v3858 = vrot.slane %v3857, 1
    %v3859 = vadd.f32 %v3857, %v3858
    %v3860 = vrot.slane %v3817, 4
    %v3861 = vadd.f32 %v3817, %v3860
    %v3862 = vrot.slane %v3861, 2
    %v3863 = vadd.f32 %v3861, %v3862
    %v3864 = vrot.slane %v3863, 1
    %v3865 = vadd.f32 %v3863, %v3864
    %v3866 = vlog2.pop %v3823
    %v3867 = vmul.f32 %v3866, 0.6931472
    %v3868 = vlog2.pop %v3829
    %v3869 = vmul.f32 %v3868, 0.6931472
    %v3870 = vlog2.pop %v3835
    %v3871 = vmul.f32 %v3870, 0.6931472
    %v3872 = vlog2.pop %v3841
    %v3873 = vmul.f32 %v3872, 0.6931472
    %v3874 = vlog2.pop %v3847
    %v3875 = vmul.f32 %v3874, 0.6931472
    %v3876 = vlog2.pop %v3853
    %v3877 = vmul.f32 %v3876, 0.6931472
    %v3878 = vlog2.pop %v3859
    %v3879 = vmul.f32 %v3878, 0.6931472
    %v3880 = vlog2.pop %v3865
    %v3881 = vmul.f32 %v3880, 0.6931472
    %v3882 = vadd.f32 %v3751, %v3867
    %v3883 = vadd.f32 %v3757, %v3869
    %v3884 = vadd.f32 %v3763, %v3871
    %v3885 = vadd.f32 %v3769, %v3873
    %v3886 = vadd.f32 %v3775, %v3875
    %v3887 = vadd.f32 %v3781, %v3877
    %v3888 = vadd.f32 %v3787, %v3879
    %v3889 = vadd.f32 %v3793, %v3881
    %v3890 = vsub.f32 %v3738, %v3882
    %v3891 = vsub.f32 %v3739, %v3883
    %v3892 = vsub.f32 %v3740, %v3884
    %v3893 = vsub.f32 %v3741, %v3885
    %v3894 = vsub.f32 %v3742, %v3886
    %v3895 = vsub.f32 %v3743, %v3887
    %v3896 = vsub.f32 %v3744, %v3888
    %v3897 = vsub.f32 %v3745, %v3889
    %v3898 = vmax.f32 %v3890, %v3894
    %v3899 = vmax.f32 %v3891, %v3895
    %v3900 = vmax.f32 %v3892, %v3896
    %v3901 = vmax.f32 %v3893, %v3897
    %v3902 = vmax.f32 %v3898, %v3899
    %v3903 = vmax.f32 %v3900, %v3901
    %v3904 = vmax.f32 %v3902, %v3903
    %v3905 = vsub.f32 %v3890, %v3904
    %v3906 = vsub.f32 %v3891, %v3904
    %v3907 = vsub.f32 %v3892, %v3904
    %v3908 = vsub.f32 %v3893, %v3904
    %v3909 = vsub.f32 %v3894, %v3904
    %v3910 = vsub.f32 %v3895, %v3904
    %v3911 = vsub.f32 %v3896, %v3904
    %v3912 = vsub.f32 %v3897, %v3904
    %v3913 = vmul.f32 %v3905, 1.442695
    %v3914 = vpow.pop %v3913
    %v3915 = vmul.f32 %v3906, 1.442695
    %v3916 = vpow.pop %v3915
    %v3917 = vmul.f32 %v3907, 1.442695
    %v3918 = vpow.pop %v3917
    %v3919 = vmul.f32 %v3908, 1.442695
    %v3920 = vpow.pop %v3919
    %v3921 = vmul.f32 %v3909, 1.442695
    %v3922 = vpow.pop %v3921
    %v3923 = vmul.f32 %v3910, 1.442695
    %v3924 = vpow.pop %v3923
    %v3925 = vmul.f32 %v3911, 1.442695
    %v3926 = vpow.pop %v3925
    %v3927 = vmul.f32 %v3912, 1.442695
    %v3928 = vpow.pop %v3927
    %v3929 = vadd.f32 %v3914, %v3916
    %v3930 = vadd.f32 %v3929, %v3918
    %v3931 = vadd.f32 %v3930, %v3920
    %v3932 = vadd.f32 %v3931, %v3922
    %v3933 = vadd.f32 %v3932, %v3924
    %v3934 = vadd.f32 %v3933, %v3926
    %v3935 = vadd.f32 %v3934, %v3928
    %v3936 = vlog2.pop %v3935
    %v3937 = vmul.f32 %v3936, 0.6931472
    %v3938 = vadd.f32 %v3904, %v3937
    %v3939 = vsub.f32 %v3890, %v3938
    %v3940 = vsub.f32 %v3891, %v3938
    %v3941 = vsub.f32 %v3892, %v3938
    %v3942 = vsub.f32 %v3893, %v3938
    %v3943 = vsub.f32 %v3894, %v3938
    %v3944 = vsub.f32 %v3895, %v3938
    %v3945 = vsub.f32 %v3896, %v3938
    %v3946 = vsub.f32 %v3897, %v3938
    %v3947 = vrot.slane %v3939, 4
    %v3948 = vmax.f32 %v3939, %v3947
    %v3949 = vrot.slane %v3948, 2
    %v3950 = vmax.f32 %v3948, %v3949
    %v3951 = vrot.slane %v3950, 1
    %v3952 = vmax.f32 %v3950, %v3951
    %v3953 = vrot.slane %v3940, 4
    %v3954 = vmax.f32 %v3940, %v3953
    %v3955 = vrot.slane %v3954, 2
    %v3956 = vmax.f32 %v3954, %v3955
    %v3957 = vrot.slane %v3956, 1
    %v3958 = vmax.f32 %v3956, %v3957
    %v3959 = vrot.slane %v3941, 4
    %v3960 = vmax.f32 %v3941, %v3959
    %v3961 = vrot.slane %v3960, 2
    %v3962 = vmax.f32 %v3960, %v3961
    %v3963 = vrot.slane %v3962, 1
    %v3964 = vmax.f32 %v3962, %v3963
    %v3965 = vrot.slane %v3942, 4
    %v3966 = vmax.f32 %v3942, %v3965
    %v3967 = vrot.slane %v3966, 2
    %v3968 = vmax.f32 %v3966, %v3967
    %v3969 = vrot.slane %v3968, 1
    %v3970 = vmax.f32 %v3968, %v3969
    %v3971 = vrot.slane %v3943, 4
    %v3972 = vmax.f32 %v3943, %v3971
    %v3973 = vrot.slane %v3972, 2
    %v3974 = vmax.f32 %v3972, %v3973
    %v3975 = vrot.slane %v3974, 1
    %v3976 = vmax.f32 %v3974, %v3975
    %v3977 = vrot.slane %v3944, 4
    %v3978 = vmax.f32 %v3944, %v3977
    %v3979 = vrot.slane %v3978, 2
    %v3980 = vmax.f32 %v3978, %v3979
    %v3981 = vrot.slane %v3980, 1
    %v3982 = vmax.f32 %v3980, %v3981
    %v3983 = vrot.slane %v3945, 4
    %v3984 = vmax.f32 %v3945, %v3983
    %v3985 = vrot.slane %v3984, 2
    %v3986 = vmax.f32 %v3984, %v3985
    %v3987 = vrot.slane %v3986, 1
    %v3988 = vmax.f32 %v3986, %v3987
    %v3989 = vrot.slane %v3946, 4
    %v3990 = vmax.f32 %v3946, %v3989
    %v3991 = vrot.slane %v3990, 2
    %v3992 = vmax.f32 %v3990, %v3991
    %v3993 = vrot.slane %v3992, 1
    %v3994 = vmax.f32 %v3992, %v3993
    %v3995 = vsub.f32 %v3939, %v3952
    %v3996 = vsub.f32 %v3940, %v3958
    %v3997 = vsub.f32 %v3941, %v3964
    %v3998 = vsub.f32 %v3942, %v3970
    %v3999 = vsub.f32 %v3943, %v3976
    %v4000 = vsub.f32 %v3944, %v3982
    %v4001 = vsub.f32 %v3945, %v3988
    %v4002 = vsub.f32 %v3946, %v3994
    %v4003 = vmul.f32 %v3995, 1.442695
    %v4004 = vpow.pop %v4003
    %v4005 = vmul.f32 %v3996, 1.442695
    %v4006 = vpow.pop %v4005
    %v4007 = vmul.f32 %v3997, 1.442695
    %v4008 = vpow.pop %v4007
    %v4009 = vmul.f32 %v3998, 1.442695
    %v4010 = vpow.pop %v4009
    %v4011 = vmul.f32 %v3999, 1.442695
    %v4012 = vpow.pop %v4011
    %v4013 = vmul.f32 %v4000, 1.442695
    %v4014 = vpow.pop %v4013
    %v4015 = vmul.f32 %v4001, 1.442695
    %v4016 = vpow.pop %v4015
    %v4017 = vmul.f32 %v4002, 1.442695
    %v4018 = vpow.pop %v4017
    %v4019 = vrot.slane %v4004, 4
    %v4020 = vadd.f32 %v4004, %v4019
    %v4021 = vrot.slane %v4020, 2
    %v4022 = vadd.f32 %v4020, %v4021
    %v4023 = vrot.slane %v4022, 1
    %v4024 = vadd.f32 %v4022, %v4023
    %v4025 = vrot.slane %v4006, 4
    %v4026 = vadd.f32 %v4006, %v4025
    %v4027 = vrot.slane %v4026, 2
    %v4028 = vadd.f32 %v4026, %v4027
    %v4029 = vrot.slane %v4028, 1
    %v4030 = vadd.f32 %v4028, %v4029
    %v4031 = vrot.slane %v4008, 4
    %v4032 = vadd.f32 %v4008, %v4031
    %v4033 = vrot.slane %v4032, 2
    %v4034 = vadd.f32 %v4032, %v4033
    %v4035 = vrot.slane %v4034, 1
    %v4036 = vadd.f32 %v4034, %v4035
    %v4037 = vrot.slane %v4010, 4
    %v4038 = vadd.f32 %v4010, %v4037
    %v4039 = vrot.slane %v4038, 2
    %v4040 = vadd.f32 %v4038, %v4039
    %v4041 = vrot.slane %v4040, 1
    %v4042 = vadd.f32 %v4040, %v4041
    %v4043 = vrot.slane %v4012, 4
    %v4044 = vadd.f32 %v4012, %v4043
    %v4045 = vrot.slane %v4044, 2
    %v4046 = vadd.f32 %v4044, %v4045
    %v4047 = vrot.slane %v4046, 1
    %v4048 = vadd.f32 %v4046, %v4047
    %v4049 = vrot.slane %v4014, 4
    %v4050 = vadd.f32 %v4014, %v4049
    %v4051 = vrot.slane %v4050, 2
    %v4052 = vadd.f32 %v4050, %v4051
    %v4053 = vrot.slane %v4052, 1
    %v4054 = vadd.f32 %v4052, %v4053
    %v4055 = vrot.slane %v4016, 4
    %v4056 = vadd.f32 %v4016, %v4055
    %v4057 = vrot.slane %v4056, 2
    %v4058 = vadd.f32 %v4056, %v4057
    %v4059 = vrot.slane %v4058, 1
    %v4060 = vadd.f32 %v4058, %v4059
    %v4061 = vrot.slane %v4018, 4
    %v4062 = vadd.f32 %v4018, %v4061
    %v4063 = vrot.slane %v4062, 2
    %v4064 = vadd.f32 %v4062, %v4063
    %v4065 = vrot.slane %v4064, 1
    %v4066 = vadd.f32 %v4064, %v4065
    %v4067 = vlog2.pop %v4024
    %v4068 = vmul.f32 %v4067, 0.6931472
    %v4069 = vlog2.pop %v4030
    %v4070 = vmul.f32 %v4069, 0.6931472
    %v4071 = vlog2.pop %v4036
    %v4072 = vmul.f32 %v4071, 0.6931472
    %v4073 = vlog2.pop %v4042
    %v4074 = vmul.f32 %v4073, 0.6931472
    %v4075 = vlog2.pop %v4048
    %v4076 = vmul.f32 %v4075, 0.6931472
    %v4077 = vlog2.pop %v4054
    %v4078 = vmul.f32 %v4077, 0.6931472
    %v4079 = vlog2.pop %v4060
    %v4080 = vmul.f32 %v4079, 0.6931472
    %v4081 = vlog2.pop %v4066
    %v4082 = vmul.f32 %v4081, 0.6931472
    %v4083 = vadd.f32 %v3952, %v4068
    %v4084 = vadd.f32 %v3958, %v4070
    %v4085 = vadd.f32 %v3964, %v4072
    %v4086 = vadd.f32 %v3970, %v4074
    %v4087 = vadd.f32 %v3976, %v4076
    %v4088 = vadd.f32 %v3982, %v4078
    %v4089 = vadd.f32 %v3988, %v4080
    %v4090 = vadd.f32 %v3994, %v4082
    %v4091 = vsub.f32 %v3939, %v4083
    %v4092 = vsub.f32 %v3940, %v4084
    %v4093 = vsub.f32 %v3941, %v4085
    %v4094 = vsub.f32 %v3942, %v4086
    %v4095 = vsub.f32 %v3943, %v4087
    %v4096 = vsub.f32 %v3944, %v4088
    %v4097 = vsub.f32 %v3945, %v4089
    %v4098 = vsub.f32 %v3946, %v4090
    %v4099 = vmax.f32 %v4091, %v4095
    %v4100 = vmax.f32 %v4092, %v4096
    %v4101 = vmax.f32 %v4093, %v4097
    %v4102 = vmax.f32 %v4094, %v4098
    %v4103 = vmax.f32 %v4099, %v4100
    %v4104 = vmax.f32 %v4101, %v4102
    %v4105 = vmax.f32 %v4103, %v4104
    %v4106 = vsub.f32 %v4091, %v4105
    %v4107 = vsub.f32 %v4092, %v4105
    %v4108 = vsub.f32 %v4093, %v4105
    %v4109 = vsub.f32 %v4094, %v4105
    %v4110 = vsub.f32 %v4095, %v4105
    %v4111 = vsub.f32 %v4096, %v4105
    %v4112 = vsub.f32 %v4097, %v4105
    %v4113 = vsub.f32 %v4098, %v4105
    %v4114 = vmul.f32 %v4106, 1.442695
    %v4115 = vpow.pop %v4114
    %v4116 = vmul.f32 %v4107, 1.442695
    %v4117 = vpow.pop %v4116
    %v4118 = vmul.f32 %v4108, 1.442695
    %v4119 = vpow.pop %v4118
    %v4120 = vmul.f32 %v4109, 1.442695
    %v4121 = vpow.pop %v4120
    %v4122 = vmul.f32 %v4110, 1.442695
    %v4123 = vpow.pop %v4122
    %v4124 = vmul.f32 %v4111, 1.442695
    %v4125 = vpow.pop %v4124
    %v4126 = vmul.f32 %v4112, 1.442695
    %v4127 = vpow.pop %v4126
    %v4128 = vmul.f32 %v4113, 1.442695
    %v4129 = vpow.pop %v4128
    %v4130 = vadd.f32 %v4115, %v4117
    %v4131 = vadd.f32 %v4130, %v4119
    %v4132 = vadd.f32 %v4131, %v4121
    %v4133 = vadd.f32 %v4132, %v4123
    %v4134 = vadd.f32 %v4133, %v4125
    %v4135 = vadd.f32 %v4134, %v4127
    %v4136 = vadd.f32 %v4135, %v4129
    %v4137 = vlog2.pop %v4136
    %v4138 = vmul.f32 %v4137, 0.6931472
    %v4139 = vadd.f32 %v4105, %v4138
    %v4140 = vsub.f32 %v4091, %v4139
    %v4141 = vsub.f32 %v4092, %v4139
    %v4142 = vsub.f32 %v4093, %v4139
    %v4143 = vsub.f32 %v4094, %v4139
    %v4144 = vsub.f32 %v4095, %v4139
    %v4145 = vsub.f32 %v4096, %v4139
    %v4146 = vsub.f32 %v4097, %v4139
    %v4147 = vsub.f32 %v4098, %v4139
    %v4148 = vmul.f32 %v4140, 1.442695
    %v4149 = vpow.pop %v4148
    %v4150 = vmul.f32 %v4141, 1.442695
    %v4151 = vpow.pop %v4150
    %v4152 = vmul.f32 %v4142, 1.442695
    %v4153 = vpow.pop %v4152
    %v4154 = vmul.f32 %v4143, 1.442695
    %v4155 = vpow.pop %v4154
    %v4156 = vmul.f32 %v4144, 1.442695
    %v4157 = vpow.pop %v4156
    %v4158 = vmul.f32 %v4145, 1.442695
    %v4159 = vpow.pop %v4158
    %v4160 = vmul.f32 %v4146, 1.442695
    %v4161 = vpow.pop %v4160
    %v4162 = vmul.f32 %v4147, 1.442695
    %v4163 = vpow.pop %v4162
    %4164 = vst [vmem:[#allocation7] sm:$0xff] %v4149
    %4165 = vst [vmem:[#allocation7 + $0x8] sm:$0xff] %v4151
    %4166 = vst [vmem:[#allocation7 + $0x10] sm:$0xff] %v4153
    %4167 = vst [vmem:[#allocation7 + $0x18] sm:$0xff] %v4155
    %4168 = vst [vmem:[#allocation7 + $0x20] sm:$0xff] %v4157
    %4169 = vst [vmem:[#allocation7 + $0x28] sm:$0xff] %v4159
    %4170 = vst [vmem:[#allocation7 + $0x30] sm:$0xff] %v4161
    %4171 = vst [vmem:[#allocation7 + $0x38] sm:$0xff] %v4163
    // Predicated region
    $region18: #{tpu_custom_call.1} parent=1 // pred_check
      _
    $region19: #{tpu_custom_call.1} parent=1 // pred_check_branch
      %4173 = sbr.rel (0) target = $region21
    $region20: #{tpu_custom_call.1} parent=1 // pred_region
      %s4175 = ssub.s32 1024, 1024
      %4176 = vsyncadd [#allocation4], %s4175
      %s4177 = sshll.u32 [#allocation7], 4
      %s4178 = int_to_ptr.vmem [resolvable:$true] %s4177
      %4183 = dma.vmem_to_hbm [thread:$0]  %s4178, 1024, %s2, [#allocation4], 128, 128, 8
    $region21: #{tpu_custom_call.1} parent=1 // pred_fallthru
      _
    // Predicated region
    $region22: #{tpu_custom_call.1} parent=1 // pred_check
      _
    $region23: #{tpu_custom_call.1} parent=1 // pred_check_branch
      %4185 = sbr.rel (0) target = $region25
    $region24: #{tpu_custom_call.1} parent=1 // pred_region
      %4186 = dma.done [#allocation4], 1024
    $region25: #{tpu_custom_call.1} parent=1 // pred_fallthru
      _
    %4187 = vsyncpa [#allocation3], 1
    %4188 = vsyncpa [#allocation6], 1
    %4189 = vsyncpa [#allocation4], 1

</llo_original>
